<compile_context>
chip_gen: v6e
topology: v6e:2x2x1
jax: 0.10.0
libtpu: 0.0.40
codegen_flags: <defaults>
</compile_context>

<pallas_src>
import math
import functools

import jax
import jax.numpy as jnp
from jax.experimental import pallas as pl
from jax.experimental.pallas import tpu as pltpu

# ---------------- logical model config (matches the wrapped TfmLm) ----------------
D_MODEL = 32
N_HEADS = 4
D_HEAD = D_MODEL // N_HEADS           # 8
D_FF = 64
N_LAYERS = 2
VOCAB = 64
MAX_LEN = 512
EPS = 1e-6
NEG_INF = -1e9

# ---------------- padded (lane-dense) kernel config ----------------
DP = 128                               # d_model padded to the 128-lane width
FP = 128                               # d_ff padded
VP = 128                               # vocab padded
HSLOT = 128                            # per-head slot width (full vreg lane width)
QW = N_HEADS * HSLOT                   # 512: width of each of the Q/K/V column groups


# ---------------- in-kernel helpers ----------------
def _layer_norm_padded(x, g, b):
    """LayerNorm over the real D_MODEL features of a zero-padded (..., DP) tensor.

    Padded columns of x are zero, so sums over the full padded axis equal sums over the
    real features; statistics are divided by D_MODEL.  gamma/beta are zero in the padded
    columns, so padded outputs stay exactly zero.
    """
    mu = jnp.sum(x, axis=-1, keepdims=True) * (1.0 / D_MODEL)
    ex2 = jnp.sum(x * x, axis=-1, keepdims=True) * (1.0 / D_MODEL)
    var = jnp.maximum(ex2 - mu * mu, 0.0)
    return (x - mu) * jax.lax.rsqrt(var + EPS) * g + b


# ---------------- fused forward kernel (one batch element per grid step) ----------------
def fused_forward_kernel(x_ref, amask_ref,
                         ln1g_ref, ln1b_ref, wqkv_ref, bqkv_ref, wo_ref, bo_ref,
                         ln2g_ref, ln2b_ref, w1_ref, b1_ref, w2_ref, b2_ref,
                         lng_ref, lnb_ref, wg_ref, bg_ref,
                         o_ref, *, gen_probs, log_probs):
    _, S, _ = x_ref.shape                             # block is (1, S, DP)

    x = x_ref[...].reshape(S, DP)                     # (S, 128) f32, VMEM-resident
    mask_g = amask_ref[...].reshape(N_HEADS, S, S)    # additive: 0 keep / -1e9 masked

    def split_heads(t2):
        # (S, N_HEADS*HSLOT) -> (N_HEADS, S, HSLOT); every slice is 128-lane aligned.
        return jnp.stack([t2[:, h * HSLOT:(h + 1) * HSLOT] for h in range(N_HEADS)],
                         axis=0)

    def merge_heads(ctx):
        # (N_HEADS, S, HSLOT) -> (S, N_HEADS*HSLOT); 128-lane-aligned concat.
        return jnp.concatenate([ctx[h] for h in range(N_HEADS)], axis=-1)

    for l in range(N_LAYERS):                         # static unroll over layers
        # --- masked multi-head self-attention (pre-norm) ---
        h = _layer_norm_padded(x, ln1g_ref[l], ln1b_ref[l])
        qkv = jnp.dot(h.astype(jnp.bfloat16), wqkv_ref[l],
                      preferred_element_type=jnp.float32) + bqkv_ref[l]
        q = split_heads(qkv[:, 0 * QW:1 * QW])        # scale already folded into Wq/bq
        k = split_heads(qkv[:, 1 * QW:2 * QW])
        v = split_heads(qkv[:, 2 * QW:3 * QW])

        s = jnp.einsum('gqd,gkd->gqk', q.astype(jnp.bfloat16), k.astype(jnp.bfloat16),
                       preferred_element_type=jnp.float32)        # (H, S, S)
        s = s + mask_g
        s = s - jnp.max(s, axis=-1, keepdims=True)
        p = jnp.exp(s)
        p = p * pl.reciprocal(jnp.sum(p, axis=-1, keepdims=True), approx=True)
        ctx = jnp.einsum('gqk,gkd->gqd', p.astype(jnp.bfloat16), v.astype(jnp.bfloat16),
                         preferred_element_type=jnp.float32)       # (H, S, HSLOT)
        attn = jnp.dot(merge_heads(ctx).astype(jnp.bfloat16), wo_ref[l],
                       preferred_element_type=jnp.float32) + bo_ref[l]
        x = x + attn                                   # residual (dropout == identity)

        # --- position-wise FFN (pre-norm) ---
        h2 = _layer_norm_padded(x, ln2g_ref[l], ln2b_ref[l])
        f = jnp.dot(h2.astype(jnp.bfloat16), w1_ref[l],
                    preferred_element_type=jnp.float32) + b1_ref[l]
        f = jnp.maximum(f, 0.0)                        # ReLU (f32)
        f = jnp.dot(f.astype(jnp.bfloat16), w2_ref[l],
                    preferred_element_type=jnp.float32) + b2_ref[l]
        x = x + f                                      # residual

    # --- final LayerNorm (+ generator) ---
    h = _layer_norm_padded(x, lng_ref[...], lnb_ref[...])
    if gen_probs:
        # padded vocab columns carry a baked-in -1e9 bias -> ~zero probability mass there
        logits = jnp.dot(h.astype(jnp.bfloat16), wg_ref[...],
                         preferred_element_type=jnp.float32) + bg_ref[...]
        z = logits - jnp.max(logits, axis=-1, keepdims=True)
        ez = jnp.exp(z)
        denom = jnp.sum(ez, axis=-1, keepdims=True)
        if log_probs:
            out = z - jnp.log(denom)
        else:
            out = ez / denom                           # exact normalization for outputs
        o_ref[...] = out.reshape(1, S, VP)
    else:
        o_ref[...] = h.reshape(1, S, DP)


# ---------------- pallas_call wrapper ----------------
def _resident_spec(shape):
    """Full-array block with a constant index_map: stays VMEM-resident across the grid."""
    nd = len(shape)
    return pl.BlockSpec(shape, lambda b, _nd=nd: (0,) * _nd)


def fused_forward(x, mask_bh, weights, gen_probs, log_probs):
    B, S, _ = x.shape
    out_dim = VP if gen_probs else DP
    kern = functools.partial(fused_forward_kernel,
                             gen_probs=bool(gen_probs), log_probs=bool(log_probs))
    inputs = (x, mask_bh) + tuple(weights)
    in_specs = [
        pl.BlockSpec((1, S, DP), lambda b: (b, 0, 0)),                 # activations
        pl.BlockSpec((1, N_HEADS, S, S), lambda b: (b, 0, 0, 0)),      # per-(b,h) mask
    ] + [_resident_spec(w.shape) for w in weights]
    return pl.pallas_call(
        kern,
        out_shape=jax.ShapeDtypeStruct((B, S, out_dim), jnp.float32),
        grid=(B,),                                                     # parallel over batch
        in_specs=in_specs,
        out_specs=pl.BlockSpec((1, S, out_dim), lambda b: (b, 0, 0)),
        compiler_params=pltpu.CompilerParams(
            dimension_semantics=("parallel",),
            vmem_limit_bytes=32 * 1024 * 1024),
    )(*inputs)


# ---------------- plain-JAX glue: params, padding, forward ----------------
def positional_encoding(max_len, d):
    pos = jnp.arange(max_len, dtype=jnp.float32)[:, None]
    i = jnp.arange(0, d, 2, dtype=jnp.float32)
    div = jnp.exp(-math.log(10000.0) * i / d)
    pe = jnp.zeros((max_len, d), dtype=jnp.float32)
    pe = pe.at[:, 0::2].set(jnp.sin(pos * div))
    pe = pe.at[:, 1::2].set(jnp.cos(pos * div))
    return pe


def init_params(key):
    def dense(k, shape, scale=0.02):
        return (scale * jax.random.normal(k, shape)).astype(jnp.float32)

    keys = jax.random.split(key, 2 + N_LAYERS)
    emb = dense(keys[0], (VOCAB, D_MODEL), 1.0 / math.sqrt(D_MODEL))
    gk = jax.random.split(keys[1], 1)[0]
    gen = (dense(gk, (D_MODEL, VOCAB)), jnp.zeros((1, VOCAB), jnp.float32))
    layers = []
    for i in range(N_LAYERS):
        lk = jax.random.split(keys[2 + i], 4)
        layers.append((
            jnp.ones((1, D_MODEL), jnp.float32), jnp.zeros((1, D_MODEL), jnp.float32),     # ln1
            dense(lk[0], (D_MODEL, 3 * D_MODEL)), jnp.zeros((1, 3 * D_MODEL), jnp.float32),  # qkv
            dense(lk[1], (D_MODEL, D_MODEL)), jnp.zeros((1, D_MODEL), jnp.float32),        # out proj
            jnp.ones((1, D_MODEL), jnp.float32), jnp.zeros((1, D_MODEL), jnp.float32),     # ln2
            dense(lk[2], (D_MODEL, D_FF)), jnp.zeros((1, D_FF), jnp.float32),              # ffn1
            dense(lk[3], (D_FF, D_MODEL)), jnp.zeros((1, D_MODEL), jnp.float32),           # ffn2
        ))
    final_ln = (jnp.ones((1, D_MODEL), jnp.float32), jnp.zeros((1, D_MODEL), jnp.float32))
    return dict(emb=emb, pos=positional_encoding(MAX_LEN, D_MODEL),
                layers=layers, final_ln=final_ln, gen=gen)


def _pad_to(a, shape):
    return jnp.pad(a, [(0, t - s) for s, t in zip(a.shape, shape)])


def _spread_head_cols(w, scale=1.0):
    """Move last-dim feature h*D_HEAD+j -> 128-lane slot h*HSLOT+j (zeros elsewhere)."""
    out = jnp.zeros(w.shape[:-1] + (QW,), w.dtype)
    for h in range(N_HEADS):
        out = out.at[..., h * HSLOT:h * HSLOT + D_HEAD].set(
            w[..., h * D_HEAD:(h + 1) * D_HEAD] * scale)
    return out


def _spread_head_rows(w):
    """Move first-dim feature h*D_HEAD+j -> 128-lane slot h*HSLOT+j (zeros elsewhere)."""
    out = jnp.zeros((QW,) + w.shape[1:], w.dtype)
    for h in range(N_HEADS):
        out = out.at[h * HSLOT:h * HSLOT + D_HEAD].set(
            w[h * D_HEAD:(h + 1) * D_HEAD])
    return out


def prepare_kernel_params(params):
    """Lane-pad to 128, spread heads to 128-lane slots, fold the q scale, stack layers,
    and store matmul weights in bf16 (biases / LayerNorm params stay f32)."""
    q_scale = 1.0 / math.sqrt(D_HEAD)
    names = ['ln1g', 'ln1b', 'wqkv', 'bqkv', 'wo', 'bo',
             'ln2g', 'ln2b', 'w1', 'b1', 'w2', 'b2']
    fields = {n: [] for n in names}
    for (ln1_g, ln1_b, wqkv, bqkv, wo, bo,
         ln2_g, ln2_b, w1, b1, w2, b2) in params['layers']:
        wq, wk, wv = jnp.split(wqkv, 3, axis=1)
        bq, bk, bv = jnp.split(bqkv, 3, axis=1)
        pw = lambda w, s=1.0: _pad_to(_spread_head_cols(w, s), (DP, QW))
        fields['ln1g'].append(_pad_to(ln1_g, (1, DP)))
        fields['ln1b'].append(_pad_to(ln1_b, (1, DP)))
        fields['wqkv'].append(jnp.concatenate(
            [pw(wq, q_scale), pw(wk), pw(wv)], axis=1))                       # (DP, 3*QW)
        fields['bqkv'].append(jnp.concatenate(
            [_spread_head_cols(bq, q_scale), _spread_head_cols(bk),
             _spread_head_cols(bv)], axis=1))                                 # (1, 3*QW)
        fields['wo'].append(_pad_to(_spread_head_rows(wo), (QW, DP)))
        fields['bo'].append(_pad_to(bo, (1, DP)))
        fields['ln2g'].append(_pad_to(ln2_g, (1, DP)))
        fields['ln2b'].append(_pad_to(ln2_b, (1, DP)))
        fields['w1'].append(_pad_to(w1, (DP, FP)))
        fields['b1'].append(_pad_to(b1, (1, FP)))
        fields['w2'].append(_pad_to(w2, (FP, DP)))
        fields['b2'].append(_pad_to(b2, (1, DP)))

    bf16_fields = {'wqkv', 'wo', 'w1', 'w2'}          # MXU operands stored half-width
    stacked = tuple(
        jnp.stack(fields[n]).astype(jnp.bfloat16 if n in bf16_fields else jnp.float32)
        for n in names)

    lng, lnb = params['final_ln']
    wg, bg = params['gen']
    bg_p = jnp.full((1, VP), NEG_INF, jnp.float32).at[:, :VOCAB].set(bg)   # mask padded vocab
    final = (_pad_to(lng, (1, DP)), _pad_to(lnb, (1, DP)),
             _pad_to(wg, (DP, VP)).astype(jnp.bfloat16), bg_p)

    return dict(emb=_pad_to(params['emb'], (VOCAB, DP)),
                pos=_pad_to(params['pos'], (MAX_LEN, DP)),
                weights=stacked + final)


@functools.partial(jax.jit, static_argnames=("gen_probs", "log_probs"))
def tfm_lm_forward(kparams, y_seqs, y_mask, gen_probs=True, log_probs=False):
    B, S = y_seqs.shape
    # embedding gather (data-dependent table lookup) + positions stay in plain JAX glue;
    # the embedding / positional tables are already lane-padded to DP with zeros.
    x = kparams['emb'][y_seqs] * math.sqrt(D_MODEL) + kparams['pos'][:S][None, :, :]
    # additive mask computed ONCE and expanded per head in the wrapper (not in-kernel)
    amask = (y_mask.astype(jnp.float32) - 1.0) * 1e9                        # (B, S, S)
    mask_bh = jnp.repeat(amask[:, None, :, :], N_HEADS, axis=1)             # (B, H, S, S)
    out = fused_forward(x, mask_bh, kparams['weights'], gen_probs, log_probs)
    return out[:, :, :VOCAB] if gen_probs else out[:, :, :D_MODEL]


class TfmLmWrapperPallas:
    """Pallas/JAX equivalent of rtg.syscomb.combo.TfmLmWrapper."""

    def __init__(self, params):
        self.params = params
        self.kparams = prepare_kernel_params(params)

    @property
    def vocab_size(self):
        return VOCAB

    def encode(self, x_seqs, x_lens):
        # original module: `pass` (the LM has no encoder)
        return None

    def decode(self, x_mem, x_mask, past_ys, y_mask):
        return tfm_lm_forward(self.kparams, past_ys, y_mask, gen_probs=False)

    def __call__(self, x_seqs, y_seqs, x_mask, y_mask, gen_probs=True, log_probs=False):
        # x_seqs / x_mask are ignored, exactly like the PyTorch wrapper.
        return tfm_lm_forward(self.kparams, y_seqs, y_mask,
                              gen_probs=gen_probs, log_probs=log_probs)


# ---------------- demo ----------------
if __name__ == "__main__":
    key = jax.random.PRNGKey(0)
    pkey, dkey = jax.random.split(key)
    params = init_params(pkey)
    model = TfmLmWrapperPallas(params)

    B, S = 2, 8
    y_seqs = jax.random.randint(dkey, (B, S), 0, VOCAB, dtype=jnp.int32)
    x_seqs = y_seqs                                             # ignored by the wrapper
    lens = jnp.array([S, S - 2], dtype=jnp.int32)
    pad = jnp.arange(S)[None, :] < lens[:, None]                # (B, S)
    causal = jnp.tril(jnp.ones((S, S), dtype=bool))             # (S, S)
    y_mask = (pad[:, None, :] & causal[None, :, :]).astype(jnp.float32)   # (B, S, S)
    x_mask = pad[:, None, :].astype(jnp.float32)                # ignored by the wrapper

    probs = jax.block_until_ready(
        model(x_seqs, y_seqs, x_mask, y_mask, gen_probs=True, log_probs=False))
    logp = jax.block_until_ready(
        model(x_seqs, y_seqs, x_mask, y_mask, gen_probs=True, log_probs=True))
    feats = jax.block_until_ready(model.decode(None, x_mask, y_seqs, y_mask))

    assert probs.shape == (B, S, VOCAB) and logp.shape == (B, S, VOCAB)
    assert feats.shape == (B, S, D_MODEL)
    assert bool(jnp.all(jnp.isfinite(probs))) and bool(jnp.all(jnp.isfinite(logp)))
    assert bool(jnp.allclose(jnp.sum(probs, axis=-1), 1.0, atol=1e-3))
    assert bool(jnp.allclose(jnp.sum(jnp.exp(logp), axis=-1), 1.0, atol=1e-3))
    print("KERNEL_OK")
</pallas_src>

<mosaic_0001>
module attributes {stable_mosaic.version = 11 : i64} {
  func.func @fused_forward_kernel(%arg0: i32, %arg1: memref<1x8x128xf32, #tpu.memory_space<vmem>>, %arg2: memref<1x4x8x8xf32, #tpu.memory_space<vmem>>, %arg3: memref<2x1x128xf32, #tpu.memory_space<vmem>>, %arg4: memref<2x1x128xf32, #tpu.memory_space<vmem>>, %arg5: memref<2x128x1536xbf16, #tpu.memory_space<vmem>>, %arg6: memref<2x1x1536xf32, #tpu.memory_space<vmem>>, %arg7: memref<2x512x128xbf16, #tpu.memory_space<vmem>>, %arg8: memref<2x1x128xf32, #tpu.memory_space<vmem>>, %arg9: memref<2x1x128xf32, #tpu.memory_space<vmem>>, %arg10: memref<2x1x128xf32, #tpu.memory_space<vmem>>, %arg11: memref<2x128x128xbf16, #tpu.memory_space<vmem>>, %arg12: memref<2x1x128xf32, #tpu.memory_space<vmem>>, %arg13: memref<2x128x128xbf16, #tpu.memory_space<vmem>>, %arg14: memref<2x1x128xf32, #tpu.memory_space<vmem>>, %arg15: memref<1x128xf32, #tpu.memory_space<vmem>>, %arg16: memref<1x128xf32, #tpu.memory_space<vmem>>, %arg17: memref<128x128xbf16, #tpu.memory_space<vmem>>, %arg18: memref<1x128xf32, #tpu.memory_space<vmem>>, %arg19: memref<1x8x128xf32, #tpu.memory_space<vmem>>) attributes {dimension_semantics = [#tpu.dimension_semantics<parallel>], iteration_bounds = array<i64: 2>, scalar_prefetch = 0 : i64, scratch_operands = 0 : i64, tpu.core_type = #tpu.core_type<tc>, window_params = [{transform_indices = @transform_0, window_bounds = array<i64: 1, 8, 128>}, {transform_indices = @transform_1, window_bounds = array<i64: 1, 4, 8, 8>}, {pipeline_mode = #tpu.pipeline_mode<synchronous>, transform_indices = @transform_2, window_bounds = array<i64: 2, 1, 128>}, {pipeline_mode = #tpu.pipeline_mode<synchronous>, transform_indices = @transform_3, window_bounds = array<i64: 2, 1, 128>}, {pipeline_mode = #tpu.pipeline_mode<synchronous>, transform_indices = @transform_4, window_bounds = array<i64: 2, 128, 1536>}, {pipeline_mode = #tpu.pipeline_mode<synchronous>, transform_indices = @transform_5, window_bounds = array<i64: 2, 1, 1536>}, {pipeline_mode = #tpu.pipeline_mode<synchronous>, transform_indices = @transform_6, window_bounds = array<i64: 2, 512, 128>}, {pipeline_mode = #tpu.pipeline_mode<synchronous>, transform_indices = @transform_7, window_bounds = array<i64: 2, 1, 128>}, {pipeline_mode = #tpu.pipeline_mode<synchronous>, transform_indices = @transform_8, window_bounds = array<i64: 2, 1, 128>}, {pipeline_mode = #tpu.pipeline_mode<synchronous>, transform_indices = @transform_9, window_bounds = array<i64: 2, 1, 128>}, {pipeline_mode = #tpu.pipeline_mode<synchronous>, transform_indices = @transform_10, window_bounds = array<i64: 2, 128, 128>}, {pipeline_mode = #tpu.pipeline_mode<synchronous>, transform_indices = @transform_11, window_bounds = array<i64: 2, 1, 128>}, {pipeline_mode = #tpu.pipeline_mode<synchronous>, transform_indices = @transform_12, window_bounds = array<i64: 2, 128, 128>}, {pipeline_mode = #tpu.pipeline_mode<synchronous>, transform_indices = @transform_13, window_bounds = array<i64: 2, 1, 128>}, {pipeline_mode = #tpu.pipeline_mode<synchronous>, transform_indices = @transform_14, window_bounds = array<i64: 1, 128>}, {pipeline_mode = #tpu.pipeline_mode<synchronous>, transform_indices = @transform_15, window_bounds = array<i64: 1, 128>}, {pipeline_mode = #tpu.pipeline_mode<synchronous>, transform_indices = @transform_16, window_bounds = array<i64: 128, 128>}, {pipeline_mode = #tpu.pipeline_mode<synchronous>, transform_indices = @transform_17, window_bounds = array<i64: 1, 128>}, {transform_indices = @transform_18, window_bounds = array<i64: 1, 8, 128>}]} {
    %c0 = arith.constant 0 : index
    %c0_0 = arith.constant 0 : index
    %c0_1 = arith.constant 0 : index
    %0 = vector.load %arg1[%c0, %c0_0, %c0_1] : memref<1x8x128xf32, #tpu.memory_space<vmem>>, vector<1x8x128xf32>
    %1 = vector.shape_cast %0 : vector<1x8x128xf32> to vector<8x128xf32>
    %c0_2 = arith.constant 0 : index
    %c0_3 = arith.constant 0 : index
    %c0_4 = arith.constant 0 : index
    %c0_5 = arith.constant 0 : index
    %2 = vector.load %arg2[%c0_2, %c0_3, %c0_4, %c0_5] : memref<1x4x8x8xf32, #tpu.memory_space<vmem>>, vector<1x4x8x8xf32>
    %3 = vector.shape_cast %2 : vector<1x4x8x8xf32> to vector<4x8x8xf32>
    %c0_6 = arith.constant 0 : index
    %c0_7 = arith.constant 0 : index
    %c0_8 = arith.constant 0 : index
    %4 = vector.load %arg3[%c0_6, %c0_7, %c0_8] : memref<2x1x128xf32, #tpu.memory_space<vmem>>, vector<1x1x128xf32>
    %5 = vector.shape_cast %4 : vector<1x1x128xf32> to vector<1x128xf32>
    %c0_9 = arith.constant 0 : index
    %c0_10 = arith.constant 0 : index
    %c0_11 = arith.constant 0 : index
    %6 = vector.load %arg4[%c0_9, %c0_10, %c0_11] : memref<2x1x128xf32, #tpu.memory_space<vmem>>, vector<1x1x128xf32>
    %7 = vector.shape_cast %6 : vector<1x1x128xf32> to vector<1x128xf32>
    %cst = arith.constant dense<0.000000e+00> : vector<8xf32>
    %8 = vector.multi_reduction <add>, %1, %cst [1] : vector<8x128xf32> to vector<8xf32>
    %9 = vector.shape_cast %8 : vector<8xf32> to vector<8x1xf32>
    %cst_12 = arith.constant 3.125000e-02 : f32
    %10 = vector.broadcast %cst_12 : f32 to vector<8x1xf32>
    %11 = arith.mulf %9, %10 : vector<8x1xf32>
    %12 = arith.mulf %1, %1 : vector<8x128xf32>
    %cst_13 = arith.constant dense<0.000000e+00> : vector<8xf32>
    %13 = vector.multi_reduction <add>, %12, %cst_13 [1] : vector<8x128xf32> to vector<8xf32>
    %14 = vector.shape_cast %13 : vector<8xf32> to vector<8x1xf32>
    %cst_14 = arith.constant 3.125000e-02 : f32
    %15 = vector.broadcast %cst_14 : f32 to vector<8x1xf32>
    %16 = arith.mulf %14, %15 : vector<8x1xf32>
    %17 = arith.mulf %11, %11 : vector<8x1xf32>
    %18 = arith.subf %16, %17 : vector<8x1xf32>
    %cst_15 = arith.constant 0.000000e+00 : f32
    %19 = vector.broadcast %cst_15 : f32 to vector<8x1xf32>
    %20 = arith.maximumf %18, %19 : vector<8x1xf32>
    %21 = vector.broadcast %11 : vector<8x1xf32> to vector<8x128xf32>
    %22 = arith.subf %1, %21 : vector<8x128xf32>
    %cst_16 = arith.constant 9.99999997E-7 : f32
    %23 = vector.broadcast %cst_16 : f32 to vector<8x1xf32>
    %24 = arith.addf %20, %23 : vector<8x1xf32>
    %25 = math.rsqrt %24 : vector<8x1xf32>
    %26 = vector.broadcast %25 : vector<8x1xf32> to vector<8x128xf32>
    %27 = arith.mulf %22, %26 : vector<8x128xf32>
    %28 = vector.broadcast %5 : vector<1x128xf32> to vector<8x128xf32>
    %29 = arith.mulf %27, %28 : vector<8x128xf32>
    %30 = vector.broadcast %7 : vector<1x128xf32> to vector<8x128xf32>
    %31 = arith.addf %29, %30 : vector<8x128xf32>
    %32 = arith.truncf %31 : vector<8x128xf32> to vector<8x128xbf16>
    %c0_17 = arith.constant 0 : index
    %c0_18 = arith.constant 0 : index
    %c0_19 = arith.constant 0 : index
    %33 = vector.load %arg5[%c0_17, %c0_18, %c0_19] : memref<2x128x1536xbf16, #tpu.memory_space<vmem>>, vector<1x128x1536xbf16>
    %34 = vector.shape_cast %33 : vector<1x128x1536xbf16> to vector<128x1536xbf16>
    %cst_20 = arith.constant dense<0.000000e+00> : vector<8x1536xf32>
    %35 = tpu.matmul %32, %34, %cst_20 {dimension_numbers = #tpu.dot_dimension_numbers<[1], [0], [0], [1], [0, 0, 1, 1], [], []>} : vector<8x128xbf16>, vector<128x1536xbf16>, vector<8x1536xf32> -> vector<8x1536xf32>
    %c0_21 = arith.constant 0 : index
    %c0_22 = arith.constant 0 : index
    %c0_23 = arith.constant 0 : index
    %36 = vector.load %arg6[%c0_21, %c0_22, %c0_23] : memref<2x1x1536xf32, #tpu.memory_space<vmem>>, vector<1x1x1536xf32>
    %37 = vector.shape_cast %36 : vector<1x1x1536xf32> to vector<1x1536xf32>
    %38 = vector.broadcast %37 : vector<1x1536xf32> to vector<8x1536xf32>
    %39 = arith.addf %35, %38 : vector<8x1536xf32>
    %40 = vector.extract_strided_slice %39 {offsets = [0, 0], sizes = [8, 512], strides = [1, 1]} : vector<8x1536xf32> to vector<8x512xf32>
    %41 = vector.extract_strided_slice %40 {offsets = [0, 0], sizes = [8, 128], strides = [1, 1]} : vector<8x512xf32> to vector<8x128xf32>
    %42 = vector.extract_strided_slice %40 {offsets = [0, 128], sizes = [8, 128], strides = [1, 1]} : vector<8x512xf32> to vector<8x128xf32>
    %43 = vector.extract_strided_slice %40 {offsets = [0, 256], sizes = [8, 128], strides = [1, 1]} : vector<8x512xf32> to vector<8x128xf32>
    %44 = vector.extract_strided_slice %40 {offsets = [0, 384], sizes = [8, 128], strides = [1, 1]} : vector<8x512xf32> to vector<8x128xf32>
    %45 = vector.shape_cast %41 : vector<8x128xf32> to vector<1x8x128xf32>
    %46 = vector.shape_cast %42 : vector<8x128xf32> to vector<1x8x128xf32>
    %47 = vector.shape_cast %43 : vector<8x128xf32> to vector<1x8x128xf32>
    %48 = vector.shape_cast %44 : vector<8x128xf32> to vector<1x8x128xf32>
    %49 = tpu.concatenate %45, %46, %47, %48 in 0 : vector<1x8x128xf32>, vector<1x8x128xf32>, vector<1x8x128xf32>, vector<1x8x128xf32> -> vector<4x8x128xf32>
    %50 = vector.extract_strided_slice %39 {offsets = [0, 512], sizes = [8, 512], strides = [1, 1]} : vector<8x1536xf32> to vector<8x512xf32>
    %51 = vector.extract_strided_slice %50 {offsets = [0, 0], sizes = [8, 128], strides = [1, 1]} : vector<8x512xf32> to vector<8x128xf32>
    %52 = vector.extract_strided_slice %50 {offsets = [0, 128], sizes = [8, 128], strides = [1, 1]} : vector<8x512xf32> to vector<8x128xf32>
    %53 = vector.extract_strided_slice %50 {offsets = [0, 256], sizes = [8, 128], strides = [1, 1]} : vector<8x512xf32> to vector<8x128xf32>
    %54 = vector.extract_strided_slice %50 {offsets = [0, 384], sizes = [8, 128], strides = [1, 1]} : vector<8x512xf32> to vector<8x128xf32>
    %55 = vector.shape_cast %51 : vector<8x128xf32> to vector<1x8x128xf32>
    %56 = vector.shape_cast %52 : vector<8x128xf32> to vector<1x8x128xf32>
    %57 = vector.shape_cast %53 : vector<8x128xf32> to vector<1x8x128xf32>
    %58 = vector.shape_cast %54 : vector<8x128xf32> to vector<1x8x128xf32>
    %59 = tpu.concatenate %55, %56, %57, %58 in 0 : vector<1x8x128xf32>, vector<1x8x128xf32>, vector<1x8x128xf32>, vector<1x8x128xf32> -> vector<4x8x128xf32>
    %60 = vector.extract_strided_slice %39 {offsets = [0, 1024], sizes = [8, 512], strides = [1, 1]} : vector<8x1536xf32> to vector<8x512xf32>
    %61 = vector.extract_strided_slice %60 {offsets = [0, 0], sizes = [8, 128], strides = [1, 1]} : vector<8x512xf32> to vector<8x128xf32>
    %62 = vector.extract_strided_slice %60 {offsets = [0, 128], sizes = [8, 128], strides = [1, 1]} : vector<8x512xf32> to vector<8x128xf32>
    %63 = vector.extract_strided_slice %60 {offsets = [0, 256], sizes = [8, 128], strides = [1, 1]} : vector<8x512xf32> to vector<8x128xf32>
    %64 = vector.extract_strided_slice %60 {offsets = [0, 384], sizes = [8, 128], strides = [1, 1]} : vector<8x512xf32> to vector<8x128xf32>
    %65 = vector.shape_cast %61 : vector<8x128xf32> to vector<1x8x128xf32>
    %66 = vector.shape_cast %62 : vector<8x128xf32> to vector<1x8x128xf32>
    %67 = vector.shape_cast %63 : vector<8x128xf32> to vector<1x8x128xf32>
    %68 = vector.shape_cast %64 : vector<8x128xf32> to vector<1x8x128xf32>
    %69 = tpu.concatenate %65, %66, %67, %68 in 0 : vector<1x8x128xf32>, vector<1x8x128xf32>, vector<1x8x128xf32>, vector<1x8x128xf32> -> vector<4x8x128xf32>
    %70 = arith.truncf %49 : vector<4x8x128xf32> to vector<4x8x128xbf16>
    %71 = arith.truncf %59 : vector<4x8x128xf32> to vector<4x8x128xbf16>
    "tpu.trace_start"() <{level = 10 : i32, message = "gqd,gkd->gqk"}> : () -> ()
    %cst_24 = arith.constant dense<0.000000e+00> : vector<4x8x8xf32>
    %72 = tpu.matmul %70, %71, %cst_24 {dimension_numbers = #tpu.dot_dimension_numbers<[2], [2], [1], [1], [0, 0, 0, 1, 1, 1], [0], [0]>} : vector<4x8x128xbf16>, vector<4x8x128xbf16>, vector<4x8x8xf32> -> vector<4x8x8xf32>
    "tpu.trace_stop"() : () -> ()
    %73 = arith.addf %72, %3 : vector<4x8x8xf32>
    %cst_25 = arith.constant dense<0xFF800000> : vector<4x8xf32>
    %74 = vector.multi_reduction <maximumf>, %73, %cst_25 [2] : vector<4x8x8xf32> to vector<4x8xf32>
    %75 = vector.shape_cast %74 : vector<4x8xf32> to vector<4x8x1xf32>
    %76 = vector.broadcast %75 : vector<4x8x1xf32> to vector<4x8x8xf32>
    %77 = arith.subf %73, %76 : vector<4x8x8xf32>
    %78 = math.exp %77 : vector<4x8x8xf32>
    %cst_26 = arith.constant dense<0.000000e+00> : vector<4x8xf32>
    %79 = vector.multi_reduction <add>, %78, %cst_26 [2] : vector<4x8x8xf32> to vector<4x8xf32>
    %80 = vector.shape_cast %79 : vector<4x8xf32> to vector<4x8x1xf32>
    %81 = tpu.reciprocal %80 {approx = true} : vector<4x8x1xf32> -> vector<4x8x1xf32>
    %82 = vector.broadcast %81 : vector<4x8x1xf32> to vector<4x8x8xf32>
    %83 = arith.mulf %78, %82 : vector<4x8x8xf32>
    %84 = arith.truncf %83 : vector<4x8x8xf32> to vector<4x8x8xbf16>
    %85 = arith.truncf %69 : vector<4x8x128xf32> to vector<4x8x128xbf16>
    "tpu.trace_start"() <{level = 10 : i32, message = "gqk,gkd->gqd"}> : () -> ()
    %cst_27 = arith.constant dense<0.000000e+00> : vector<4x8x128xf32>
    %86 = tpu.matmul %84, %85, %cst_27 {dimension_numbers = #tpu.dot_dimension_numbers<[2], [1], [1], [2], [0, 0, 0, 1, 1, 2], [0], [0]>} : vector<4x8x8xbf16>, vector<4x8x128xbf16>, vector<4x8x128xf32> -> vector<4x8x128xf32>
    "tpu.trace_stop"() : () -> ()
    %87 = vector.extract_strided_slice %86 {offsets = [0, 0, 0], sizes = [1, 8, 128], strides = [1, 1, 1]} : vector<4x8x128xf32> to vector<1x8x128xf32>
    %88 = vector.shape_cast %87 : vector<1x8x128xf32> to vector<8x128xf32>
    %89 = vector.extract_strided_slice %86 {offsets = [1, 0, 0], sizes = [1, 8, 128], strides = [1, 1, 1]} : vector<4x8x128xf32> to vector<1x8x128xf32>
    %90 = vector.shape_cast %89 : vector<1x8x128xf32> to vector<8x128xf32>
    %91 = vector.extract_strided_slice %86 {offsets = [2, 0, 0], sizes = [1, 8, 128], strides = [1, 1, 1]} : vector<4x8x128xf32> to vector<1x8x128xf32>
    %92 = vector.shape_cast %91 : vector<1x8x128xf32> to vector<8x128xf32>
    %93 = vector.extract_strided_slice %86 {offsets = [3, 0, 0], sizes = [1, 8, 128], strides = [1, 1, 1]} : vector<4x8x128xf32> to vector<1x8x128xf32>
    %94 = vector.shape_cast %93 : vector<1x8x128xf32> to vector<8x128xf32>
    %95 = tpu.concatenate %88, %90, %92, %94 in 1 : vector<8x128xf32>, vector<8x128xf32>, vector<8x128xf32>, vector<8x128xf32> -> vector<8x512xf32>
    %96 = arith.truncf %95 : vector<8x512xf32> to vector<8x512xbf16>
    %c0_28 = arith.constant 0 : index
    %c0_29 = arith.constant 0 : index
    %c0_30 = arith.constant 0 : index
    %97 = vector.load %arg7[%c0_28, %c0_29, %c0_30] : memref<2x512x128xbf16, #tpu.memory_space<vmem>>, vector<1x512x128xbf16>
    %98 = vector.shape_cast %97 : vector<1x512x128xbf16> to vector<512x128xbf16>
    %cst_31 = arith.constant dense<0.000000e+00> : vector<8x128xf32>
    %99 = tpu.matmul %96, %98, %cst_31 {dimension_numbers = #tpu.dot_dimension_numbers<[1], [0], [0], [1], [0, 0, 1, 1], [], []>} : vector<8x512xbf16>, vector<512x128xbf16>, vector<8x128xf32> -> vector<8x128xf32>
    %c0_32 = arith.constant 0 : index
    %c0_33 = arith.constant 0 : index
    %c0_34 = arith.constant 0 : index
    %100 = vector.load %arg8[%c0_32, %c0_33, %c0_34] : memref<2x1x128xf32, #tpu.memory_space<vmem>>, vector<1x1x128xf32>
    %101 = vector.shape_cast %100 : vector<1x1x128xf32> to vector<1x128xf32>
    %102 = vector.broadcast %101 : vector<1x128xf32> to vector<8x128xf32>
    %103 = arith.addf %99, %102 : vector<8x128xf32>
    %104 = arith.addf %1, %103 : vector<8x128xf32>
    %c0_35 = arith.constant 0 : index
    %c0_36 = arith.constant 0 : index
    %c0_37 = arith.constant 0 : index
    %105 = vector.load %arg9[%c0_35, %c0_36, %c0_37] : memref<2x1x128xf32, #tpu.memory_space<vmem>>, vector<1x1x128xf32>
    %106 = vector.shape_cast %105 : vector<1x1x128xf32> to vector<1x128xf32>
    %c0_38 = arith.constant 0 : index
    %c0_39 = arith.constant 0 : index
    %c0_40 = arith.constant 0 : index
    %107 = vector.load %arg10[%c0_38, %c0_39, %c0_40] : memref<2x1x128xf32, #tpu.memory_space<vmem>>, vector<1x1x128xf32>
    %108 = vector.shape_cast %107 : vector<1x1x128xf32> to vector<1x128xf32>
    %cst_41 = arith.constant dense<0.000000e+00> : vector<8xf32>
    %109 = vector.multi_reduction <add>, %104, %cst_41 [1] : vector<8x128xf32> to vector<8xf32>
    %110 = vector.shape_cast %109 : vector<8xf32> to vector<8x1xf32>
    %cst_42 = arith.constant 3.125000e-02 : f32
    %111 = vector.broadcast %cst_42 : f32 to vector<8x1xf32>
    %112 = arith.mulf %110, %111 : vector<8x1xf32>
    %113 = arith.mulf %104, %104 : vector<8x128xf32>
    %cst_43 = arith.constant dense<0.000000e+00> : vector<8xf32>
    %114 = vector.multi_reduction <add>, %113, %cst_43 [1] : vector<8x128xf32> to vector<8xf32>
    %115 = vector.shape_cast %114 : vector<8xf32> to vector<8x1xf32>
    %cst_44 = arith.constant 3.125000e-02 : f32
    %116 = vector.broadcast %cst_44 : f32 to vector<8x1xf32>
    %117 = arith.mulf %115, %116 : vector<8x1xf32>
    %118 = arith.mulf %112, %112 : vector<8x1xf32>
    %119 = arith.subf %117, %118 : vector<8x1xf32>
    %cst_45 = arith.constant 0.000000e+00 : f32
    %120 = vector.broadcast %cst_45 : f32 to vector<8x1xf32>
    %121 = arith.maximumf %119, %120 : vector<8x1xf32>
    %122 = vector.broadcast %112 : vector<8x1xf32> to vector<8x128xf32>
    %123 = arith.subf %104, %122 : vector<8x128xf32>
    %cst_46 = arith.constant 9.99999997E-7 : f32
    %124 = vector.broadcast %cst_46 : f32 to vector<8x1xf32>
    %125 = arith.addf %121, %124 : vector<8x1xf32>
    %126 = math.rsqrt %125 : vector<8x1xf32>
    %127 = vector.broadcast %126 : vector<8x1xf32> to vector<8x128xf32>
    %128 = arith.mulf %123, %127 : vector<8x128xf32>
    %129 = vector.broadcast %106 : vector<1x128xf32> to vector<8x128xf32>
    %130 = arith.mulf %128, %129 : vector<8x128xf32>
    %131 = vector.broadcast %108 : vector<1x128xf32> to vector<8x128xf32>
    %132 = arith.addf %130, %131 : vector<8x128xf32>
    %133 = arith.truncf %132 : vector<8x128xf32> to vector<8x128xbf16>
    %c0_47 = arith.constant 0 : index
    %c0_48 = arith.constant 0 : index
    %c0_49 = arith.constant 0 : index
    %134 = vector.load %arg11[%c0_47, %c0_48, %c0_49] : memref<2x128x128xbf16, #tpu.memory_space<vmem>>, vector<1x128x128xbf16>
    %135 = vector.shape_cast %134 : vector<1x128x128xbf16> to vector<128x128xbf16>
    %cst_50 = arith.constant dense<0.000000e+00> : vector<8x128xf32>
    %136 = tpu.matmul %133, %135, %cst_50 {dimension_numbers = #tpu.dot_dimension_numbers<[1], [0], [0], [1], [0, 0, 1, 1], [], []>} : vector<8x128xbf16>, vector<128x128xbf16>, vector<8x128xf32> -> vector<8x128xf32>
    %c0_51 = arith.constant 0 : index
    %c0_52 = arith.constant 0 : index
    %c0_53 = arith.constant 0 : index
    %137 = vector.load %arg12[%c0_51, %c0_52, %c0_53] : memref<2x1x128xf32, #tpu.memory_space<vmem>>, vector<1x1x128xf32>
    %138 = vector.shape_cast %137 : vector<1x1x128xf32> to vector<1x128xf32>
    %139 = vector.broadcast %138 : vector<1x128xf32> to vector<8x128xf32>
    %140 = arith.addf %136, %139 : vector<8x128xf32>
    %cst_54 = arith.constant 0.000000e+00 : f32
    %141 = vector.broadcast %cst_54 : f32 to vector<8x128xf32>
    %142 = arith.maximumf %140, %141 : vector<8x128xf32>
    %143 = arith.truncf %142 : vector<8x128xf32> to vector<8x128xbf16>
    %c0_55 = arith.constant 0 : index
    %c0_56 = arith.constant 0 : index
    %c0_57 = arith.constant 0 : index
    %144 = vector.load %arg13[%c0_55, %c0_56, %c0_57] : memref<2x128x128xbf16, #tpu.memory_space<vmem>>, vector<1x128x128xbf16>
    %145 = vector.shape_cast %144 : vector<1x128x128xbf16> to vector<128x128xbf16>
    %cst_58 = arith.constant dense<0.000000e+00> : vector<8x128xf32>
    %146 = tpu.matmul %143, %145, %cst_58 {dimension_numbers = #tpu.dot_dimension_numbers<[1], [0], [0], [1], [0, 0, 1, 1], [], []>} : vector<8x128xbf16>, vector<128x128xbf16>, vector<8x128xf32> -> vector<8x128xf32>
    %c0_59 = arith.constant 0 : index
    %c0_60 = arith.constant 0 : index
    %c0_61 = arith.constant 0 : index
    %147 = vector.load %arg14[%c0_59, %c0_60, %c0_61] : memref<2x1x128xf32, #tpu.memory_space<vmem>>, vector<1x1x128xf32>
    %148 = vector.shape_cast %147 : vector<1x1x128xf32> to vector<1x128xf32>
    %149 = vector.broadcast %148 : vector<1x128xf32> to vector<8x128xf32>
    %150 = arith.addf %146, %149 : vector<8x128xf32>
    %151 = arith.addf %104, %150 : vector<8x128xf32>
    %c1 = arith.constant 1 : index
    %c0_62 = arith.constant 0 : index
    %c0_63 = arith.constant 0 : index
    %152 = vector.load %arg3[%c1, %c0_62, %c0_63] : memref<2x1x128xf32, #tpu.memory_space<vmem>>, vector<1x1x128xf32>
    %153 = vector.shape_cast %152 : vector<1x1x128xf32> to vector<1x128xf32>
    %c1_64 = arith.constant 1 : index
    %c0_65 = arith.constant 0 : index
    %c0_66 = arith.constant 0 : index
    %154 = vector.load %arg4[%c1_64, %c0_65, %c0_66] : memref<2x1x128xf32, #tpu.memory_space<vmem>>, vector<1x1x128xf32>
    %155 = vector.shape_cast %154 : vector<1x1x128xf32> to vector<1x128xf32>
    %cst_67 = arith.constant dense<0.000000e+00> : vector<8xf32>
    %156 = vector.multi_reduction <add>, %151, %cst_67 [1] : vector<8x128xf32> to vector<8xf32>
    %157 = vector.shape_cast %156 : vector<8xf32> to vector<8x1xf32>
    %cst_68 = arith.constant 3.125000e-02 : f32
    %158 = vector.broadcast %cst_68 : f32 to vector<8x1xf32>
    %159 = arith.mulf %157, %158 : vector<8x1xf32>
    %160 = arith.mulf %151, %151 : vector<8x128xf32>
    %cst_69 = arith.constant dense<0.000000e+00> : vector<8xf32>
    %161 = vector.multi_reduction <add>, %160, %cst_69 [1] : vector<8x128xf32> to vector<8xf32>
    %162 = vector.shape_cast %161 : vector<8xf32> to vector<8x1xf32>
    %cst_70 = arith.constant 3.125000e-02 : f32
    %163 = vector.broadcast %cst_70 : f32 to vector<8x1xf32>
    %164 = arith.mulf %162, %163 : vector<8x1xf32>
    %165 = arith.mulf %159, %159 : vector<8x1xf32>
    %166 = arith.subf %164, %165 : vector<8x1xf32>
    %cst_71 = arith.constant 0.000000e+00 : f32
    %167 = vector.broadcast %cst_71 : f32 to vector<8x1xf32>
    %168 = arith.maximumf %166, %167 : vector<8x1xf32>
    %169 = vector.broadcast %159 : vector<8x1xf32> to vector<8x128xf32>
    %170 = arith.subf %151, %169 : vector<8x128xf32>
    %cst_72 = arith.constant 9.99999997E-7 : f32
    %171 = vector.broadcast %cst_72 : f32 to vector<8x1xf32>
    %172 = arith.addf %168, %171 : vector<8x1xf32>
    %173 = math.rsqrt %172 : vector<8x1xf32>
    %174 = vector.broadcast %173 : vector<8x1xf32> to vector<8x128xf32>
    %175 = arith.mulf %170, %174 : vector<8x128xf32>
    %176 = vector.broadcast %153 : vector<1x128xf32> to vector<8x128xf32>
    %177 = arith.mulf %175, %176 : vector<8x128xf32>
    %178 = vector.broadcast %155 : vector<1x128xf32> to vector<8x128xf32>
    %179 = arith.addf %177, %178 : vector<8x128xf32>
    %180 = arith.truncf %179 : vector<8x128xf32> to vector<8x128xbf16>
    %c1_73 = arith.constant 1 : index
    %c0_74 = arith.constant 0 : index
    %c0_75 = arith.constant 0 : index
    %181 = vector.load %arg5[%c1_73, %c0_74, %c0_75] : memref<2x128x1536xbf16, #tpu.memory_space<vmem>>, vector<1x128x1536xbf16>
    %182 = vector.shape_cast %181 : vector<1x128x1536xbf16> to vector<128x1536xbf16>
    %cst_76 = arith.constant dense<0.000000e+00> : vector<8x1536xf32>
    %183 = tpu.matmul %180, %182, %cst_76 {dimension_numbers = #tpu.dot_dimension_numbers<[1], [0], [0], [1], [0, 0, 1, 1], [], []>} : vector<8x128xbf16>, vector<128x1536xbf16>, vector<8x1536xf32> -> vector<8x1536xf32>
    %c1_77 = arith.constant 1 : index
    %c0_78 = arith.constant 0 : index
    %c0_79 = arith.constant 0 : index
    %184 = vector.load %arg6[%c1_77, %c0_78, %c0_79] : memref<2x1x1536xf32, #tpu.memory_space<vmem>>, vector<1x1x1536xf32>
    %185 = vector.shape_cast %184 : vector<1x1x1536xf32> to vector<1x1536xf32>
    %186 = vector.broadcast %185 : vector<1x1536xf32> to vector<8x1536xf32>
    %187 = arith.addf %183, %186 : vector<8x1536xf32>
    %188 = vector.extract_strided_slice %187 {offsets = [0, 0], sizes = [8, 512], strides = [1, 1]} : vector<8x1536xf32> to vector<8x512xf32>
    %189 = vector.extract_strided_slice %188 {offsets = [0, 0], sizes = [8, 128], strides = [1, 1]} : vector<8x512xf32> to vector<8x128xf32>
    %190 = vector.extract_strided_slice %188 {offsets = [0, 128], sizes = [8, 128], strides = [1, 1]} : vector<8x512xf32> to vector<8x128xf32>
    %191 = vector.extract_strided_slice %188 {offsets = [0, 256], sizes = [8, 128], strides = [1, 1]} : vector<8x512xf32> to vector<8x128xf32>
    %192 = vector.extract_strided_slice %188 {offsets = [0, 384], sizes = [8, 128], strides = [1, 1]} : vector<8x512xf32> to vector<8x128xf32>
    %193 = vector.shape_cast %189 : vector<8x128xf32> to vector<1x8x128xf32>
    %194 = vector.shape_cast %190 : vector<8x128xf32> to vector<1x8x128xf32>
    %195 = vector.shape_cast %191 : vector<8x128xf32> to vector<1x8x128xf32>
    %196 = vector.shape_cast %192 : vector<8x128xf32> to vector<1x8x128xf32>
    %197 = tpu.concatenate %193, %194, %195, %196 in 0 : vector<1x8x128xf32>, vector<1x8x128xf32>, vector<1x8x128xf32>, vector<1x8x128xf32> -> vector<4x8x128xf32>
    %198 = vector.extract_strided_slice %187 {offsets = [0, 512], sizes = [8, 512], strides = [1, 1]} : vector<8x1536xf32> to vector<8x512xf32>
    %199 = vector.extract_strided_slice %198 {offsets = [0, 0], sizes = [8, 128], strides = [1, 1]} : vector<8x512xf32> to vector<8x128xf32>
    %200 = vector.extract_strided_slice %198 {offsets = [0, 128], sizes = [8, 128], strides = [1, 1]} : vector<8x512xf32> to vector<8x128xf32>
    %201 = vector.extract_strided_slice %198 {offsets = [0, 256], sizes = [8, 128], strides = [1, 1]} : vector<8x512xf32> to vector<8x128xf32>
    %202 = vector.extract_strided_slice %198 {offsets = [0, 384], sizes = [8, 128], strides = [1, 1]} : vector<8x512xf32> to vector<8x128xf32>
    %203 = vector.shape_cast %199 : vector<8x128xf32> to vector<1x8x128xf32>
    %204 = vector.shape_cast %200 : vector<8x128xf32> to vector<1x8x128xf32>
    %205 = vector.shape_cast %201 : vector<8x128xf32> to vector<1x8x128xf32>
    %206 = vector.shape_cast %202 : vector<8x128xf32> to vector<1x8x128xf32>
    %207 = tpu.concatenate %203, %204, %205, %206 in 0 : vector<1x8x128xf32>, vector<1x8x128xf32>, vector<1x8x128xf32>, vector<1x8x128xf32> -> vector<4x8x128xf32>
    %208 = vector.extract_strided_slice %187 {offsets = [0, 1024], sizes = [8, 512], strides = [1, 1]} : vector<8x1536xf32> to vector<8x512xf32>
    %209 = vector.extract_strided_slice %208 {offsets = [0, 0], sizes = [8, 128], strides = [1, 1]} : vector<8x512xf32> to vector<8x128xf32>
    %210 = vector.extract_strided_slice %208 {offsets = [0, 128], sizes = [8, 128], strides = [1, 1]} : vector<8x512xf32> to vector<8x128xf32>
    %211 = vector.extract_strided_slice %208 {offsets = [0, 256], sizes = [8, 128], strides = [1, 1]} : vector<8x512xf32> to vector<8x128xf32>
    %212 = vector.extract_strided_slice %208 {offsets = [0, 384], sizes = [8, 128], strides = [1, 1]} : vector<8x512xf32> to vector<8x128xf32>
    %213 = vector.shape_cast %209 : vector<8x128xf32> to vector<1x8x128xf32>
    %214 = vector.shape_cast %210 : vector<8x128xf32> to vector<1x8x128xf32>
    %215 = vector.shape_cast %211 : vector<8x128xf32> to vector<1x8x128xf32>
    %216 = vector.shape_cast %212 : vector<8x128xf32> to vector<1x8x128xf32>
    %217 = tpu.concatenate %213, %214, %215, %216 in 0 : vector<1x8x128xf32>, vector<1x8x128xf32>, vector<1x8x128xf32>, vector<1x8x128xf32> -> vector<4x8x128xf32>
    %218 = arith.truncf %197 : vector<4x8x128xf32> to vector<4x8x128xbf16>
    %219 = arith.truncf %207 : vector<4x8x128xf32> to vector<4x8x128xbf16>
    "tpu.trace_start"() <{level = 10 : i32, message = "gqd,gkd->gqk"}> : () -> ()
    %cst_80 = arith.constant dense<0.000000e+00> : vector<4x8x8xf32>
    %220 = tpu.matmul %218, %219, %cst_80 {dimension_numbers = #tpu.dot_dimension_numbers<[2], [2], [1], [1], [0, 0, 0, 1, 1, 1], [0], [0]>} : vector<4x8x128xbf16>, vector<4x8x128xbf16>, vector<4x8x8xf32> -> vector<4x8x8xf32>
    "tpu.trace_stop"() : () -> ()
    %221 = arith.addf %220, %3 : vector<4x8x8xf32>
    %cst_81 = arith.constant dense<0xFF800000> : vector<4x8xf32>
    %222 = vector.multi_reduction <maximumf>, %221, %cst_81 [2] : vector<4x8x8xf32> to vector<4x8xf32>
    %223 = vector.shape_cast %222 : vector<4x8xf32> to vector<4x8x1xf32>
    %224 = vector.broadcast %223 : vector<4x8x1xf32> to vector<4x8x8xf32>
    %225 = arith.subf %221, %224 : vector<4x8x8xf32>
    %226 = math.exp %225 : vector<4x8x8xf32>
    %cst_82 = arith.constant dense<0.000000e+00> : vector<4x8xf32>
    %227 = vector.multi_reduction <add>, %226, %cst_82 [2] : vector<4x8x8xf32> to vector<4x8xf32>
    %228 = vector.shape_cast %227 : vector<4x8xf32> to vector<4x8x1xf32>
    %229 = tpu.reciprocal %228 {approx = true} : vector<4x8x1xf32> -> vector<4x8x1xf32>
    %230 = vector.broadcast %229 : vector<4x8x1xf32> to vector<4x8x8xf32>
    %231 = arith.mulf %226, %230 : vector<4x8x8xf32>
    %232 = arith.truncf %231 : vector<4x8x8xf32> to vector<4x8x8xbf16>
    %233 = arith.truncf %217 : vector<4x8x128xf32> to vector<4x8x128xbf16>
    "tpu.trace_start"() <{level = 10 : i32, message = "gqk,gkd->gqd"}> : () -> ()
    %cst_83 = arith.constant dense<0.000000e+00> : vector<4x8x128xf32>
    %234 = tpu.matmul %232, %233, %cst_83 {dimension_numbers = #tpu.dot_dimension_numbers<[2], [1], [1], [2], [0, 0, 0, 1, 1, 2], [0], [0]>} : vector<4x8x8xbf16>, vector<4x8x128xbf16>, vector<4x8x128xf32> -> vector<4x8x128xf32>
    "tpu.trace_stop"() : () -> ()
    %235 = vector.extract_strided_slice %234 {offsets = [0, 0, 0], sizes = [1, 8, 128], strides = [1, 1, 1]} : vector<4x8x128xf32> to vector<1x8x128xf32>
    %236 = vector.shape_cast %235 : vector<1x8x128xf32> to vector<8x128xf32>
    %237 = vector.extract_strided_slice %234 {offsets = [1, 0, 0], sizes = [1, 8, 128], strides = [1, 1, 1]} : vector<4x8x128xf32> to vector<1x8x128xf32>
    %238 = vector.shape_cast %237 : vector<1x8x128xf32> to vector<8x128xf32>
    %239 = vector.extract_strided_slice %234 {offsets = [2, 0, 0], sizes = [1, 8, 128], strides = [1, 1, 1]} : vector<4x8x128xf32> to vector<1x8x128xf32>
    %240 = vector.shape_cast %239 : vector<1x8x128xf32> to vector<8x128xf32>
    %241 = vector.extract_strided_slice %234 {offsets = [3, 0, 0], sizes = [1, 8, 128], strides = [1, 1, 1]} : vector<4x8x128xf32> to vector<1x8x128xf32>
    %242 = vector.shape_cast %241 : vector<1x8x128xf32> to vector<8x128xf32>
    %243 = tpu.concatenate %236, %238, %240, %242 in 1 : vector<8x128xf32>, vector<8x128xf32>, vector<8x128xf32>, vector<8x128xf32> -> vector<8x512xf32>
    %244 = arith.truncf %243 : vector<8x512xf32> to vector<8x512xbf16>
    %c1_84 = arith.constant 1 : index
    %c0_85 = arith.constant 0 : index
    %c0_86 = arith.constant 0 : index
    %245 = vector.load %arg7[%c1_84, %c0_85, %c0_86] : memref<2x512x128xbf16, #tpu.memory_space<vmem>>, vector<1x512x128xbf16>
    %246 = vector.shape_cast %245 : vector<1x512x128xbf16> to vector<512x128xbf16>
    %cst_87 = arith.constant dense<0.000000e+00> : vector<8x128xf32>
    %247 = tpu.matmul %244, %246, %cst_87 {dimension_numbers = #tpu.dot_dimension_numbers<[1], [0], [0], [1], [0, 0, 1, 1], [], []>} : vector<8x512xbf16>, vector<512x128xbf16>, vector<8x128xf32> -> vector<8x128xf32>
    %c1_88 = arith.constant 1 : index
    %c0_89 = arith.constant 0 : index
    %c0_90 = arith.constant 0 : index
    %248 = vector.load %arg8[%c1_88, %c0_89, %c0_90] : memref<2x1x128xf32, #tpu.memory_space<vmem>>, vector<1x1x128xf32>
    %249 = vector.shape_cast %248 : vector<1x1x128xf32> to vector<1x128xf32>
    %250 = vector.broadcast %249 : vector<1x128xf32> to vector<8x128xf32>
    %251 = arith.addf %247, %250 : vector<8x128xf32>
    %252 = arith.addf %151, %251 : vector<8x128xf32>
    %c1_91 = arith.constant 1 : index
    %c0_92 = arith.constant 0 : index
    %c0_93 = arith.constant 0 : index
    %253 = vector.load %arg9[%c1_91, %c0_92, %c0_93] : memref<2x1x128xf32, #tpu.memory_space<vmem>>, vector<1x1x128xf32>
    %254 = vector.shape_cast %253 : vector<1x1x128xf32> to vector<1x128xf32>
    %c1_94 = arith.constant 1 : index
    %c0_95 = arith.constant 0 : index
    %c0_96 = arith.constant 0 : index
    %255 = vector.load %arg10[%c1_94, %c0_95, %c0_96] : memref<2x1x128xf32, #tpu.memory_space<vmem>>, vector<1x1x128xf32>
    %256 = vector.shape_cast %255 : vector<1x1x128xf32> to vector<1x128xf32>
    %cst_97 = arith.constant dense<0.000000e+00> : vector<8xf32>
    %257 = vector.multi_reduction <add>, %252, %cst_97 [1] : vector<8x128xf32> to vector<8xf32>
    %258 = vector.shape_cast %257 : vector<8xf32> to vector<8x1xf32>
    %cst_98 = arith.constant 3.125000e-02 : f32
    %259 = vector.broadcast %cst_98 : f32 to vector<8x1xf32>
    %260 = arith.mulf %258, %259 : vector<8x1xf32>
    %261 = arith.mulf %252, %252 : vector<8x128xf32>
    %cst_99 = arith.constant dense<0.000000e+00> : vector<8xf32>
    %262 = vector.multi_reduction <add>, %261, %cst_99 [1] : vector<8x128xf32> to vector<8xf32>
    %263 = vector.shape_cast %262 : vector<8xf32> to vector<8x1xf32>
    %cst_100 = arith.constant 3.125000e-02 : f32
    %264 = vector.broadcast %cst_100 : f32 to vector<8x1xf32>
    %265 = arith.mulf %263, %264 : vector<8x1xf32>
    %266 = arith.mulf %260, %260 : vector<8x1xf32>
    %267 = arith.subf %265, %266 : vector<8x1xf32>
    %cst_101 = arith.constant 0.000000e+00 : f32
    %268 = vector.broadcast %cst_101 : f32 to vector<8x1xf32>
    %269 = arith.maximumf %267, %268 : vector<8x1xf32>
    %270 = vector.broadcast %260 : vector<8x1xf32> to vector<8x128xf32>
    %271 = arith.subf %252, %270 : vector<8x128xf32>
    %cst_102 = arith.constant 9.99999997E-7 : f32
    %272 = vector.broadcast %cst_102 : f32 to vector<8x1xf32>
    %273 = arith.addf %269, %272 : vector<8x1xf32>
    %274 = math.rsqrt %273 : vector<8x1xf32>
    %275 = vector.broadcast %274 : vector<8x1xf32> to vector<8x128xf32>
    %276 = arith.mulf %271, %275 : vector<8x128xf32>
    %277 = vector.broadcast %254 : vector<1x128xf32> to vector<8x128xf32>
    %278 = arith.mulf %276, %277 : vector<8x128xf32>
    %279 = vector.broadcast %256 : vector<1x128xf32> to vector<8x128xf32>
    %280 = arith.addf %278, %279 : vector<8x128xf32>
    %281 = arith.truncf %280 : vector<8x128xf32> to vector<8x128xbf16>
    %c1_103 = arith.constant 1 : index
    %c0_104 = arith.constant 0 : index
    %c0_105 = arith.constant 0 : index
    %282 = vector.load %arg11[%c1_103, %c0_104, %c0_105] : memref<2x128x128xbf16, #tpu.memory_space<vmem>>, vector<1x128x128xbf16>
    %283 = vector.shape_cast %282 : vector<1x128x128xbf16> to vector<128x128xbf16>
    %cst_106 = arith.constant dense<0.000000e+00> : vector<8x128xf32>
    %284 = tpu.matmul %281, %283, %cst_106 {dimension_numbers = #tpu.dot_dimension_numbers<[1], [0], [0], [1], [0, 0, 1, 1], [], []>} : vector<8x128xbf16>, vector<128x128xbf16>, vector<8x128xf32> -> vector<8x128xf32>
    %c1_107 = arith.constant 1 : index
    %c0_108 = arith.constant 0 : index
    %c0_109 = arith.constant 0 : index
    %285 = vector.load %arg12[%c1_107, %c0_108, %c0_109] : memref<2x1x128xf32, #tpu.memory_space<vmem>>, vector<1x1x128xf32>
    %286 = vector.shape_cast %285 : vector<1x1x128xf32> to vector<1x128xf32>
    %287 = vector.broadcast %286 : vector<1x128xf32> to vector<8x128xf32>
    %288 = arith.addf %284, %287 : vector<8x128xf32>
    %cst_110 = arith.constant 0.000000e+00 : f32
    %289 = vector.broadcast %cst_110 : f32 to vector<8x128xf32>
    %290 = arith.maximumf %288, %289 : vector<8x128xf32>
    %291 = arith.truncf %290 : vector<8x128xf32> to vector<8x128xbf16>
    %c1_111 = arith.constant 1 : index
    %c0_112 = arith.constant 0 : index
    %c0_113 = arith.constant 0 : index
    %292 = vector.load %arg13[%c1_111, %c0_112, %c0_113] : memref<2x128x128xbf16, #tpu.memory_space<vmem>>, vector<1x128x128xbf16>
    %293 = vector.shape_cast %292 : vector<1x128x128xbf16> to vector<128x128xbf16>
    %cst_114 = arith.constant dense<0.000000e+00> : vector<8x128xf32>
    %294 = tpu.matmul %291, %293, %cst_114 {dimension_numbers = #tpu.dot_dimension_numbers<[1], [0], [0], [1], [0, 0, 1, 1], [], []>} : vector<8x128xbf16>, vector<128x128xbf16>, vector<8x128xf32> -> vector<8x128xf32>
    %c1_115 = arith.constant 1 : index
    %c0_116 = arith.constant 0 : index
    %c0_117 = arith.constant 0 : index
    %295 = vector.load %arg14[%c1_115, %c0_116, %c0_117] : memref<2x1x128xf32, #tpu.memory_space<vmem>>, vector<1x1x128xf32>
    %296 = vector.shape_cast %295 : vector<1x1x128xf32> to vector<1x128xf32>
    %297 = vector.broadcast %296 : vector<1x128xf32> to vector<8x128xf32>
    %298 = arith.addf %294, %297 : vector<8x128xf32>
    %299 = arith.addf %252, %298 : vector<8x128xf32>
    %c0_118 = arith.constant 0 : index
    %c0_119 = arith.constant 0 : index
    %300 = vector.load %arg15[%c0_118, %c0_119] : memref<1x128xf32, #tpu.memory_space<vmem>>, vector<1x128xf32>
    %c0_120 = arith.constant 0 : index
    %c0_121 = arith.constant 0 : index
    %301 = vector.load %arg16[%c0_120, %c0_121] : memref<1x128xf32, #tpu.memory_space<vmem>>, vector<1x128xf32>
    %cst_122 = arith.constant dense<0.000000e+00> : vector<8xf32>
    %302 = vector.multi_reduction <add>, %299, %cst_122 [1] : vector<8x128xf32> to vector<8xf32>
    %303 = vector.shape_cast %302 : vector<8xf32> to vector<8x1xf32>
    %cst_123 = arith.constant 3.125000e-02 : f32
    %304 = vector.broadcast %cst_123 : f32 to vector<8x1xf32>
    %305 = arith.mulf %303, %304 : vector<8x1xf32>
    %306 = arith.mulf %299, %299 : vector<8x128xf32>
    %cst_124 = arith.constant dense<0.000000e+00> : vector<8xf32>
    %307 = vector.multi_reduction <add>, %306, %cst_124 [1] : vector<8x128xf32> to vector<8xf32>
    %308 = vector.shape_cast %307 : vector<8xf32> to vector<8x1xf32>
    %cst_125 = arith.constant 3.125000e-02 : f32
    %309 = vector.broadcast %cst_125 : f32 to vector<8x1xf32>
    %310 = arith.mulf %308, %309 : vector<8x1xf32>
    %311 = arith.mulf %305, %305 : vector<8x1xf32>
    %312 = arith.subf %310, %311 : vector<8x1xf32>
    %cst_126 = arith.constant 0.000000e+00 : f32
    %313 = vector.broadcast %cst_126 : f32 to vector<8x1xf32>
    %314 = arith.maximumf %312, %313 : vector<8x1xf32>
    %315 = vector.broadcast %305 : vector<8x1xf32> to vector<8x128xf32>
    %316 = arith.subf %299, %315 : vector<8x128xf32>
    %cst_127 = arith.constant 9.99999997E-7 : f32
    %317 = vector.broadcast %cst_127 : f32 to vector<8x1xf32>
    %318 = arith.addf %314, %317 : vector<8x1xf32>
    %319 = math.rsqrt %318 : vector<8x1xf32>
    %320 = vector.broadcast %319 : vector<8x1xf32> to vector<8x128xf32>
    %321 = arith.mulf %316, %320 : vector<8x128xf32>
    %322 = vector.broadcast %300 : vector<1x128xf32> to vector<8x128xf32>
    %323 = arith.mulf %321, %322 : vector<8x128xf32>
    %324 = vector.broadcast %301 : vector<1x128xf32> to vector<8x128xf32>
    %325 = arith.addf %323, %324 : vector<8x128xf32>
    %326 = arith.truncf %325 : vector<8x128xf32> to vector<8x128xbf16>
    %c0_128 = arith.constant 0 : index
    %c0_129 = arith.constant 0 : index
    %327 = vector.load %arg17[%c0_128, %c0_129] : memref<128x128xbf16, #tpu.memory_space<vmem>>, vector<128x128xbf16>
    %cst_130 = arith.constant dense<0.000000e+00> : vector<8x128xf32>
    %328 = tpu.matmul %326, %327, %cst_130 {dimension_numbers = #tpu.dot_dimension_numbers<[1], [0], [0], [1], [0, 0, 1, 1], [], []>} : vector<8x128xbf16>, vector<128x128xbf16>, vector<8x128xf32> -> vector<8x128xf32>
    %c0_131 = arith.constant 0 : index
    %c0_132 = arith.constant 0 : index
    %329 = vector.load %arg18[%c0_131, %c0_132] : memref<1x128xf32, #tpu.memory_space<vmem>>, vector<1x128xf32>
    %330 = vector.broadcast %329 : vector<1x128xf32> to vector<8x128xf32>
    %331 = arith.addf %328, %330 : vector<8x128xf32>
    %cst_133 = arith.constant dense<0xFF800000> : vector<8xf32>
    %332 = vector.multi_reduction <maximumf>, %331, %cst_133 [1] : vector<8x128xf32> to vector<8xf32>
    %333 = vector.shape_cast %332 : vector<8xf32> to vector<8x1xf32>
    %334 = vector.broadcast %333 : vector<8x1xf32> to vector<8x128xf32>
    %335 = arith.subf %331, %334 : vector<8x128xf32>
    %336 = math.exp %335 : vector<8x128xf32>
    %cst_134 = arith.constant dense<0.000000e+00> : vector<8xf32>
    %337 = vector.multi_reduction <add>, %336, %cst_134 [1] : vector<8x128xf32> to vector<8xf32>
    %338 = vector.shape_cast %337 : vector<8xf32> to vector<8x1xf32>
    %339 = vector.broadcast %338 : vector<8x1xf32> to vector<8x128xf32>
    %340 = arith.divf %336, %339 : vector<8x128xf32>
    %341 = vector.shape_cast %340 : vector<8x128xf32> to vector<1x8x128xf32>
    %c0_135 = arith.constant 0 : index
    %c0_136 = arith.constant 0 : index
    %c0_137 = arith.constant 0 : index
    %342 = vector.load %arg19[%c0_135, %c0_136, %c0_137] : memref<1x8x128xf32, #tpu.memory_space<vmem>>, vector<1x8x128xf32>
    tpu.vector_store %arg19[%c0_135, %c0_136, %c0_137], %341 {strides = array<i32>} : memref<1x8x128xf32, #tpu.memory_space<vmem>>, vector<1x8x128xf32>,
    return
  }
  func.func @transform_0(%arg0: i32) -> (i32, i32, i32) {
    %c0_i32 = arith.constant 0 : i32
    %c0_i32_0 = arith.constant 0 : i32
    %c0_i32_1 = arith.constant 0 : i32
    return %arg0, %c0_i32, %c0_i32_0 : i32, i32, i32
  }
  func.func @transform_1(%arg0: i32) -> (i32, i32, i32, i32) {
    %c0_i32 = arith.constant 0 : i32
    %c0_i32_0 = arith.constant 0 : i32
    %c0_i32_1 = arith.constant 0 : i32
    %c0_i32_2 = arith.constant 0 : i32
    return %arg0, %c0_i32, %c0_i32_0, %c0_i32_1 : i32, i32, i32, i32
  }
  func.func @transform_2(%arg0: i32) -> (i32, i32, i32) {
    %c0_i32 = arith.constant 0 : i32
    %c0_i32_0 = arith.constant 0 : i32
    %c0_i32_1 = arith.constant 0 : i32
    %c0_i32_2 = arith.constant 0 : i32
    return %c0_i32, %c0_i32_0, %c0_i32_1 : i32, i32, i32
  }
  func.func @transform_3(%arg0: i32) -> (i32, i32, i32) {
    %c0_i32 = arith.constant 0 : i32
    %c0_i32_0 = arith.constant 0 : i32
    %c0_i32_1 = arith.constant 0 : i32
    %c0_i32_2 = arith.constant 0 : i32
    return %c0_i32, %c0_i32_0, %c0_i32_1 : i32, i32, i32
  }
  func.func @transform_4(%arg0: i32) -> (i32, i32, i32) {
    %c0_i32 = arith.constant 0 : i32
    %c0_i32_0 = arith.constant 0 : i32
    %c0_i32_1 = arith.constant 0 : i32
    %c0_i32_2 = arith.constant 0 : i32
    return %c0_i32, %c0_i32_0, %c0_i32_1 : i32, i32, i32
  }
  func.func @transform_5(%arg0: i32) -> (i32, i32, i32) {
    %c0_i32 = arith.constant 0 : i32
    %c0_i32_0 = arith.constant 0 : i32
    %c0_i32_1 = arith.constant 0 : i32
    %c0_i32_2 = arith.constant 0 : i32
    return %c0_i32, %c0_i32_0, %c0_i32_1 : i32, i32, i32
  }
  func.func @transform_6(%arg0: i32) -> (i32, i32, i32) {
    %c0_i32 = arith.constant 0 : i32
    %c0_i32_0 = arith.constant 0 : i32
    %c0_i32_1 = arith.constant 0 : i32
    %c0_i32_2 = arith.constant 0 : i32
    return %c0_i32, %c0_i32_0, %c0_i32_1 : i32, i32, i32
  }
  func.func @transform_7(%arg0: i32) -> (i32, i32, i32) {
    %c0_i32 = arith.constant 0 : i32
    %c0_i32_0 = arith.constant 0 : i32
    %c0_i32_1 = arith.constant 0 : i32
    %c0_i32_2 = arith.constant 0 : i32
    return %c0_i32, %c0_i32_0, %c0_i32_1 : i32, i32, i32
  }
  func.func @transform_8(%arg0: i32) -> (i32, i32, i32) {
    %c0_i32 = arith.constant 0 : i32
    %c0_i32_0 = arith.constant 0 : i32
    %c0_i32_1 = arith.constant 0 : i32
    %c0_i32_2 = arith.constant 0 : i32
    return %c0_i32, %c0_i32_0, %c0_i32_1 : i32, i32, i32
  }
  func.func @transform_9(%arg0: i32) -> (i32, i32, i32) {
    %c0_i32 = arith.constant 0 : i32
    %c0_i32_0 = arith.constant 0 : i32
    %c0_i32_1 = arith.constant 0 : i32
    %c0_i32_2 = arith.constant 0 : i32
    return %c0_i32, %c0_i32_0, %c0_i32_1 : i32, i32, i32
  }
  func.func @transform_10(%arg0: i32) -> (i32, i32, i32) {
    %c0_i32 = arith.constant 0 : i32
    %c0_i32_0 = arith.constant 0 : i32
    %c0_i32_1 = arith.constant 0 : i32
    %c0_i32_2 = arith.constant 0 : i32
    return %c0_i32, %c0_i32_0, %c0_i32_1 : i32, i32, i32
  }
  func.func @transform_11(%arg0: i32) -> (i32, i32, i32) {
    %c0_i32 = arith.constant 0 : i32
    %c0_i32_0 = arith.constant 0 : i32
    %c0_i32_1 = arith.constant 0 : i32
    %c0_i32_2 = arith.constant 0 : i32
    return %c0_i32, %c0_i32_0, %c0_i32_1 : i32, i32, i32
  }
  func.func @transform_12(%arg0: i32) -> (i32, i32, i32) {
    %c0_i32 = arith.constant 0 : i32
    %c0_i32_0 = arith.constant 0 : i32
    %c0_i32_1 = arith.constant 0 : i32
    %c0_i32_2 = arith.constant 0 : i32
    return %c0_i32, %c0_i32_0, %c0_i32_1 : i32, i32, i32
  }
  func.func @transform_13(%arg0: i32) -> (i32, i32, i32) {
    %c0_i32 = arith.constant 0 : i32
    %c0_i32_0 = arith.constant 0 : i32
    %c0_i32_1 = arith.constant 0 : i32
    %c0_i32_2 = arith.constant 0 : i32
    return %c0_i32, %c0_i32_0, %c0_i32_1 : i32, i32, i32
  }
  func.func @transform_14(%arg0: i32) -> (i32, i32) {
    %c0_i32 = arith.constant 0 : i32
    %c0_i32_0 = arith.constant 0 : i32
    %c0_i32_1 = arith.constant 0 : i32
    return %c0_i32, %c0_i32_0 : i32, i32
  }
  func.func @transform_15(%arg0: i32) -> (i32, i32) {
    %c0_i32 = arith.constant 0 : i32
    %c0_i32_0 = arith.constant 0 : i32
    %c0_i32_1 = arith.constant 0 : i32
    return %c0_i32, %c0_i32_0 : i32, i32
  }
  func.func @transform_16(%arg0: i32) -> (i32, i32) {
    %c0_i32 = arith.constant 0 : i32
    %c0_i32_0 = arith.constant 0 : i32
    %c0_i32_1 = arith.constant 0 : i32
    return %c0_i32, %c0_i32_0 : i32, i32
  }
  func.func @transform_17(%arg0: i32) -> (i32, i32) {
    %c0_i32 = arith.constant 0 : i32
    %c0_i32_0 = arith.constant 0 : i32
    %c0_i32_1 = arith.constant 0 : i32
    return %c0_i32, %c0_i32_0 : i32, i32
  }
  func.func @transform_18(%arg0: i32) -> (i32, i32, i32) {
    %c0_i32 = arith.constant 0 : i32
    %c0_i32_0 = arith.constant 0 : i32
    %c0_i32_1 = arith.constant 0 : i32
    return %arg0, %c0_i32, %c0_i32_0 : i32, i32, i32
  }
}

</mosaic_0001>

<llo_original>
// kernel: tfm_lm_forward.1
$region0: #{tfm_lm_forward.1}
  #allocation0 [shape = 'u32[]', space=smem, size = 0x4, offset = 0x4, fixed_abs, tag = 'smem constant byte address 0x4 - core index']
  #allocation1 [shape = 'u32[144,128]{1,0:T(1,128)}', space=vmem, size = 0x12000, scoped, tag = 'internal scratch']
  %s0 = inlined_call_operand.vmem [shape: f32[2,8,128], index: 0, kind: input, shape index: {}]
  %s1 = inlined_call_operand.vmem [shape: f32[2,4,8,8], index: 1, kind: input, shape index: {}]
  %s2 = inlined_call_operand.hbm [shape: f32[2,1,128], index: 2, kind: input, shape index: {}]
  %s3 = inlined_call_operand.hbm [shape: f32[2,1,128], index: 3, kind: input, shape index: {}]
  %s4 = inlined_call_operand.hbm [shape: bf16[2,128,1536], index: 4, kind: input, shape index: {}]
  %s5 = inlined_call_operand.hbm [shape: f32[2,1,1536], index: 5, kind: input, shape index: {}]
  %s6 = inlined_call_operand.hbm [shape: bf16[2,512,128], index: 6, kind: input, shape index: {}]
  %s7 = inlined_call_operand.hbm [shape: f32[2,1,128], index: 7, kind: input, shape index: {}]
  %s8 = inlined_call_operand.hbm [shape: f32[2,1,128], index: 8, kind: input, shape index: {}]
  %s9 = inlined_call_operand.hbm [shape: f32[2,1,128], index: 9, kind: input, shape index: {}]
  %s10 = inlined_call_operand.vmem [shape: bf16[2,128,128], index: 10, kind: input, shape index: {}]
  %s11 = inlined_call_operand.vmem [shape: f32[2,1,128], index: 11, kind: input, shape index: {}]
  %s12 = inlined_call_operand.vmem [shape: bf16[2,128,128], index: 12, kind: input, shape index: {}]
  %s13 = inlined_call_operand.vmem [shape: f32[2,1,128], index: 13, kind: input, shape index: {}]
  %s14 = inlined_call_operand.vmem [shape: f32[1,128], index: 14, kind: input, shape index: {}]
  %s15 = inlined_call_operand.vmem [shape: f32[1,128], index: 15, kind: input, shape index: {}]
  %s16 = inlined_call_operand.vmem [shape: bf16[128,128], index: 16, kind: input, shape index: {}]
  %s17 = inlined_call_operand.vmem [shape: f32[1,128], index: 17, kind: input, shape index: {}]
  %s18 = inlined_call_operand.hbm [shape: f32[2,8,128], index: 18, kind: output, shape index: {}]
  %s19 = sld [smem:[#allocation0]]
  $region137: #{tfm_lm_forward.1} parent=0
    _
  %s21 = ssub.s32 1, %s19
  %s22 = scalar_select 0, %s21, %s19
  $region1: #{tfm_lm_forward.1} parent=0
    #allocation2 [shape = 'u8[1024]{0}', space=vmem, size = 0x400, scoped, tag = 'input window, operand 2, single buffered']
    #allocation3 [shape = 's32[2]{0}', space=sflag, size = 0x8, scoped, tag = 'scoped memory for tfm_lm_forward.1']
    #allocation4 [shape = 's32[2]{0}', space=sflag, size = 0x8, scoped, tag = 'scoped memory for tfm_lm_forward.1']
    #allocation5 [shape = 'u8[1024]{0}', space=vmem, size = 0x400, scoped, tag = 'input window, operand 3, single buffered']
    #allocation6 [shape = 's32[1]{0}', space=sflag, size = 0x4, scoped, tag = 'scoped memory for tfm_lm_forward.1']
    #allocation7 [shape = 'u8[786432]{0}', space=vmem, size = 0xc0000, scoped, tag = 'input window, operand 4, single buffered']
    #allocation8 [shape = 'u8[12288]{0}', space=vmem, size = 0x3000, scoped, tag = 'input window, operand 5, single buffered']
    #allocation9 [shape = 's32[1]{0}', space=sflag, size = 0x4, scoped, tag = 'scoped memory for tfm_lm_forward.1']
    #allocation10 [shape = 'u8[262144]{0}', space=vmem, size = 0x40000, scoped, tag = 'input window, operand 6, single buffered']
    #allocation11 [shape = 'u8[1024]{0}', space=vmem, size = 0x400, scoped, tag = 'input window, operand 7, single buffered']
    #allocation12 [shape = 's32[1]{0}', space=sflag, size = 0x4, scoped, tag = 'scoped memory for tfm_lm_forward.1']
    #allocation13 [shape = 'u8[1024]{0}', space=vmem, size = 0x400, scoped, tag = 'input window, operand 8, single buffered']
    #allocation14 [shape = 'u8[1024]{0}', space=vmem, size = 0x400, scoped, tag = 'input window, operand 9, single buffered']
    #allocation15 [shape = 's32[1]{0}', space=sflag, size = 0x4, scoped, tag = 'scoped memory for tfm_lm_forward.1']
    #allocation16 [shape = 'u8[8192]{0}', space=vmem, size = 0x2000, scoped, tag = 'output window, operand 0']
    %23 = vsyncpa [#allocation3], 0
    %24 = vsyncpa [#allocation6], 0
    %25 = vsyncpa [#allocation9], 0
    %26 = vsyncpa [#allocation12], 0
    %27 = vsyncpa [#allocation15], 0
    %28 = vsyncpa [#allocation4], 0
    %s29 = scalar_lea.sflag [#allocation4], 1
    %30 = vsyncpa %s29, 0
    loop: start=0, step=1, limit=4
    $region2: #{tfm_lm_forward.1} parent=1 // loop_pre_header
      _
    $region3: #{tfm_lm_forward.1} parent=1 // loop_header
      %s32 = sphi 0, %s36
      %p33 = scmp.ge.s32.totalorder %s32, 4
      %s42 = sphi 0, %s44
      %s45 = sphi 0, %s42
      %s46 = sphi 0, %s45
      %s62 = sphi 0, %s46
      %s68 = sphi 0, %s70
      %s71 = sphi 0, %s68
      %s72 = sphi 0, %s71
      %s88 = sphi 0, %s72
      %s92 = sphi 0, %s92
      %s94 = sphi 0, %s92
      %s95 = sphi 0, %s94
      %s109 = sphi 0, %s95
      %s113 = sphi 0, %s113
      %s115 = sphi 0, %s113
      %s116 = sphi 0, %s115
      %s130 = sphi 0, %s116
      %s134 = sphi 0, %s134
      %s136 = sphi 0, %s134
      %s137 = sphi 0, %s136
      %s151 = sphi 0, %s137
      %s155 = sphi 0, %s155
      %s157 = sphi 0, %s155
      %s158 = sphi 0, %s157
      %s172 = sphi 0, %s158
      %s176 = sphi 0, %s176
      %s178 = sphi 0, %s176
      %s179 = sphi 0, %s178
      %s193 = sphi 0, %s179
      %s197 = sphi 0, %s197
      %s199 = sphi 0, %s197
      %s200 = sphi 0, %s199
      %s214 = sphi 0, %s200
      %s218 = sphi 0, %s218
      %s220 = sphi 0, %s218
      %s221 = sphi 0, %s220
      %s235 = sphi 0, %s221
      %s239 = sphi 0, %s239
      %s241 = sphi 0, %s239
      %s242 = sphi 0, %s241
      %s256 = sphi 0, %s242
      %s260 = sphi 0, %s260
      %s262 = sphi 0, %s260
      %s263 = sphi 0, %s262
      %s277 = sphi 0, %s263
      %s281 = sphi 0, %s281
      %s283 = sphi 0, %s281
      %s284 = sphi 0, %s283
      %s298 = sphi 0, %s284
      %s302 = sphi 0, %s302
      %s304 = sphi 0, %s302
      %s305 = sphi 0, %s304
      %s319 = sphi 0, %s305
      %s323 = sphi 0, %s323
      %s325 = sphi 0, %s323
      %s326 = sphi 0, %s325
      %s340 = sphi 0, %s326
      %s344 = sphi 0, %s344
      %s346 = sphi 0, %s344
      %s347 = sphi 0, %s346
      %s361 = sphi 0, %s347
      %s365 = sphi 0, %s365
      %s367 = sphi 0, %s365
      %s368 = sphi 0, %s367
      %s382 = sphi 0, %s368
      %s386 = sphi 0, %s386
      %s388 = sphi 0, %s386
      %s389 = sphi 0, %s388
      %s403 = sphi 0, %s389
      %s407 = sphi 0, %s407
      %s409 = sphi 0, %s407
      %s410 = sphi 0, %s409
      %s424 = sphi 0, %s410
      %s430 = sphi 0, %s432
      %s433 = sphi 0, %s430
      %s434 = sphi 0, %s433
      %s450 = sphi 0, %s434
    $region4: #{tfm_lm_forward.1} parent=1 // loop_header_branch
      %35 = sbr.rel (%p33) target = $region8
    $region5: #{tfm_lm_forward.1} parent=1 // loop_body
      %s37 = ssub.s32 %s32, 1
      %s38 = ssub.s32 %s32, 2
      %s39 = sadd.s32 %s32, 1
      %s40 = ssub.s32 %s32, %s39
      %p41 = scmp.eq.s32.totalorder %s40, 0
      %s43 = sadd.s32 %s42, 1
      %s44 = scalar_select %p41, %s42, %s43
      %p47 = pneg %p41
      %p48 = scmp.eq.s32.totalorder %s32, 1
      %p49 = por %p47, %p48
      %p50 = scmp.ne.s32.totalorder %s42, %s45
      %p51 = scmp.eq.s32.totalorder %s32, 0
      %p52 = por %p50, %p51
      %p53 = scmp.ne.s32.totalorder %s42, %s45
      %p54 = scmp.eq.s32.totalorder %s37, 1
      %p55 = por %p53, %p54
      %p56 = scmp.ne.s32.totalorder %s45, %s46
      %p57 = scmp.eq.s32.totalorder %s37, 0
      %p58 = por %p56, %p57
      %p59 = scmp.ne.s32.totalorder %s45, %s46
      %p60 = scmp.eq.s32.totalorder %s38, 1
      %p61 = por %p59, %p60
      %p63 = scmp.ne.s32.totalorder %s46, %s62
      %p64 = scmp.eq.s32.totalorder %s38, 0
      %p65 = por %p63, %p64
      %s66 = ssub.s32 %s32, %s39
      %p67 = scmp.eq.s32.totalorder %s66, 0
      %s69 = sadd.s32 %s68, 1
      %s70 = scalar_select %p67, %s68, %s69
      %p73 = pneg %p67
      %p74 = scmp.eq.s32.totalorder %s32, 1
      %p75 = por %p73, %p74
      %p76 = scmp.ne.s32.totalorder %s68, %s71
      %p77 = scmp.eq.s32.totalorder %s32, 0
      %p78 = por %p76, %p77
      %p79 = scmp.ne.s32.totalorder %s68, %s71
      %p80 = scmp.eq.s32.totalorder %s37, 1
      %p81 = por %p79, %p80
      %p82 = scmp.ne.s32.totalorder %s71, %s72
      %p83 = scmp.eq.s32.totalorder %s37, 0
      %p84 = por %p82, %p83
      %p85 = scmp.ne.s32.totalorder %s71, %s72
      %p86 = scmp.eq.s32.totalorder %s38, 1
      %p87 = por %p85, %p86
      %p89 = scmp.ne.s32.totalorder %s72, %s88
      %p90 = scmp.eq.s32.totalorder %s38, 0
      %p91 = por %p89, %p90
      %s93 = sadd.s32 %s92, 1
      %p96 = scmp.eq.s32.totalorder %s32, 1
      %p97 = scmp.ne.s32.totalorder %s92, %s94
      %p98 = scmp.eq.s32.totalorder %s32, 0
      %p99 = por %p97, %p98
      %p100 = scmp.ne.s32.totalorder %s92, %s94
      %p101 = scmp.eq.s32.totalorder %s37, 1
      %p102 = por %p100, %p101
      %p103 = scmp.ne.s32.totalorder %s94, %s95
      %p104 = scmp.eq.s32.totalorder %s37, 0
      %p105 = por %p103, %p104
      %p106 = scmp.ne.s32.totalorder %s94, %s95
      %p107 = scmp.eq.s32.totalorder %s38, 1
      %p108 = por %p106, %p107
      %p110 = scmp.ne.s32.totalorder %s95, %s109
      %p111 = scmp.eq.s32.totalorder %s38, 0
      %p112 = por %p110, %p111
      %s114 = sadd.s32 %s113, 1
      %p117 = scmp.eq.s32.totalorder %s32, 1
      %p118 = scmp.ne.s32.totalorder %s113, %s115
      %p119 = scmp.eq.s32.totalorder %s32, 0
      %p120 = por %p118, %p119
      %p121 = scmp.ne.s32.totalorder %s113, %s115
      %p122 = scmp.eq.s32.totalorder %s37, 1
      %p123 = por %p121, %p122
      %p124 = scmp.ne.s32.totalorder %s115, %s116
      %p125 = scmp.eq.s32.totalorder %s37, 0
      %p126 = por %p124, %p125
      %p127 = scmp.ne.s32.totalorder %s115, %s116
      %p128 = scmp.eq.s32.totalorder %s38, 1
      %p129 = por %p127, %p128
      %p131 = scmp.ne.s32.totalorder %s116, %s130
      %p132 = scmp.eq.s32.totalorder %s38, 0
      %p133 = por %p131, %p132
      %s135 = sadd.s32 %s134, 1
      %p138 = scmp.eq.s32.totalorder %s32, 1
      %p139 = scmp.ne.s32.totalorder %s134, %s136
      %p140 = scmp.eq.s32.totalorder %s32, 0
      %p141 = por %p139, %p140
      %p142 = scmp.ne.s32.totalorder %s134, %s136
      %p143 = scmp.eq.s32.totalorder %s37, 1
      %p144 = por %p142, %p143
      %p145 = scmp.ne.s32.totalorder %s136, %s137
      %p146 = scmp.eq.s32.totalorder %s37, 0
      %p147 = por %p145, %p146
      %p148 = scmp.ne.s32.totalorder %s136, %s137
      %p149 = scmp.eq.s32.totalorder %s38, 1
      %p150 = por %p148, %p149
      %p152 = scmp.ne.s32.totalorder %s137, %s151
      %p153 = scmp.eq.s32.totalorder %s38, 0
      %p154 = por %p152, %p153
      %s156 = sadd.s32 %s155, 1
      %p159 = scmp.eq.s32.totalorder %s32, 1
      %p160 = scmp.ne.s32.totalorder %s155, %s157
      %p161 = scmp.eq.s32.totalorder %s32, 0
      %p162 = por %p160, %p161
      %p163 = scmp.ne.s32.totalorder %s155, %s157
      %p164 = scmp.eq.s32.totalorder %s37, 1
      %p165 = por %p163, %p164
      %p166 = scmp.ne.s32.totalorder %s157, %s158
      %p167 = scmp.eq.s32.totalorder %s37, 0
      %p168 = por %p166, %p167
      %p169 = scmp.ne.s32.totalorder %s157, %s158
      %p170 = scmp.eq.s32.totalorder %s38, 1
      %p171 = por %p169, %p170
      %p173 = scmp.ne.s32.totalorder %s158, %s172
      %p174 = scmp.eq.s32.totalorder %s38, 0
      %p175 = por %p173, %p174
      %s177 = sadd.s32 %s176, 1
      %p180 = scmp.eq.s32.totalorder %s32, 1
      %p181 = scmp.ne.s32.totalorder %s176, %s178
      %p182 = scmp.eq.s32.totalorder %s32, 0
      %p183 = por %p181, %p182
      %p184 = scmp.ne.s32.totalorder %s176, %s178
      %p185 = scmp.eq.s32.totalorder %s37, 1
      %p186 = por %p184, %p185
      %p187 = scmp.ne.s32.totalorder %s178, %s179
      %p188 = scmp.eq.s32.totalorder %s37, 0
      %p189 = por %p187, %p188
      %p190 = scmp.ne.s32.totalorder %s178, %s179
      %p191 = scmp.eq.s32.totalorder %s38, 1
      %p192 = por %p190, %p191
      %p194 = scmp.ne.s32.totalorder %s179, %s193
      %p195 = scmp.eq.s32.totalorder %s38, 0
      %p196 = por %p194, %p195
      %s198 = sadd.s32 %s197, 1
      %p201 = scmp.eq.s32.totalorder %s32, 1
      %p202 = scmp.ne.s32.totalorder %s197, %s199
      %p203 = scmp.eq.s32.totalorder %s32, 0
      %p204 = por %p202, %p203
      %p205 = scmp.ne.s32.totalorder %s197, %s199
      %p206 = scmp.eq.s32.totalorder %s37, 1
      %p207 = por %p205, %p206
      %p208 = scmp.ne.s32.totalorder %s199, %s200
      %p209 = scmp.eq.s32.totalorder %s37, 0
      %p210 = por %p208, %p209
      %p211 = scmp.ne.s32.totalorder %s199, %s200
      %p212 = scmp.eq.s32.totalorder %s38, 1
      %p213 = por %p211, %p212
      %p215 = scmp.ne.s32.totalorder %s200, %s214
      %p216 = scmp.eq.s32.totalorder %s38, 0
      %p217 = por %p215, %p216
      %s219 = sadd.s32 %s218, 1
      %p222 = scmp.eq.s32.totalorder %s32, 1
      %p223 = scmp.ne.s32.totalorder %s218, %s220
      %p224 = scmp.eq.s32.totalorder %s32, 0
      %p225 = por %p223, %p224
      %p226 = scmp.ne.s32.totalorder %s218, %s220
      %p227 = scmp.eq.s32.totalorder %s37, 1
      %p228 = por %p226, %p227
      %p229 = scmp.ne.s32.totalorder %s220, %s221
      %p230 = scmp.eq.s32.totalorder %s37, 0
      %p231 = por %p229, %p230
      %p232 = scmp.ne.s32.totalorder %s220, %s221
      %p233 = scmp.eq.s32.totalorder %s38, 1
      %p234 = por %p232, %p233
      %p236 = scmp.ne.s32.totalorder %s221, %s235
      %p237 = scmp.eq.s32.totalorder %s38, 0
      %p238 = por %p236, %p237
      %s240 = sadd.s32 %s239, 1
      %p243 = scmp.eq.s32.totalorder %s32, 1
      %p244 = scmp.ne.s32.totalorder %s239, %s241
      %p245 = scmp.eq.s32.totalorder %s32, 0
      %p246 = por %p244, %p245
      %p247 = scmp.ne.s32.totalorder %s239, %s241
      %p248 = scmp.eq.s32.totalorder %s37, 1
      %p249 = por %p247, %p248
      %p250 = scmp.ne.s32.totalorder %s241, %s242
      %p251 = scmp.eq.s32.totalorder %s37, 0
      %p252 = por %p250, %p251
      %p253 = scmp.ne.s32.totalorder %s241, %s242
      %p254 = scmp.eq.s32.totalorder %s38, 1
      %p255 = por %p253, %p254
      %p257 = scmp.ne.s32.totalorder %s242, %s256
      %p258 = scmp.eq.s32.totalorder %s38, 0
      %p259 = por %p257, %p258
      %s261 = sadd.s32 %s260, 1
      %p264 = scmp.eq.s32.totalorder %s32, 1
      %p265 = scmp.ne.s32.totalorder %s260, %s262
      %p266 = scmp.eq.s32.totalorder %s32, 0
      %p267 = por %p265, %p266
      %p268 = scmp.ne.s32.totalorder %s260, %s262
      %p269 = scmp.eq.s32.totalorder %s37, 1
      %p270 = por %p268, %p269
      %p271 = scmp.ne.s32.totalorder %s262, %s263
      %p272 = scmp.eq.s32.totalorder %s37, 0
      %p273 = por %p271, %p272
      %p274 = scmp.ne.s32.totalorder %s262, %s263
      %p275 = scmp.eq.s32.totalorder %s38, 1
      %p276 = por %p274, %p275
      %p278 = scmp.ne.s32.totalorder %s263, %s277
      %p279 = scmp.eq.s32.totalorder %s38, 0
      %p280 = por %p278, %p279
      %s282 = sadd.s32 %s281, 1
      %p285 = scmp.eq.s32.totalorder %s32, 1
      %p286 = scmp.ne.s32.totalorder %s281, %s283
      %p287 = scmp.eq.s32.totalorder %s32, 0
      %p288 = por %p286, %p287
      %p289 = scmp.ne.s32.totalorder %s281, %s283
      %p290 = scmp.eq.s32.totalorder %s37, 1
      %p291 = por %p289, %p290
      %p292 = scmp.ne.s32.totalorder %s283, %s284
      %p293 = scmp.eq.s32.totalorder %s37, 0
      %p294 = por %p292, %p293
      %p295 = scmp.ne.s32.totalorder %s283, %s284
      %p296 = scmp.eq.s32.totalorder %s38, 1
      %p297 = por %p295, %p296
      %p299 = scmp.ne.s32.totalorder %s284, %s298
      %p300 = scmp.eq.s32.totalorder %s38, 0
      %p301 = por %p299, %p300
      %s303 = sadd.s32 %s302, 1
      %p306 = scmp.eq.s32.totalorder %s32, 1
      %p307 = scmp.ne.s32.totalorder %s302, %s304
      %p308 = scmp.eq.s32.totalorder %s32, 0
      %p309 = por %p307, %p308
      %p310 = scmp.ne.s32.totalorder %s302, %s304
      %p311 = scmp.eq.s32.totalorder %s37, 1
      %p312 = por %p310, %p311
      %p313 = scmp.ne.s32.totalorder %s304, %s305
      %p314 = scmp.eq.s32.totalorder %s37, 0
      %p315 = por %p313, %p314
      %p316 = scmp.ne.s32.totalorder %s304, %s305
      %p317 = scmp.eq.s32.totalorder %s38, 1
      %p318 = por %p316, %p317
      %p320 = scmp.ne.s32.totalorder %s305, %s319
      %p321 = scmp.eq.s32.totalorder %s38, 0
      %p322 = por %p320, %p321
      %s324 = sadd.s32 %s323, 1
      %p327 = scmp.eq.s32.totalorder %s32, 1
      %p328 = scmp.ne.s32.totalorder %s323, %s325
      %p329 = scmp.eq.s32.totalorder %s32, 0
      %p330 = por %p328, %p329
      %p331 = scmp.ne.s32.totalorder %s323, %s325
      %p332 = scmp.eq.s32.totalorder %s37, 1
      %p333 = por %p331, %p332
      %p334 = scmp.ne.s32.totalorder %s325, %s326
      %p335 = scmp.eq.s32.totalorder %s37, 0
      %p336 = por %p334, %p335
      %p337 = scmp.ne.s32.totalorder %s325, %s326
      %p338 = scmp.eq.s32.totalorder %s38, 1
      %p339 = por %p337, %p338
      %p341 = scmp.ne.s32.totalorder %s326, %s340
      %p342 = scmp.eq.s32.totalorder %s38, 0
      %p343 = por %p341, %p342
      %s345 = sadd.s32 %s344, 1
      %p348 = scmp.eq.s32.totalorder %s32, 1
      %p349 = scmp.ne.s32.totalorder %s344, %s346
      %p350 = scmp.eq.s32.totalorder %s32, 0
      %p351 = por %p349, %p350
      %p352 = scmp.ne.s32.totalorder %s344, %s346
      %p353 = scmp.eq.s32.totalorder %s37, 1
      %p354 = por %p352, %p353
      %p355 = scmp.ne.s32.totalorder %s346, %s347
      %p356 = scmp.eq.s32.totalorder %s37, 0
      %p357 = por %p355, %p356
      %p358 = scmp.ne.s32.totalorder %s346, %s347
      %p359 = scmp.eq.s32.totalorder %s38, 1
      %p360 = por %p358, %p359
      %p362 = scmp.ne.s32.totalorder %s347, %s361
      %p363 = scmp.eq.s32.totalorder %s38, 0
      %p364 = por %p362, %p363
      %s366 = sadd.s32 %s365, 1
      %p369 = scmp.eq.s32.totalorder %s32, 1
      %p370 = scmp.ne.s32.totalorder %s365, %s367
      %p371 = scmp.eq.s32.totalorder %s32, 0
      %p372 = por %p370, %p371
      %p373 = scmp.ne.s32.totalorder %s365, %s367
      %p374 = scmp.eq.s32.totalorder %s37, 1
      %p375 = por %p373, %p374
      %p376 = scmp.ne.s32.totalorder %s367, %s368
      %p377 = scmp.eq.s32.totalorder %s37, 0
      %p378 = por %p376, %p377
      %p379 = scmp.ne.s32.totalorder %s367, %s368
      %p380 = scmp.eq.s32.totalorder %s38, 1
      %p381 = por %p379, %p380
      %p383 = scmp.ne.s32.totalorder %s368, %s382
      %p384 = scmp.eq.s32.totalorder %s38, 0
      %p385 = por %p383, %p384
      %s387 = sadd.s32 %s386, 1
      %p390 = scmp.eq.s32.totalorder %s32, 1
      %p391 = scmp.ne.s32.totalorder %s386, %s388
      %p392 = scmp.eq.s32.totalorder %s32, 0
      %p393 = por %p391, %p392
      %p394 = scmp.ne.s32.totalorder %s386, %s388
      %p395 = scmp.eq.s32.totalorder %s37, 1
      %p396 = por %p394, %p395
      %p397 = scmp.ne.s32.totalorder %s388, %s389
      %p398 = scmp.eq.s32.totalorder %s37, 0
      %p399 = por %p397, %p398
      %p400 = scmp.ne.s32.totalorder %s388, %s389
      %p401 = scmp.eq.s32.totalorder %s38, 1
      %p402 = por %p400, %p401
      %p404 = scmp.ne.s32.totalorder %s389, %s403
      %p405 = scmp.eq.s32.totalorder %s38, 0
      %p406 = por %p404, %p405
      %s408 = sadd.s32 %s407, 1
      %p411 = scmp.eq.s32.totalorder %s32, 1
      %p412 = scmp.ne.s32.totalorder %s407, %s409
      %p413 = scmp.eq.s32.totalorder %s32, 0
      %p414 = por %p412, %p413
      %p415 = scmp.ne.s32.totalorder %s407, %s409
      %p416 = scmp.eq.s32.totalorder %s37, 1
      %p417 = por %p415, %p416
      %p418 = scmp.ne.s32.totalorder %s409, %s410
      %p419 = scmp.eq.s32.totalorder %s37, 0
      %p420 = por %p418, %p419
      %p421 = scmp.ne.s32.totalorder %s409, %s410
      %p422 = scmp.eq.s32.totalorder %s38, 1
      %p423 = por %p421, %p422
      %p425 = scmp.ne.s32.totalorder %s410, %s424
      %p426 = scmp.eq.s32.totalorder %s38, 0
      %p427 = por %p425, %p426
      %s428 = ssub.s32 %s32, %s39
      %p429 = scmp.eq.s32.totalorder %s428, 0
      %s431 = sadd.s32 %s430, 1
      %s432 = scalar_select %p429, %s430, %s431
      %p435 = pneg %p429
      %p436 = scmp.eq.s32.totalorder %s32, 1
      %p437 = por %p435, %p436
      %p438 = scmp.ne.s32.totalorder %s430, %s433
      %p439 = scmp.eq.s32.totalorder %s32, 0
      %p440 = por %p438, %p439
      %p441 = scmp.ne.s32.totalorder %s430, %s433
      %p442 = scmp.eq.s32.totalorder %s37, 1
      %p443 = por %p441, %p442
      %p444 = scmp.ne.s32.totalorder %s433, %s434
      %p445 = scmp.eq.s32.totalorder %s37, 0
      %p446 = por %p444, %p445
      %p447 = scmp.ne.s32.totalorder %s433, %s434
      %p448 = scmp.eq.s32.totalorder %s38, 1
      %p449 = por %p447, %p448
      %p451 = scmp.ne.s32.totalorder %s434, %s450
      %p452 = scmp.eq.s32.totalorder %s38, 0
      %p453 = por %p451, %p452
      %p454 = scmp.le.s32.totalorder 1, %s32
      %p455 = scmp.lt.s32.totalorder %s32, 3
      %p456 = pnand %p454, %p455
      %p457 = pneg %p456
      // Predicated region
      $region9: #{tfm_lm_forward.1} parent=5 // pred_check
        _
      $region10: #{tfm_lm_forward.1} parent=5 // pred_check_branch
        %459 = sbr.rel (%p456) target = $region12
      $region11: #{tfm_lm_forward.1} parent=5 // pred_region
        %s460 = ssub.s32 %s32, 1
        // Predicated region
        $region13: #{tfm_lm_forward.1} parent=11 // pred_check
          %p461 = pneg %p105
        $region14: #{tfm_lm_forward.1} parent=11 // pred_check_branch
          %463 = sbr.rel (%p461) target = $region16
        $region15: #{tfm_lm_forward.1} parent=11 // pred_region
          %s465 = ssub.s32 32, 32
          %466 = vsyncadd [#allocation3], %s465
          %s467 = sshll.u32 [#allocation2], 4
          %s468 = int_to_ptr.vmem [resolvable:$true] %s467
          %473 = dma.hbm_to_vmem [thread:$0]  %s2, 32, %s468, [#allocation3], 16, 16, 1
        $region16: #{tfm_lm_forward.1} parent=11 // pred_fallthru
          _
        // Predicated region
        $region17: #{tfm_lm_forward.1} parent=11 // pred_check
          %p474 = pneg %p126
        $region18: #{tfm_lm_forward.1} parent=11 // pred_check_branch
          %476 = sbr.rel (%p474) target = $region20
        $region19: #{tfm_lm_forward.1} parent=11 // pred_region
          %s478 = ssub.s32 32, 32
          %479 = vsyncadd [#allocation6], %s478
          %s480 = sshll.u32 [#allocation5], 4
          %s481 = int_to_ptr.vmem [resolvable:$true] %s480
          %486 = dma.hbm_to_vmem [thread:$0]  %s3, 32, %s481, [#allocation6], 16, 16, 1
        $region20: #{tfm_lm_forward.1} parent=11 // pred_fallthru
          _
        // Predicated region
        $region21: #{tfm_lm_forward.1} parent=11 // pred_check
          %p487 = pneg %p147
        $region22: #{tfm_lm_forward.1} parent=11 // pred_check_branch
          %489 = sbr.rel (%p487) target = $region24
        $region23: #{tfm_lm_forward.1} parent=11 // pred_region
          %s491 = ssub.s32 24576, 24576
          %492 = vsyncadd [#allocation6], %s491
          %s493 = sshll.u32 [#allocation7], 4
          %s494 = int_to_ptr.vmem [resolvable:$true] %s493
          %499 = dma.hbm_to_vmem [thread:$0]  %s4, 24576, %s494, [#allocation6], 768, 768, 48
        $region24: #{tfm_lm_forward.1} parent=11 // pred_fallthru
          _
        // Predicated region
        $region25: #{tfm_lm_forward.1} parent=11 // pred_check
          %p500 = pneg %p168
        $region26: #{tfm_lm_forward.1} parent=11 // pred_check_branch
          %502 = sbr.rel (%p500) target = $region28
        $region27: #{tfm_lm_forward.1} parent=11 // pred_region
          %s504 = ssub.s32 384, 384
          %505 = vsyncadd [#allocation9], %s504
          %s506 = sshll.u32 [#allocation8], 4
          %s507 = int_to_ptr.vmem [resolvable:$true] %s506
          %512 = dma.hbm_to_vmem [thread:$0]  %s5, 384, %s507, [#allocation9], 192, 192, 12
        $region28: #{tfm_lm_forward.1} parent=11 // pred_fallthru
          _
        // Predicated region
        $region29: #{tfm_lm_forward.1} parent=11 // pred_check
          %p513 = pneg %p189
        $region30: #{tfm_lm_forward.1} parent=11 // pred_check_branch
          %515 = sbr.rel (%p513) target = $region32
        $region31: #{tfm_lm_forward.1} parent=11 // pred_region
          %s517 = ssub.s32 8192, 8192
          %518 = vsyncadd [#allocation9], %s517
          %s519 = sshll.u32 [#allocation10], 4
          %s520 = int_to_ptr.vmem [resolvable:$true] %s519
          %525 = dma.hbm_to_vmem [thread:$0]  %s6, 8192, %s520, [#allocation9], 64, 64, 4
        $region32: #{tfm_lm_forward.1} parent=11 // pred_fallthru
          _
        // Predicated region
        $region33: #{tfm_lm_forward.1} parent=11 // pred_check
          %p526 = pneg %p210
        $region34: #{tfm_lm_forward.1} parent=11 // pred_check_branch
          %528 = sbr.rel (%p526) target = $region36
        $region35: #{tfm_lm_forward.1} parent=11 // pred_region
          %s530 = ssub.s32 32, 32
          %531 = vsyncadd [#allocation12], %s530
          %s532 = sshll.u32 [#allocation11], 4
          %s533 = int_to_ptr.vmem [resolvable:$true] %s532
          %538 = dma.hbm_to_vmem [thread:$0]  %s7, 32, %s533, [#allocation12], 16, 16, 1
        $region36: #{tfm_lm_forward.1} parent=11 // pred_fallthru
          _
        // Predicated region
        $region37: #{tfm_lm_forward.1} parent=11 // pred_check
          %p539 = pneg %p231
        $region38: #{tfm_lm_forward.1} parent=11 // pred_check_branch
          %541 = sbr.rel (%p539) target = $region40
        $region39: #{tfm_lm_forward.1} parent=11 // pred_region
          %s543 = ssub.s32 32, 32
          %544 = vsyncadd [#allocation12], %s543
          %s545 = sshll.u32 [#allocation13], 4
          %s546 = int_to_ptr.vmem [resolvable:$true] %s545
          %551 = dma.hbm_to_vmem [thread:$0]  %s8, 32, %s546, [#allocation12], 16, 16, 1
        $region40: #{tfm_lm_forward.1} parent=11 // pred_fallthru
          _
        // Predicated region
        $region41: #{tfm_lm_forward.1} parent=11 // pred_check
          %p552 = pneg %p252
        $region42: #{tfm_lm_forward.1} parent=11 // pred_check_branch
          %554 = sbr.rel (%p552) target = $region44
        $region43: #{tfm_lm_forward.1} parent=11 // pred_region
          %s556 = ssub.s32 32, 32
          %557 = vsyncadd [#allocation15], %s556
          %s558 = sshll.u32 [#allocation14], 4
          %s559 = int_to_ptr.vmem [resolvable:$true] %s558
          %564 = dma.hbm_to_vmem [thread:$0]  %s9, 32, %s559, [#allocation15], 16, 16, 1
        $region44: #{tfm_lm_forward.1} parent=11 // pred_fallthru
          _
        // Predicated region
        $region45: #{tfm_lm_forward.1} parent=11 // pred_check
          %p565 = pneg %p273
        $region46: #{tfm_lm_forward.1} parent=11 // pred_check_branch
          %567 = sbr.rel (%p565) target = $region48
        $region47: #{tfm_lm_forward.1} parent=11 // pred_region
          _
        $region48: #{tfm_lm_forward.1} parent=11 // pred_fallthru
          _
        // Predicated region
        $region49: #{tfm_lm_forward.1} parent=11 // pred_check
          %p568 = pneg %p294
        $region50: #{tfm_lm_forward.1} parent=11 // pred_check_branch
          %570 = sbr.rel (%p568) target = $region52
        $region51: #{tfm_lm_forward.1} parent=11 // pred_region
          _
        $region52: #{tfm_lm_forward.1} parent=11 // pred_fallthru
          _
        // Predicated region
        $region53: #{tfm_lm_forward.1} parent=11 // pred_check
          %p571 = pneg %p315
        $region54: #{tfm_lm_forward.1} parent=11 // pred_check_branch
          %573 = sbr.rel (%p571) target = $region56
        $region55: #{tfm_lm_forward.1} parent=11 // pred_region
          _
        $region56: #{tfm_lm_forward.1} parent=11 // pred_fallthru
          _
        // Predicated region
        $region57: #{tfm_lm_forward.1} parent=11 // pred_check
          %p574 = pneg %p336
        $region58: #{tfm_lm_forward.1} parent=11 // pred_check_branch
          %576 = sbr.rel (%p574) target = $region60
        $region59: #{tfm_lm_forward.1} parent=11 // pred_region
          _
        $region60: #{tfm_lm_forward.1} parent=11 // pred_fallthru
          _
        // Predicated region
        $region61: #{tfm_lm_forward.1} parent=11 // pred_check
          %p577 = pneg %p357
        $region62: #{tfm_lm_forward.1} parent=11 // pred_check_branch
          %579 = sbr.rel (%p577) target = $region64
        $region63: #{tfm_lm_forward.1} parent=11 // pred_region
          _
        $region64: #{tfm_lm_forward.1} parent=11 // pred_fallthru
          _
        // Predicated region
        $region65: #{tfm_lm_forward.1} parent=11 // pred_check
          %p580 = pneg %p378
        $region66: #{tfm_lm_forward.1} parent=11 // pred_check_branch
          %582 = sbr.rel (%p580) target = $region68
        $region67: #{tfm_lm_forward.1} parent=11 // pred_region
          _
        $region68: #{tfm_lm_forward.1} parent=11 // pred_fallthru
          _
        // Predicated region
        $region69: #{tfm_lm_forward.1} parent=11 // pred_check
          %p583 = pneg %p399
        $region70: #{tfm_lm_forward.1} parent=11 // pred_check_branch
          %585 = sbr.rel (%p583) target = $region72
        $region71: #{tfm_lm_forward.1} parent=11 // pred_region
          _
        $region72: #{tfm_lm_forward.1} parent=11 // pred_fallthru
          _
        // Predicated region
        $region73: #{tfm_lm_forward.1} parent=11 // pred_check
          %p586 = pneg %p420
        $region74: #{tfm_lm_forward.1} parent=11 // pred_check_branch
          %588 = sbr.rel (%p586) target = $region76
        $region75: #{tfm_lm_forward.1} parent=11 // pred_region
          _
        $region76: #{tfm_lm_forward.1} parent=11 // pred_fallthru
          _
      $region12: #{tfm_lm_forward.1} parent=5 // pred_fallthru
        _
      %p589 = scmp.lt.s32.totalorder %s32, 2
      // Predicated region
      $region77: #{tfm_lm_forward.1} parent=5 // pred_check
        %p590 = pneg %p589
      $region78: #{tfm_lm_forward.1} parent=5 // pred_check_branch
        %592 = sbr.rel (%p590) target = $region80
      $region79: #{tfm_lm_forward.1} parent=5 // pred_region
        // Predicated region
        $region81: #{tfm_lm_forward.1} parent=79 // pred_check
          %p593 = pneg %p52
        $region82: #{tfm_lm_forward.1} parent=79 // pred_check_branch
          %595 = sbr.rel (%p593) target = $region84
        $region83: #{tfm_lm_forward.1} parent=79 // pred_region
          %p596 = scmp.lt.s32.totalorder %s32, 1
          %s597 = scalar_select %p596, %s32, 1
          %s598 = smul.addr %s597, 8
          %s599 = scalar_lea.vmem %s0, %s598
        $region84: #{tfm_lm_forward.1} parent=79 // pred_fallthru
          _
        // Predicated region
        $region85: #{tfm_lm_forward.1} parent=79 // pred_check
          %p600 = pneg %p78
        $region86: #{tfm_lm_forward.1} parent=79 // pred_check_branch
          %602 = sbr.rel (%p600) target = $region88
        $region87: #{tfm_lm_forward.1} parent=79 // pred_region
          %p603 = scmp.lt.s32.totalorder %s32, 1
          %s604 = scalar_select %p603, %s32, 1
          %s605 = smul.addr %s604, 4
          %s606 = smul.addr %s605, 8
          %s607 = scalar_lea.vmem %s1, %s606
        $region88: #{tfm_lm_forward.1} parent=79 // pred_fallthru
          _
      $region80: #{tfm_lm_forward.1} parent=5 // pred_fallthru
        _
      %p608 = scmp.le.s32.totalorder 1, %s32
      %p609 = scmp.lt.s32.totalorder %s32, 3
      %p610 = pnand %p608, %p609
      %p611 = pneg %p610
      // Predicated region
      $region89: #{tfm_lm_forward.1} parent=5 // pred_check
        _
      $region90: #{tfm_lm_forward.1} parent=5 // pred_check_branch
        %613 = sbr.rel (%p610) target = $region92
      $region91: #{tfm_lm_forward.1} parent=5 // pred_region
        %s614 = ssub.s32 %s32, 1
        // Predicated region
        $region93: #{tfm_lm_forward.1} parent=91 // pred_check
          %p615 = pneg %p105
        $region94: #{tfm_lm_forward.1} parent=91 // pred_check_branch
          %617 = sbr.rel (%p615) target = $region96
        $region95: #{tfm_lm_forward.1} parent=91 // pred_region
          %618 = dma.done [#allocation3], 32
        $region96: #{tfm_lm_forward.1} parent=91 // pred_fallthru
          _
        // Predicated region
        $region97: #{tfm_lm_forward.1} parent=91 // pred_check
          %p619 = pneg %p126
        $region98: #{tfm_lm_forward.1} parent=91 // pred_check_branch
          %621 = sbr.rel (%p619) target = $region100
        $region99: #{tfm_lm_forward.1} parent=91 // pred_region
          %622 = dma.done [#allocation6], 32
        $region100: #{tfm_lm_forward.1} parent=91 // pred_fallthru
          _
        // Predicated region
        $region101: #{tfm_lm_forward.1} parent=91 // pred_check
          %p623 = pneg %p147
        $region102: #{tfm_lm_forward.1} parent=91 // pred_check_branch
          %625 = sbr.rel (%p623) target = $region104
        $region103: #{tfm_lm_forward.1} parent=91 // pred_region
          %626 = dma.done [#allocation6], 24576
        $region104: #{tfm_lm_forward.1} parent=91 // pred_fallthru
          _
        // Predicated region
        $region105: #{tfm_lm_forward.1} parent=91 // pred_check
          %p627 = pneg %p168
        $region106: #{tfm_lm_forward.1} parent=91 // pred_check_branch
          %629 = sbr.rel (%p627) target = $region108
        $region107: #{tfm_lm_forward.1} parent=91 // pred_region
          %630 = dma.done [#allocation9], 384
        $region108: #{tfm_lm_forward.1} parent=91 // pred_fallthru
          _
        // Predicated region
        $region109: #{tfm_lm_forward.1} parent=91 // pred_check
          %p631 = pneg %p189
        $region110: #{tfm_lm_forward.1} parent=91 // pred_check_branch
          %633 = sbr.rel (%p631) target = $region112
        $region111: #{tfm_lm_forward.1} parent=91 // pred_region
          %634 = dma.done [#allocation9], 8192
        $region112: #{tfm_lm_forward.1} parent=91 // pred_fallthru
          _
        // Predicated region
        $region113: #{tfm_lm_forward.1} parent=91 // pred_check
          %p635 = pneg %p210
        $region114: #{tfm_lm_forward.1} parent=91 // pred_check_branch
          %637 = sbr.rel (%p635) target = $region116
        $region115: #{tfm_lm_forward.1} parent=91 // pred_region
          %638 = dma.done [#allocation12], 32
        $region116: #{tfm_lm_forward.1} parent=91 // pred_fallthru
          _
        // Predicated region
        $region117: #{tfm_lm_forward.1} parent=91 // pred_check
          %p639 = pneg %p231
        $region118: #{tfm_lm_forward.1} parent=91 // pred_check_branch
          %641 = sbr.rel (%p639) target = $region120
        $region119: #{tfm_lm_forward.1} parent=91 // pred_region
          %642 = dma.done [#allocation12], 32
        $region120: #{tfm_lm_forward.1} parent=91 // pred_fallthru
          _
        // Predicated region
        $region121: #{tfm_lm_forward.1} parent=91 // pred_check
          %p643 = pneg %p252
        $region122: #{tfm_lm_forward.1} parent=91 // pred_check_branch
          %645 = sbr.rel (%p643) target = $region124
        $region123: #{tfm_lm_forward.1} parent=91 // pred_region
          %646 = dma.done [#allocation15], 32
        $region124: #{tfm_lm_forward.1} parent=91 // pred_fallthru
          _
        %p647 = scmp.lt.s32.totalorder %s37, 1
        %s648 = scalar_select %p647, %s37, 1
        %s649 = smul.addr %s648, 8
        %s650 = scalar_lea.vmem %s0, %s649
        %p651 = pneg %p58
        %p652 = pneg %p55
        %p653 = scmp.lt.s32.totalorder %s37, 1
        %s654 = scalar_select %p653, %s37, 1
        %s655 = smul.addr %s654, 4
        %s656 = smul.addr %s655, 8
        %s657 = scalar_lea.vmem %s1, %s656
        %p658 = pneg %p84
        %p659 = pneg %p81
        %p660 = pneg %p105
        %p661 = pneg %p102
        %p662 = pneg %p126
        %p663 = pneg %p123
        %p664 = pneg %p147
        %p665 = pneg %p144
        %p666 = pneg %p168
        %p667 = pneg %p165
        %p668 = pneg %p189
        %p669 = pneg %p186
        %p670 = pneg %p210
        %p671 = pneg %p207
        %p672 = pneg %p231
        %p673 = pneg %p228
        %p674 = pneg %p252
        %p675 = pneg %p249
        %p676 = pneg %p273
        %p677 = pneg %p270
        %p678 = pneg %p294
        %p679 = pneg %p291
        %p680 = pneg %p315
        %p681 = pneg %p312
        %p682 = pneg %p336
        %p683 = pneg %p333
        %p684 = pneg %p357
        %p685 = pneg %p354
        %p686 = pneg %p378
        %p687 = pneg %p375
        %p688 = pneg %p399
        %p689 = pneg %p396
        %p690 = pneg %p420
        %p691 = pneg %p417
        %p692 = pneg %p446
        %p693 = pneg %p443
        %s694 = sand.u32 %s433, 1
        %s695 = scalar_lea.sflag [#allocation4], %s694
        %s696 = sand.u32 %s433, 1
        %s697 = smul.addr %s696, 8
        %s698 = scalar_lea.vmem [#allocation16], %s697
        %p699 = scmp.lt.s32.totalorder %s37, 1
        %s700 = scalar_select %p699, %s37, 1
        %s701 = smul.addr %s700, 8
        %s702 = scalar_lea.vmem %s0, %s701
        %p703 = scmp.lt.s32.totalorder %s37, 1
        %s704 = scalar_select %p703, %s37, 1
        %s705 = smul.addr %s704, 4
        %s706 = smul.addr %s705, 8
        %s707 = scalar_lea.vmem %s1, %s706
        %v709 = vld [vmem:[%s702] sm:$0xff]
        %v710 = vld [vmem:[%s707] sm:$0xff]
        %v711 = vld [vmem:[%s707 + $0x8] sm:$0xff]
        %v712 = vld [vmem:[%s707 + $0x10] sm:$0xff]
        %v713 = vld [vmem:[%s707 + $0x18] sm:$0xff]
        %v714 = vld [vmem:[#allocation2] sm:$0x1]
        %v715 = vld [vmem:[#allocation5] sm:$0x1]
        %716 = vadd.xlane.f32.xlu0 %v709
        %v717 = vpop.xlane.xlu0 %716
        %v718 = vmul.f32 %v717, 0.03125
        %v719 = vmul.f32 %v709, %v709
        %720 = vadd.xlane.f32.xlu0 %v719
        %v721 = vpop.xlane.xlu0 %720
        %v722 = vmul.f32 %v721, 0.03125
        %v723 = vmul.f32 %v718, %v718
        %v724 = vsub.f32 %v722, %v723
        %v725 = vmax.f32 %v724, 0.0
        %v726 = vsub.f32 %v709, %v718
        %v727 = vadd.f32 %v725, 1e-06
        %v728 = vrsqrt.pop %v727
        %v729 = vmul.f32 %v726, %v728
        %v731 = vlaneseq
        %v732 = vshrl.u32 %v731, 7
        %v733 = vsub.s32 0, %v732
        %v734 = vrot.slane %v714, %v733
        %v736 = vmul.f32 %v729, %v734
        %v738 = vlaneseq
        %v739 = vshrl.u32 %v738, 7
        %v740 = vsub.s32 0, %v739
        %v741 = vrot.slane %v715, %v740
        %v743 = vadd.f32 %v736, %v741
        %v744 = vpack.c.bf16 %v743, %v743
        %v745 = vld [vmem:[#allocation7] sm:$0xff]
        %v746 = vld [vmem:[#allocation7 + $0x8] sm:$0xff]
        %v747 = vld [vmem:[#allocation7 + $0x10] sm:$0xff]
        %v748 = vld [vmem:[#allocation7 + $0x18] sm:$0xff]
        %v749 = vld [vmem:[#allocation7 + $0x20] sm:$0xff]
        %v750 = vld [vmem:[#allocation7 + $0x28] sm:$0xff]
        %v751 = vld [vmem:[#allocation7 + $0x30] sm:$0xff]
        %v752 = vld [vmem:[#allocation7 + $0x38] sm:$0xff]
        %v753 = vld [vmem:[#allocation7 + $0x40] sm:$0xff]
        %v754 = vld [vmem:[#allocation7 + $0x48] sm:$0xff]
        %v755 = vld [vmem:[#allocation7 + $0x50] sm:$0xff]
        %v756 = vld [vmem:[#allocation7 + $0x58] sm:$0xff]
        %v757 = vld [vmem:[#allocation7 + $0x60] sm:$0xff]
        %v758 = vld [vmem:[#allocation7 + $0x68] sm:$0xff]
        %v759 = vld [vmem:[#allocation7 + $0x70] sm:$0xff]
        %v760 = vld [vmem:[#allocation7 + $0x78] sm:$0xff]
        %v761 = vld [vmem:[#allocation7 + $0x80] sm:$0xff]
        %v762 = vld [vmem:[#allocation7 + $0x88] sm:$0xff]
        %v763 = vld [vmem:[#allocation7 + $0x90] sm:$0xff]
        %v764 = vld [vmem:[#allocation7 + $0x98] sm:$0xff]
        %v765 = vld [vmem:[#allocation7 + $0xa0] sm:$0xff]
        %v766 = vld [vmem:[#allocation7 + $0xa8] sm:$0xff]
        %v767 = vld [vmem:[#allocation7 + $0xb0] sm:$0xff]
        %v768 = vld [vmem:[#allocation7 + $0xb8] sm:$0xff]
        %v769 = vld [vmem:[#allocation7 + $0xc0] sm:$0xff]
        %v770 = vld [vmem:[#allocation7 + $0xc8] sm:$0xff]
        %v771 = vld [vmem:[#allocation7 + $0xd0] sm:$0xff]
        %v772 = vld [vmem:[#allocation7 + $0xd8] sm:$0xff]
        %v773 = vld [vmem:[#allocation7 + $0xe0] sm:$0xff]
        %v774 = vld [vmem:[#allocation7 + $0xe8] sm:$0xff]
        %v775 = vld [vmem:[#allocation7 + $0xf0] sm:$0xff]
        %v776 = vld [vmem:[#allocation7 + $0xf8] sm:$0xff]
        %v777 = vld [vmem:[#allocation7 + $0x100] sm:$0xff]
        %v778 = vld [vmem:[#allocation7 + $0x108] sm:$0xff]
        %v779 = vld [vmem:[#allocation7 + $0x110] sm:$0xff]
        %v780 = vld [vmem:[#allocation7 + $0x118] sm:$0xff]
        %v781 = vld [vmem:[#allocation7 + $0x120] sm:$0xff]
        %v782 = vld [vmem:[#allocation7 + $0x128] sm:$0xff]
        %v783 = vld [vmem:[#allocation7 + $0x130] sm:$0xff]
        %v784 = vld [vmem:[#allocation7 + $0x138] sm:$0xff]
        %v785 = vld [vmem:[#allocation7 + $0x140] sm:$0xff]
        %v786 = vld [vmem:[#allocation7 + $0x148] sm:$0xff]
        %v787 = vld [vmem:[#allocation7 + $0x150] sm:$0xff]
        %v788 = vld [vmem:[#allocation7 + $0x158] sm:$0xff]
        %v789 = vld [vmem:[#allocation7 + $0x160] sm:$0xff]
        %v790 = vld [vmem:[#allocation7 + $0x168] sm:$0xff]
        %v791 = vld [vmem:[#allocation7 + $0x170] sm:$0xff]
        %v792 = vld [vmem:[#allocation7 + $0x178] sm:$0xff]
        %v793 = vld [vmem:[#allocation7 + $0x180] sm:$0xff]
        %v794 = vld [vmem:[#allocation7 + $0x188] sm:$0xff]
        %v795 = vld [vmem:[#allocation7 + $0x190] sm:$0xff]
        %v796 = vld [vmem:[#allocation7 + $0x198] sm:$0xff]
        %v797 = vld [vmem:[#allocation7 + $0x1a0] sm:$0xff]
        %v798 = vld [vmem:[#allocation7 + $0x1a8] sm:$0xff]
        %v799 = vld [vmem:[#allocation7 + $0x1b0] sm:$0xff]
        %v800 = vld [vmem:[#allocation7 + $0x1b8] sm:$0xff]
        %v801 = vld [vmem:[#allocation7 + $0x1c0] sm:$0xff]
        %v802 = vld [vmem:[#allocation7 + $0x1c8] sm:$0xff]
        %v803 = vld [vmem:[#allocation7 + $0x1d0] sm:$0xff]
        %v804 = vld [vmem:[#allocation7 + $0x1d8] sm:$0xff]
        %v805 = vld [vmem:[#allocation7 + $0x1e0] sm:$0xff]
        %v806 = vld [vmem:[#allocation7 + $0x1e8] sm:$0xff]
        %v807 = vld [vmem:[#allocation7 + $0x1f0] sm:$0xff]
        %v808 = vld [vmem:[#allocation7 + $0x1f8] sm:$0xff]
        %v809 = vld [vmem:[#allocation7 + $0x200] sm:$0xff]
        %v810 = vld [vmem:[#allocation7 + $0x208] sm:$0xff]
        %v811 = vld [vmem:[#allocation7 + $0x210] sm:$0xff]
        %v812 = vld [vmem:[#allocation7 + $0x218] sm:$0xff]
        %v813 = vld [vmem:[#allocation7 + $0x220] sm:$0xff]
        %v814 = vld [vmem:[#allocation7 + $0x228] sm:$0xff]
        %v815 = vld [vmem:[#allocation7 + $0x230] sm:$0xff]
        %v816 = vld [vmem:[#allocation7 + $0x238] sm:$0xff]
        %v817 = vld [vmem:[#allocation7 + $0x240] sm:$0xff]
        %v818 = vld [vmem:[#allocation7 + $0x248] sm:$0xff]
        %v819 = vld [vmem:[#allocation7 + $0x250] sm:$0xff]
        %v820 = vld [vmem:[#allocation7 + $0x258] sm:$0xff]
        %v821 = vld [vmem:[#allocation7 + $0x260] sm:$0xff]
        %v822 = vld [vmem:[#allocation7 + $0x268] sm:$0xff]
        %v823 = vld [vmem:[#allocation7 + $0x270] sm:$0xff]
        %v824 = vld [vmem:[#allocation7 + $0x278] sm:$0xff]
        %v825 = vld [vmem:[#allocation7 + $0x280] sm:$0xff]
        %v826 = vld [vmem:[#allocation7 + $0x288] sm:$0xff]
        %v827 = vld [vmem:[#allocation7 + $0x290] sm:$0xff]
        %v828 = vld [vmem:[#allocation7 + $0x298] sm:$0xff]
        %v829 = vld [vmem:[#allocation7 + $0x2a0] sm:$0xff]
        %v830 = vld [vmem:[#allocation7 + $0x2a8] sm:$0xff]
        %v831 = vld [vmem:[#allocation7 + $0x2b0] sm:$0xff]
        %v832 = vld [vmem:[#allocation7 + $0x2b8] sm:$0xff]
        %v833 = vld [vmem:[#allocation7 + $0x2c0] sm:$0xff]
        %v834 = vld [vmem:[#allocation7 + $0x2c8] sm:$0xff]
        %v835 = vld [vmem:[#allocation7 + $0x2d0] sm:$0xff]
        %v836 = vld [vmem:[#allocation7 + $0x2d8] sm:$0xff]
        %v837 = vld [vmem:[#allocation7 + $0x2e0] sm:$0xff]
        %v838 = vld [vmem:[#allocation7 + $0x2e8] sm:$0xff]
        %v839 = vld [vmem:[#allocation7 + $0x2f0] sm:$0xff]
        %v840 = vld [vmem:[#allocation7 + $0x2f8] sm:$0xff]
        %v841 = vld [vmem:[#allocation8] sm:$0xff]
        %v842 = vld [vmem:[#allocation8 + $0x8] sm:$0xf]
        %v845 = vlaneseq
        %v846 = vshrl.u32 %v845, 7
        %v847 = vsub.s32 0, %v846
        %v848 = vrot.slane %v841, %v847
        %v849 = vlaneseq
        %v850 = vshrl.u32 %v849, 7
        %v851 = vsub.s32 1, %v850
        %v852 = vrot.slane %v841, %v851
        %v853 = vlaneseq
        %v854 = vshrl.u32 %v853, 7
        %v855 = vsub.s32 2, %v854
        %v856 = vrot.slane %v841, %v855
        %v857 = vlaneseq
        %v858 = vshrl.u32 %v857, 7
        %v859 = vsub.s32 3, %v858
        %v860 = vrot.slane %v841, %v859
        %v861 = vlaneseq
        %v862 = vshrl.u32 %v861, 7
        %v863 = vsub.s32 4, %v862
        %v864 = vrot.slane %v841, %v863
        %v865 = vlaneseq
        %v866 = vshrl.u32 %v865, 7
        %v867 = vsub.s32 5, %v866
        %v868 = vrot.slane %v841, %v867
        %v869 = vlaneseq
        %v870 = vshrl.u32 %v869, 7
        %v871 = vsub.s32 6, %v870
        %v872 = vrot.slane %v841, %v871
        %v873 = vlaneseq
        %v874 = vshrl.u32 %v873, 7
        %v875 = vsub.s32 7, %v874
        %v876 = vrot.slane %v841, %v875
        %v877 = vlaneseq
        %v878 = vshrl.u32 %v877, 7
        %v879 = vsub.s32 0, %v878
        %v880 = vrot.slane %v842, %v879
        %v881 = vlaneseq
        %v882 = vshrl.u32 %v881, 7
        %v883 = vsub.s32 1, %v882
        %v884 = vrot.slane %v842, %v883
        %v885 = vlaneseq
        %v886 = vshrl.u32 %v885, 7
        %v887 = vsub.s32 2, %v886
        %v888 = vrot.slane %v842, %v887
        %v889 = vlaneseq
        %v890 = vshrl.u32 %v889, 7
        %v891 = vsub.s32 3, %v890
        %v892 = vrot.slane %v842, %v891
        %v1001 = vunpack.c.l.b16 %v745
        %v1002 = vunpack.c.h.b16 %v745
        %v1003 = vunpack.c.l.b16 %v746
        %v1004 = vunpack.c.h.b16 %v746
        %v1005 = vunpack.c.l.b16 %v747
        %v1006 = vunpack.c.h.b16 %v747
        %v1007 = vunpack.c.l.b16 %v748
        %v1008 = vunpack.c.h.b16 %v748
        %v1009 = vunpack.c.l.b16 %v749
        %v1010 = vunpack.c.h.b16 %v749
        %v1011 = vunpack.c.l.b16 %v750
        %v1012 = vunpack.c.h.b16 %v750
        %v1013 = vunpack.c.l.b16 %v751
        %v1014 = vunpack.c.h.b16 %v751
        %v1015 = vunpack.c.l.b16 %v752
        %v1016 = vunpack.c.h.b16 %v752
        %v1017 = vunpack.c.l.b16 %v753
        %v1018 = vunpack.c.h.b16 %v753
        %v1019 = vunpack.c.l.b16 %v754
        %v1020 = vunpack.c.h.b16 %v754
        %v1021 = vunpack.c.l.b16 %v755
        %v1022 = vunpack.c.h.b16 %v755
        %v1023 = vunpack.c.l.b16 %v756
        %v1024 = vunpack.c.h.b16 %v756
        %v1025 = vunpack.c.l.b16 %v757
        %v1026 = vunpack.c.h.b16 %v757
        %v1027 = vunpack.c.l.b16 %v758
        %v1028 = vunpack.c.h.b16 %v758
        %v1029 = vunpack.c.l.b16 %v759
        %v1030 = vunpack.c.h.b16 %v759
        %v1031 = vunpack.c.l.b16 %v760
        %v1032 = vunpack.c.h.b16 %v760
        %v1033 = vunpack.c.l.b16 %v761
        %v1034 = vunpack.c.h.b16 %v761
        %v1035 = vunpack.c.l.b16 %v762
        %v1036 = vunpack.c.h.b16 %v762
        %v1037 = vunpack.c.l.b16 %v763
        %v1038 = vunpack.c.h.b16 %v763
        %v1039 = vunpack.c.l.b16 %v764
        %v1040 = vunpack.c.h.b16 %v764
        %v1041 = vunpack.c.l.b16 %v765
        %v1042 = vunpack.c.h.b16 %v765
        %v1043 = vunpack.c.l.b16 %v766
        %v1044 = vunpack.c.h.b16 %v766
        %v1045 = vunpack.c.l.b16 %v767
        %v1046 = vunpack.c.h.b16 %v767
        %v1047 = vunpack.c.l.b16 %v768
        %v1048 = vunpack.c.h.b16 %v768
        %v1049 = vunpack.c.l.b16 %v769
        %v1050 = vunpack.c.h.b16 %v769
        %v1051 = vunpack.c.l.b16 %v770
        %v1052 = vunpack.c.h.b16 %v770
        %v1053 = vunpack.c.l.b16 %v771
        %v1054 = vunpack.c.h.b16 %v771
        %v1055 = vunpack.c.l.b16 %v772
        %v1056 = vunpack.c.h.b16 %v772
        %v1057 = vunpack.c.l.b16 %v773
        %v1058 = vunpack.c.h.b16 %v773
        %v1059 = vunpack.c.l.b16 %v774
        %v1060 = vunpack.c.h.b16 %v774
        %v1061 = vunpack.c.l.b16 %v775
        %v1062 = vunpack.c.h.b16 %v775
        %v1063 = vunpack.c.l.b16 %v776
        %v1064 = vunpack.c.h.b16 %v776
        %v1065 = vunpack.c.l.b16 %v777
        %v1066 = vunpack.c.h.b16 %v777
        %v1067 = vunpack.c.l.b16 %v778
        %v1068 = vunpack.c.h.b16 %v778
        %v1069 = vunpack.c.l.b16 %v779
        %v1070 = vunpack.c.h.b16 %v779
        %v1071 = vunpack.c.l.b16 %v780
        %v1072 = vunpack.c.h.b16 %v780
        %v1073 = vunpack.c.l.b16 %v781
        %v1074 = vunpack.c.h.b16 %v781
        %v1075 = vunpack.c.l.b16 %v782
        %v1076 = vunpack.c.h.b16 %v782
        %v1077 = vunpack.c.l.b16 %v783
        %v1078 = vunpack.c.h.b16 %v783
        %v1079 = vunpack.c.l.b16 %v784
        %v1080 = vunpack.c.h.b16 %v784
        %v1081 = vunpack.c.l.b16 %v785
        %v1082 = vunpack.c.h.b16 %v785
        %v1083 = vunpack.c.l.b16 %v786
        %v1084 = vunpack.c.h.b16 %v786
        %v1085 = vunpack.c.l.b16 %v787
        %v1086 = vunpack.c.h.b16 %v787
        %v1087 = vunpack.c.l.b16 %v788
        %v1088 = vunpack.c.h.b16 %v788
        %v1089 = vunpack.c.l.b16 %v789
        %v1090 = vunpack.c.h.b16 %v789
        %v1091 = vunpack.c.l.b16 %v790
        %v1092 = vunpack.c.h.b16 %v790
        %v1093 = vunpack.c.l.b16 %v791
        %v1094 = vunpack.c.h.b16 %v791
        %v1095 = vunpack.c.l.b16 %v792
        %v1096 = vunpack.c.h.b16 %v792
        %v1097 = vunpack.c.l.b16 %v793
        %v1098 = vunpack.c.h.b16 %v793
        %v1099 = vunpack.c.l.b16 %v794
        %v1100 = vunpack.c.h.b16 %v794
        %v1101 = vunpack.c.l.b16 %v795
        %v1102 = vunpack.c.h.b16 %v795
        %v1103 = vunpack.c.l.b16 %v796
        %v1104 = vunpack.c.h.b16 %v796
        %v1105 = vunpack.c.l.b16 %v797
        %v1106 = vunpack.c.h.b16 %v797
        %v1107 = vunpack.c.l.b16 %v798
        %v1108 = vunpack.c.h.b16 %v798
        %v1109 = vunpack.c.l.b16 %v799
        %v1110 = vunpack.c.h.b16 %v799
        %v1111 = vunpack.c.l.b16 %v800
        %v1112 = vunpack.c.h.b16 %v800
        %v1113 = vunpack.c.l.b16 %v801
        %v1114 = vunpack.c.h.b16 %v801
        %v1115 = vunpack.c.l.b16 %v802
        %v1116 = vunpack.c.h.b16 %v802
        %v1117 = vunpack.c.l.b16 %v803
        %v1118 = vunpack.c.h.b16 %v803
        %v1119 = vunpack.c.l.b16 %v804
        %v1120 = vunpack.c.h.b16 %v804
        %v1121 = vunpack.c.l.b16 %v805
        %v1122 = vunpack.c.h.b16 %v805
        %v1123 = vunpack.c.l.b16 %v806
        %v1124 = vunpack.c.h.b16 %v806
        %v1125 = vunpack.c.l.b16 %v807
        %v1126 = vunpack.c.h.b16 %v807
        %v1127 = vunpack.c.l.b16 %v808
        %v1128 = vunpack.c.h.b16 %v808
        %v1129 = vunpack.c.l.b16 %v809
        %v1130 = vunpack.c.h.b16 %v809
        %v1131 = vunpack.c.l.b16 %v810
        %v1132 = vunpack.c.h.b16 %v810
        %v1133 = vunpack.c.l.b16 %v811
        %v1134 = vunpack.c.h.b16 %v811
        %v1135 = vunpack.c.l.b16 %v812
        %v1136 = vunpack.c.h.b16 %v812
        %v1137 = vunpack.c.l.b16 %v813
        %v1138 = vunpack.c.h.b16 %v813
        %v1139 = vunpack.c.l.b16 %v814
        %v1140 = vunpack.c.h.b16 %v814
        %v1141 = vunpack.c.l.b16 %v815
        %v1142 = vunpack.c.h.b16 %v815
        %v1143 = vunpack.c.l.b16 %v816
        %v1144 = vunpack.c.h.b16 %v816
        %v1145 = vunpack.c.l.b16 %v817
        %v1146 = vunpack.c.h.b16 %v817
        %v1147 = vunpack.c.l.b16 %v818
        %v1148 = vunpack.c.h.b16 %v818
        %v1149 = vunpack.c.l.b16 %v819
        %v1150 = vunpack.c.h.b16 %v819
        %v1151 = vunpack.c.l.b16 %v820
        %v1152 = vunpack.c.h.b16 %v820
        %v1153 = vunpack.c.l.b16 %v821
        %v1154 = vunpack.c.h.b16 %v821
        %v1155 = vunpack.c.l.b16 %v822
        %v1156 = vunpack.c.h.b16 %v822
        %v1157 = vunpack.c.l.b16 %v823
        %v1158 = vunpack.c.h.b16 %v823
        %v1159 = vunpack.c.l.b16 %v824
        %v1160 = vunpack.c.h.b16 %v824
        %v1161 = vunpack.c.l.b16 %v825
        %v1162 = vunpack.c.h.b16 %v825
        %v1163 = vunpack.c.l.b16 %v826
        %v1164 = vunpack.c.h.b16 %v826
        %v1165 = vunpack.c.l.b16 %v827
        %v1166 = vunpack.c.h.b16 %v827
        %v1167 = vunpack.c.l.b16 %v828
        %v1168 = vunpack.c.h.b16 %v828
        %v1169 = vunpack.c.l.b16 %v829
        %v1170 = vunpack.c.h.b16 %v829
        %v1171 = vunpack.c.l.b16 %v830
        %v1172 = vunpack.c.h.b16 %v830
        %v1173 = vunpack.c.l.b16 %v831
        %v1174 = vunpack.c.h.b16 %v831
        %v1175 = vunpack.c.l.b16 %v832
        %v1176 = vunpack.c.h.b16 %v832
        %v1177 = vunpack.c.l.b16 %v833
        %v1178 = vunpack.c.h.b16 %v833
        %v1179 = vunpack.c.l.b16 %v834
        %v1180 = vunpack.c.h.b16 %v834
        %v1181 = vunpack.c.l.b16 %v835
        %v1182 = vunpack.c.h.b16 %v835
        %v1183 = vunpack.c.l.b16 %v836
        %v1184 = vunpack.c.h.b16 %v836
        %v1185 = vunpack.c.l.b16 %v837
        %v1186 = vunpack.c.h.b16 %v837
        %v1187 = vunpack.c.l.b16 %v838
        %v1188 = vunpack.c.h.b16 %v838
        %v1189 = vunpack.c.l.b16 %v839
        %v1190 = vunpack.c.h.b16 %v839
        %v1191 = vunpack.c.l.b16 %v840
        %v1192 = vunpack.c.h.b16 %v840
        %v1193 = vpack.c.b16 %v1013, %v1001
        %v1194 = vpack.c.b16 %v1014, %v1002
        %v1195 = vpack.c.b16 %v1015, %v1003
        %v1196 = vpack.c.b16 %v1016, %v1004
        %v1197 = vpack.c.b16 %v1017, %v1005
        %v1198 = vpack.c.b16 %v1018, %v1006
        %v1199 = vpack.c.b16 %v1019, %v1007
        %v1200 = vpack.c.b16 %v1020, %v1008
        %v1201 = vpack.c.b16 %v1021, %v1009
        %v1202 = vpack.c.b16 %v1022, %v1010
        %v1203 = vpack.c.b16 %v1023, %v1011
        %v1204 = vpack.c.b16 %v1024, %v1012
        %v1205 = vpack.c.b16 %v1037, %v1025
        %v1206 = vpack.c.b16 %v1038, %v1026
        %v1207 = vpack.c.b16 %v1039, %v1027
        %v1208 = vpack.c.b16 %v1040, %v1028
        %v1209 = vpack.c.b16 %v1041, %v1029
        %v1210 = vpack.c.b16 %v1042, %v1030
        %v1211 = vpack.c.b16 %v1043, %v1031
        %v1212 = vpack.c.b16 %v1044, %v1032
        %v1213 = vpack.c.b16 %v1045, %v1033
        %v1214 = vpack.c.b16 %v1046, %v1034
        %v1215 = vpack.c.b16 %v1047, %v1035
        %v1216 = vpack.c.b16 %v1048, %v1036
        %v1217 = vpack.c.b16 %v1061, %v1049
        %v1218 = vpack.c.b16 %v1062, %v1050
        %v1219 = vpack.c.b16 %v1063, %v1051
        %v1220 = vpack.c.b16 %v1064, %v1052
        %v1221 = vpack.c.b16 %v1065, %v1053
        %v1222 = vpack.c.b16 %v1066, %v1054
        %v1223 = vpack.c.b16 %v1067, %v1055
        %v1224 = vpack.c.b16 %v1068, %v1056
        %v1225 = vpack.c.b16 %v1069, %v1057
        %v1226 = vpack.c.b16 %v1070, %v1058
        %v1227 = vpack.c.b16 %v1071, %v1059
        %v1228 = vpack.c.b16 %v1072, %v1060
        %v1229 = vpack.c.b16 %v1085, %v1073
        %v1230 = vpack.c.b16 %v1086, %v1074
        %v1231 = vpack.c.b16 %v1087, %v1075
        %v1232 = vpack.c.b16 %v1088, %v1076
        %v1233 = vpack.c.b16 %v1089, %v1077
        %v1234 = vpack.c.b16 %v1090, %v1078
        %v1235 = vpack.c.b16 %v1091, %v1079
        %v1236 = vpack.c.b16 %v1092, %v1080
        %v1237 = vpack.c.b16 %v1093, %v1081
        %v1238 = vpack.c.b16 %v1094, %v1082
        %v1239 = vpack.c.b16 %v1095, %v1083
        %v1240 = vpack.c.b16 %v1096, %v1084
        %v1241 = vpack.c.b16 %v1109, %v1097
        %v1242 = vpack.c.b16 %v1110, %v1098
        %v1243 = vpack.c.b16 %v1111, %v1099
        %v1244 = vpack.c.b16 %v1112, %v1100
        %v1245 = vpack.c.b16 %v1113, %v1101
        %v1246 = vpack.c.b16 %v1114, %v1102
        %v1247 = vpack.c.b16 %v1115, %v1103
        %v1248 = vpack.c.b16 %v1116, %v1104
        %v1249 = vpack.c.b16 %v1117, %v1105
        %v1250 = vpack.c.b16 %v1118, %v1106
        %v1251 = vpack.c.b16 %v1119, %v1107
        %v1252 = vpack.c.b16 %v1120, %v1108
        %v1253 = vpack.c.b16 %v1133, %v1121
        %v1254 = vpack.c.b16 %v1134, %v1122
        %v1255 = vpack.c.b16 %v1135, %v1123
        %v1256 = vpack.c.b16 %v1136, %v1124
        %v1257 = vpack.c.b16 %v1137, %v1125
        %v1258 = vpack.c.b16 %v1138, %v1126
        %v1259 = vpack.c.b16 %v1139, %v1127
        %v1260 = vpack.c.b16 %v1140, %v1128
        %v1261 = vpack.c.b16 %v1141, %v1129
        %v1262 = vpack.c.b16 %v1142, %v1130
        %v1263 = vpack.c.b16 %v1143, %v1131
        %v1264 = vpack.c.b16 %v1144, %v1132
        %v1265 = vpack.c.b16 %v1157, %v1145
        %v1266 = vpack.c.b16 %v1158, %v1146
        %v1267 = vpack.c.b16 %v1159, %v1147
        %v1268 = vpack.c.b16 %v1160, %v1148
        %v1269 = vpack.c.b16 %v1161, %v1149
        %v1270 = vpack.c.b16 %v1162, %v1150
        %v1271 = vpack.c.b16 %v1163, %v1151
        %v1272 = vpack.c.b16 %v1164, %v1152
        %v1273 = vpack.c.b16 %v1165, %v1153
        %v1274 = vpack.c.b16 %v1166, %v1154
        %v1275 = vpack.c.b16 %v1167, %v1155
        %v1276 = vpack.c.b16 %v1168, %v1156
        %v1277 = vpack.c.b16 %v1181, %v1169
        %v1278 = vpack.c.b16 %v1182, %v1170
        %v1279 = vpack.c.b16 %v1183, %v1171
        %v1280 = vpack.c.b16 %v1184, %v1172
        %v1281 = vpack.c.b16 %v1185, %v1173
        %v1282 = vpack.c.b16 %v1186, %v1174
        %v1283 = vpack.c.b16 %v1187, %v1175
        %v1284 = vpack.c.b16 %v1188, %v1176
        %v1285 = vpack.c.b16 %v1189, %v1177
        %v1286 = vpack.c.b16 %v1190, %v1178
        %v1287 = vpack.c.b16 %v1191, %v1179
        %v1288 = vpack.c.b16 %v1192, %v1180
        %1385 = vmatprep.subr.bf16.mxu0 %v1278
        %1386 = vmatpush1.bf16.msra.mxu0 %v1277
        %1387 = vmatprep.subr.bf16.mxu0 %v1266
        %1388 = vmatpush1.bf16.msra.mxu0 %v1265
        %1389 = vmatprep.subr.bf16.mxu0 %v1254
        %1390 = vmatpush1.bf16.msra.mxu0 %v1253
        %1391 = vmatprep.subr.bf16.mxu0 %v1242
        %1392 = vmatpush1.bf16.msra.mxu0 %v1241
        %1393 = vmatprep.subr.bf16.mxu0 %v1230
        %1394 = vmatpush1.bf16.msra.mxu0 %v1229
        %1395 = vmatprep.subr.bf16.mxu0 %v1218
        %1396 = vmatpush1.bf16.msra.mxu0 %v1217
        %1397 = vmatprep.subr.bf16.mxu0 %v1206
        %1398 = vmatpush1.bf16.msra.mxu0 %v1205
        %1399 = vmatprep.subr.bf16.mxu0 %v1194
        %1400 = vmatpush1.bf16.msra.mxu0 %v1193
        %1401 = vmatprep.subr.bf16.mxu0 0
        %1402 = vmatpush2.bf16.msra.mxu0 0
        %1403 = vmatprep.subr.bf16.mxu0 0
        %1404 = vmatpush2.bf16.msra.mxu0 0
        %1405 = vmatprep.subr.bf16.mxu0 0
        %1406 = vmatpush2.bf16.msra.mxu0 0
        %1407 = vmatprep.subr.bf16.mxu0 0
        %1408 = vmatpush2.bf16.msra.mxu0 0
        %1409 = vmatprep.subr.bf16.mxu0 0
        %1410 = vmatpush2.bf16.msra.mxu0 0
        %1411 = vmatprep.subr.bf16.mxu0 0
        %1412 = vmatpush2.bf16.msra.mxu0 0
        %1413 = vmatprep.subr.bf16.mxu0 0
        %1414 = vmatpush2.bf16.msra.mxu0 0
        %1415 = vmatprep.subr.bf16.mxu0 0
        %1416 = vmatpush2.bf16.msra.mxu0 0
        %1417 = vmatprep.mubr.bf16.mxu0 0
        %1418 = vmatmul.mubr.bf16.gmra.mxu0 %v744
        %v1419 = vpop.f32.mrf.mxu0
        %v1420 = vadd.f32 %v848, %v1419
        %v1421 = vpop.f32.mrf.mxu0
        %v1422 = vadd.f32 %v852, %v1421
        %v1423 = vpop.f32.mrf.mxu0
        %v1424 = vpop.f32.mrf.mxu0
        %1425 = vdwg.mxu0
        %1426 = vmatprep.subr.bf16.mxu0 %v1280
        %1427 = vmatpush1.bf16.msra.mxu0 %v1279
        %1428 = vmatprep.subr.bf16.mxu0 %v1268
        %1429 = vmatpush1.bf16.msra.mxu0 %v1267
        %1430 = vmatprep.subr.bf16.mxu0 %v1256
        %1431 = vmatpush1.bf16.msra.mxu0 %v1255
        %1432 = vmatprep.subr.bf16.mxu0 %v1244
        %1433 = vmatpush1.bf16.msra.mxu0 %v1243
        %1434 = vmatprep.subr.bf16.mxu0 %v1232
        %1435 = vmatpush1.bf16.msra.mxu0 %v1231
        %1436 = vmatprep.subr.bf16.mxu0 %v1220
        %1437 = vmatpush1.bf16.msra.mxu0 %v1219
        %1438 = vmatprep.subr.bf16.mxu0 %v1208
        %1439 = vmatpush1.bf16.msra.mxu0 %v1207
        %1440 = vmatprep.subr.bf16.mxu0 %v1196
        %1441 = vmatpush1.bf16.msra.mxu0 %v1195
        %1442 = vmatprep.subr.bf16.mxu0 0
        %1443 = vmatpush2.bf16.msra.mxu0 0
        %1444 = vmatprep.subr.bf16.mxu0 0
        %1445 = vmatpush2.bf16.msra.mxu0 0
        %1446 = vmatprep.subr.bf16.mxu0 0
        %1447 = vmatpush2.bf16.msra.mxu0 0
        %1448 = vmatprep.subr.bf16.mxu0 0
        %1449 = vmatpush2.bf16.msra.mxu0 0
        %1450 = vmatprep.subr.bf16.mxu0 0
        %1451 = vmatpush2.bf16.msra.mxu0 0
        %1452 = vmatprep.subr.bf16.mxu0 0
        %1453 = vmatpush2.bf16.msra.mxu0 0
        %1454 = vmatprep.subr.bf16.mxu0 0
        %1455 = vmatpush2.bf16.msra.mxu0 0
        %1456 = vmatprep.subr.bf16.mxu0 0
        %1457 = vmatpush2.bf16.msra.mxu0 0
        %1458 = vmatprep.mubr.bf16.mxu0 0
        %1459 = vmatmul.mubr.bf16.gmra.mxu0 %v744
        %v1460 = vpop.f32.mrf.mxu0
        %v1461 = vadd.f32 %v856, %v1460
        %v1462 = vpop.f32.mrf.mxu0
        %v1463 = vadd.f32 %v860, %v1462
        %v1464 = vpop.f32.mrf.mxu0
        %v1465 = vpop.f32.mrf.mxu0
        %1466 = vdwg.mxu0
        %1467 = vmatprep.subr.bf16.mxu0 %v1282
        %1468 = vmatpush1.bf16.msra.mxu0 %v1281
        %1469 = vmatprep.subr.bf16.mxu0 %v1270
        %1470 = vmatpush1.bf16.msra.mxu0 %v1269
        %1471 = vmatprep.subr.bf16.mxu0 %v1258
        %1472 = vmatpush1.bf16.msra.mxu0 %v1257
        %1473 = vmatprep.subr.bf16.mxu0 %v1246
        %1474 = vmatpush1.bf16.msra.mxu0 %v1245
        %1475 = vmatprep.subr.bf16.mxu0 %v1234
        %1476 = vmatpush1.bf16.msra.mxu0 %v1233
        %1477 = vmatprep.subr.bf16.mxu0 %v1222
        %1478 = vmatpush1.bf16.msra.mxu0 %v1221
        %1479 = vmatprep.subr.bf16.mxu0 %v1210
        %1480 = vmatpush1.bf16.msra.mxu0 %v1209
        %1481 = vmatprep.subr.bf16.mxu0 %v1198
        %1482 = vmatpush1.bf16.msra.mxu0 %v1197
        %1483 = vmatprep.subr.bf16.mxu0 0
        %1484 = vmatpush2.bf16.msra.mxu0 0
        %1485 = vmatprep.subr.bf16.mxu0 0
        %1486 = vmatpush2.bf16.msra.mxu0 0
        %1487 = vmatprep.subr.bf16.mxu0 0
        %1488 = vmatpush2.bf16.msra.mxu0 0
        %1489 = vmatprep.subr.bf16.mxu0 0
        %1490 = vmatpush2.bf16.msra.mxu0 0
        %1491 = vmatprep.subr.bf16.mxu0 0
        %1492 = vmatpush2.bf16.msra.mxu0 0
        %1493 = vmatprep.subr.bf16.mxu0 0
        %1494 = vmatpush2.bf16.msra.mxu0 0
        %1495 = vmatprep.subr.bf16.mxu0 0
        %1496 = vmatpush2.bf16.msra.mxu0 0
        %1497 = vmatprep.subr.bf16.mxu0 0
        %1498 = vmatpush2.bf16.msra.mxu0 0
        %1499 = vmatprep.mubr.bf16.mxu0 0
        %1500 = vmatmul.mubr.bf16.gmra.mxu0 %v744
        %v1501 = vpop.f32.mrf.mxu0
        %v1502 = vadd.f32 %v864, %v1501
        %v1503 = vpop.f32.mrf.mxu0
        %v1504 = vadd.f32 %v868, %v1503
        %v1505 = vpop.f32.mrf.mxu0
        %v1506 = vpop.f32.mrf.mxu0
        %1507 = vdwg.mxu0
        %1508 = vmatprep.subr.bf16.mxu0 %v1284
        %1509 = vmatpush1.bf16.msra.mxu0 %v1283
        %1510 = vmatprep.subr.bf16.mxu0 %v1272
        %1511 = vmatpush1.bf16.msra.mxu0 %v1271
        %1512 = vmatprep.subr.bf16.mxu0 %v1260
        %1513 = vmatpush1.bf16.msra.mxu0 %v1259
        %1514 = vmatprep.subr.bf16.mxu0 %v1248
        %1515 = vmatpush1.bf16.msra.mxu0 %v1247
        %1516 = vmatprep.subr.bf16.mxu0 %v1236
        %1517 = vmatpush1.bf16.msra.mxu0 %v1235
        %1518 = vmatprep.subr.bf16.mxu0 %v1224
        %1519 = vmatpush1.bf16.msra.mxu0 %v1223
        %1520 = vmatprep.subr.bf16.mxu0 %v1212
        %1521 = vmatpush1.bf16.msra.mxu0 %v1211
        %1522 = vmatprep.subr.bf16.mxu0 %v1200
        %1523 = vmatpush1.bf16.msra.mxu0 %v1199
        %1524 = vmatprep.subr.bf16.mxu0 0
        %1525 = vmatpush2.bf16.msra.mxu0 0
        %1526 = vmatprep.subr.bf16.mxu0 0
        %1527 = vmatpush2.bf16.msra.mxu0 0
        %1528 = vmatprep.subr.bf16.mxu0 0
        %1529 = vmatpush2.bf16.msra.mxu0 0
        %1530 = vmatprep.subr.bf16.mxu0 0
        %1531 = vmatpush2.bf16.msra.mxu0 0
        %1532 = vmatprep.subr.bf16.mxu0 0
        %1533 = vmatpush2.bf16.msra.mxu0 0
        %1534 = vmatprep.subr.bf16.mxu0 0
        %1535 = vmatpush2.bf16.msra.mxu0 0
        %1536 = vmatprep.subr.bf16.mxu0 0
        %1537 = vmatpush2.bf16.msra.mxu0 0
        %1538 = vmatprep.subr.bf16.mxu0 0
        %1539 = vmatpush2.bf16.msra.mxu0 0
        %1540 = vmatprep.mubr.bf16.mxu0 0
        %1541 = vmatmul.mubr.bf16.gmra.mxu0 %v744
        %v1542 = vpop.f32.mrf.mxu0
        %v1543 = vadd.f32 %v872, %v1542
        %v1544 = vpop.f32.mrf.mxu0
        %v1545 = vadd.f32 %v876, %v1544
        %v1546 = vpop.f32.mrf.mxu0
        %v1547 = vpop.f32.mrf.mxu0
        %1548 = vdwg.mxu0
        %1549 = vmatprep.subr.bf16.mxu0 %v1286
        %1550 = vmatpush1.bf16.msra.mxu0 %v1285
        %1551 = vmatprep.subr.bf16.mxu0 %v1274
        %1552 = vmatpush1.bf16.msra.mxu0 %v1273
        %1553 = vmatprep.subr.bf16.mxu0 %v1262
        %1554 = vmatpush1.bf16.msra.mxu0 %v1261
        %1555 = vmatprep.subr.bf16.mxu0 %v1250
        %1556 = vmatpush1.bf16.msra.mxu0 %v1249
        %1557 = vmatprep.subr.bf16.mxu0 %v1238
        %1558 = vmatpush1.bf16.msra.mxu0 %v1237
        %1559 = vmatprep.subr.bf16.mxu0 %v1226
        %1560 = vmatpush1.bf16.msra.mxu0 %v1225
        %1561 = vmatprep.subr.bf16.mxu0 %v1214
        %1562 = vmatpush1.bf16.msra.mxu0 %v1213
        %1563 = vmatprep.subr.bf16.mxu0 %v1202
        %1564 = vmatpush1.bf16.msra.mxu0 %v1201
        %1565 = vmatprep.subr.bf16.mxu0 0
        %1566 = vmatpush2.bf16.msra.mxu0 0
        %1567 = vmatprep.subr.bf16.mxu0 0
        %1568 = vmatpush2.bf16.msra.mxu0 0
        %1569 = vmatprep.subr.bf16.mxu0 0
        %1570 = vmatpush2.bf16.msra.mxu0 0
        %1571 = vmatprep.subr.bf16.mxu0 0
        %1572 = vmatpush2.bf16.msra.mxu0 0
        %1573 = vmatprep.subr.bf16.mxu0 0
        %1574 = vmatpush2.bf16.msra.mxu0 0
        %1575 = vmatprep.subr.bf16.mxu0 0
        %1576 = vmatpush2.bf16.msra.mxu0 0
        %1577 = vmatprep.subr.bf16.mxu0 0
        %1578 = vmatpush2.bf16.msra.mxu0 0
        %1579 = vmatprep.subr.bf16.mxu0 0
        %1580 = vmatpush2.bf16.msra.mxu0 0
        %1581 = vmatprep.mubr.bf16.mxu0 0
        %1582 = vmatmul.mubr.bf16.gmra.mxu0 %v744
        %v1583 = vpop.f32.mrf.mxu0
        %v1584 = vadd.f32 %v880, %v1583
        %v1585 = vpop.f32.mrf.mxu0
        %v1586 = vadd.f32 %v884, %v1585
        %v1587 = vpop.f32.mrf.mxu0
        %v1588 = vpop.f32.mrf.mxu0
        %1589 = vdwg.mxu0
        %1590 = vmatprep.subr.bf16.mxu0 %v1288
        %1591 = vmatpush1.bf16.msra.mxu0 %v1287
        %1592 = vmatprep.subr.bf16.mxu0 %v1276
        %1593 = vmatpush1.bf16.msra.mxu0 %v1275
        %1594 = vmatprep.subr.bf16.mxu0 %v1264
        %1595 = vmatpush1.bf16.msra.mxu0 %v1263
        %1596 = vmatprep.subr.bf16.mxu0 %v1252
        %1597 = vmatpush1.bf16.msra.mxu0 %v1251
        %1598 = vmatprep.subr.bf16.mxu0 %v1240
        %1599 = vmatpush1.bf16.msra.mxu0 %v1239
        %1600 = vmatprep.subr.bf16.mxu0 %v1228
        %1601 = vmatpush1.bf16.msra.mxu0 %v1227
        %1602 = vmatprep.subr.bf16.mxu0 %v1216
        %1603 = vmatpush1.bf16.msra.mxu0 %v1215
        %1604 = vmatprep.subr.bf16.mxu0 %v1204
        %1605 = vmatpush1.bf16.msra.mxu0 %v1203
        %1606 = vmatprep.subr.bf16.mxu0 0
        %1607 = vmatpush2.bf16.msra.mxu0 0
        %1608 = vmatprep.subr.bf16.mxu0 0
        %1609 = vmatpush2.bf16.msra.mxu0 0
        %1610 = vmatprep.subr.bf16.mxu0 0
        %1611 = vmatpush2.bf16.msra.mxu0 0
        %1612 = vmatprep.subr.bf16.mxu0 0
        %1613 = vmatpush2.bf16.msra.mxu0 0
        %1614 = vmatprep.subr.bf16.mxu0 0
        %1615 = vmatpush2.bf16.msra.mxu0 0
        %1616 = vmatprep.subr.bf16.mxu0 0
        %1617 = vmatpush2.bf16.msra.mxu0 0
        %1618 = vmatprep.subr.bf16.mxu0 0
        %1619 = vmatpush2.bf16.msra.mxu0 0
        %1620 = vmatprep.subr.bf16.mxu0 0
        %1621 = vmatpush2.bf16.msra.mxu0 0
        %1622 = vmatprep.mubr.bf16.mxu0 0
        %1623 = vmatmul.mubr.bf16.gmra.mxu0 %v744
        %v1624 = vpop.f32.mrf.mxu0
        %v1625 = vadd.f32 %v888, %v1624
        %v1626 = vpop.f32.mrf.mxu0
        %v1627 = vadd.f32 %v892, %v1626
        %v1628 = vpop.f32.mrf.mxu0
        %v1629 = vpop.f32.mrf.mxu0
        %1630 = vdwg.mxu0
        %v1631 = vpack.c.bf16 %v1420, %v1420
        %v1632 = vpack.c.bf16 %v1422, %v1422
        %v1633 = vpack.c.bf16 %v1461, %v1461
        %v1634 = vpack.c.bf16 %v1463, %v1463
        %v1635 = vpack.c.bf16 %v1502, %v1502
        %v1636 = vpack.c.bf16 %v1504, %v1504
        %v1637 = vpack.c.bf16 %v1543, %v1543
        %v1638 = vpack.c.bf16 %v1545, %v1545
        %1639 = vmatprep.subr.bf16.mxu0 0
        %1640 = vmatpush1.bf16.xpose.msra.mxu0 0
        %1641 = vmatprep.subr.bf16.mxu0 0
        %1642 = vmatpush1.bf16.xpose.msra.mxu0 0
        %1643 = vmatprep.subr.bf16.mxu0 0
        %1644 = vmatpush1.bf16.xpose.msra.mxu0 0
        %1645 = vmatprep.subr.bf16.mxu0 0
        %1646 = vmatpush1.bf16.xpose.msra.mxu0 0
        %1647 = vmatprep.subr.bf16.mxu0 0
        %1648 = vmatpush1.bf16.xpose.msra.mxu0 0
        %1649 = vmatprep.subr.bf16.mxu0 0
        %1650 = vmatpush1.bf16.xpose.msra.mxu0 0
        %1651 = vmatprep.subr.bf16.mxu0 0
        %1652 = vmatpush1.bf16.xpose.msra.mxu0 0
        %1653 = vmatprep.subr.bf16.mxu0 0
        %1654 = vmatpush1.bf16.xpose.msra.mxu0 %v1635
        %1655 = vmatprep.subr.bf16.mxu0 0
        %1656 = vmatpush2.bf16.xpose.msra.mxu0 0
        %1657 = vmatprep.subr.bf16.mxu0 0
        %1658 = vmatpush2.bf16.xpose.msra.mxu0 0
        %1659 = vmatprep.subr.bf16.mxu0 0
        %1660 = vmatpush2.bf16.xpose.msra.mxu0 0
        %1661 = vmatprep.subr.bf16.mxu0 0
        %1662 = vmatpush2.bf16.xpose.msra.mxu0 0
        %1663 = vmatprep.subr.bf16.mxu0 0
        %1664 = vmatpush2.bf16.xpose.msra.mxu0 0
        %1665 = vmatprep.subr.bf16.mxu0 0
        %1666 = vmatpush2.bf16.xpose.msra.mxu0 0
        %1667 = vmatprep.subr.bf16.mxu0 0
        %1668 = vmatpush2.bf16.xpose.msra.mxu0 0
        %1669 = vmatprep.subr.bf16.mxu0 0
        %1670 = vmatpush2.bf16.xpose.msra.mxu0 0
        %1671 = vmatprep.mubr.bf16.mxu0 0
        %1672 = vmatmul.mubr.bf16.gmra.mxu0 %v1631
        %v1673 = vpop.f32.mrf.mxu0
        %v1674 = vadd.f32 %v710, %v1673
        %v1675 = vpop.f32.mrf.mxu0
        %v1676 = vpop.f32.mrf.mxu0
        %v1677 = vpop.f32.mrf.mxu0
        %1678 = vdwg.mxu0
        %1679 = vmatprep.subr.bf16.mxu0 0
        %1680 = vmatpush1.bf16.xpose.msra.mxu0 0
        %1681 = vmatprep.subr.bf16.mxu0 0
        %1682 = vmatpush1.bf16.xpose.msra.mxu0 0
        %1683 = vmatprep.subr.bf16.mxu0 0
        %1684 = vmatpush1.bf16.xpose.msra.mxu0 0
        %1685 = vmatprep.subr.bf16.mxu0 0
        %1686 = vmatpush1.bf16.xpose.msra.mxu0 0
        %1687 = vmatprep.subr.bf16.mxu0 0
        %1688 = vmatpush1.bf16.xpose.msra.mxu0 0
        %1689 = vmatprep.subr.bf16.mxu0 0
        %1690 = vmatpush1.bf16.xpose.msra.mxu0 0
        %1691 = vmatprep.subr.bf16.mxu0 0
        %1692 = vmatpush1.bf16.xpose.msra.mxu0 0
        %1693 = vmatprep.subr.bf16.mxu0 0
        %1694 = vmatpush1.bf16.xpose.msra.mxu0 %v1636
        %1695 = vmatprep.subr.bf16.mxu0 0
        %1696 = vmatpush2.bf16.xpose.msra.mxu0 0
        %1697 = vmatprep.subr.bf16.mxu0 0
        %1698 = vmatpush2.bf16.xpose.msra.mxu0 0
        %1699 = vmatprep.subr.bf16.mxu0 0
        %1700 = vmatpush2.bf16.xpose.msra.mxu0 0
        %1701 = vmatprep.subr.bf16.mxu0 0
        %1702 = vmatpush2.bf16.xpose.msra.mxu0 0
        %1703 = vmatprep.subr.bf16.mxu0 0
        %1704 = vmatpush2.bf16.xpose.msra.mxu0 0
        %1705 = vmatprep.subr.bf16.mxu0 0
        %1706 = vmatpush2.bf16.xpose.msra.mxu0 0
        %1707 = vmatprep.subr.bf16.mxu0 0
        %1708 = vmatpush2.bf16.xpose.msra.mxu0 0
        %1709 = vmatprep.subr.bf16.mxu0 0
        %1710 = vmatpush2.bf16.xpose.msra.mxu0 0
        %1711 = vmatprep.mubr.bf16.mxu0 0
        %1712 = vmatmul.mubr.bf16.gmra.mxu0 %v1632
        %v1713 = vpop.f32.mrf.mxu0
        %v1714 = vadd.f32 %v711, %v1713
        %v1715 = vpop.f32.mrf.mxu0
        %v1716 = vpop.f32.mrf.mxu0
        %v1717 = vpop.f32.mrf.mxu0
        %1718 = vdwg.mxu0
        %1719 = vmatprep.subr.bf16.mxu0 0
        %1720 = vmatpush1.bf16.xpose.msra.mxu0 0
        %1721 = vmatprep.subr.bf16.mxu0 0
        %1722 = vmatpush1.bf16.xpose.msra.mxu0 0
        %1723 = vmatprep.subr.bf16.mxu0 0
        %1724 = vmatpush1.bf16.xpose.msra.mxu0 0
        %1725 = vmatprep.subr.bf16.mxu0 0
        %1726 = vmatpush1.bf16.xpose.msra.mxu0 0
        %1727 = vmatprep.subr.bf16.mxu0 0
        %1728 = vmatpush1.bf16.xpose.msra.mxu0 0
        %1729 = vmatprep.subr.bf16.mxu0 0
        %1730 = vmatpush1.bf16.xpose.msra.mxu0 0
        %1731 = vmatprep.subr.bf16.mxu0 0
        %1732 = vmatpush1.bf16.xpose.msra.mxu0 0
        %1733 = vmatprep.subr.bf16.mxu0 0
        %1734 = vmatpush1.bf16.xpose.msra.mxu0 %v1637
        %1735 = vmatprep.subr.bf16.mxu0 0
        %1736 = vmatpush2.bf16.xpose.msra.mxu0 0
        %1737 = vmatprep.subr.bf16.mxu0 0
        %1738 = vmatpush2.bf16.xpose.msra.mxu0 0
        %1739 = vmatprep.subr.bf16.mxu0 0
        %1740 = vmatpush2.bf16.xpose.msra.mxu0 0
        %1741 = vmatprep.subr.bf16.mxu0 0
        %1742 = vmatpush2.bf16.xpose.msra.mxu0 0
        %1743 = vmatprep.subr.bf16.mxu0 0
        %1744 = vmatpush2.bf16.xpose.msra.mxu0 0
        %1745 = vmatprep.subr.bf16.mxu0 0
        %1746 = vmatpush2.bf16.xpose.msra.mxu0 0
        %1747 = vmatprep.subr.bf16.mxu0 0
        %1748 = vmatpush2.bf16.xpose.msra.mxu0 0
        %1749 = vmatprep.subr.bf16.mxu0 0
        %1750 = vmatpush2.bf16.xpose.msra.mxu0 0
        %1751 = vmatprep.mubr.bf16.mxu0 0
        %1752 = vmatmul.mubr.bf16.gmra.mxu0 %v1633
        %v1753 = vpop.f32.mrf.mxu0
        %v1754 = vadd.f32 %v712, %v1753
        %v1755 = vpop.f32.mrf.mxu0
        %v1756 = vpop.f32.mrf.mxu0
        %v1757 = vpop.f32.mrf.mxu0
        %1758 = vdwg.mxu0
        %1759 = vmatprep.subr.bf16.mxu0 0
        %1760 = vmatpush1.bf16.xpose.msra.mxu0 0
        %1761 = vmatprep.subr.bf16.mxu0 0
        %1762 = vmatpush1.bf16.xpose.msra.mxu0 0
        %1763 = vmatprep.subr.bf16.mxu0 0
        %1764 = vmatpush1.bf16.xpose.msra.mxu0 0
        %1765 = vmatprep.subr.bf16.mxu0 0
        %1766 = vmatpush1.bf16.xpose.msra.mxu0 0
        %1767 = vmatprep.subr.bf16.mxu0 0
        %1768 = vmatpush1.bf16.xpose.msra.mxu0 0
        %1769 = vmatprep.subr.bf16.mxu0 0
        %1770 = vmatpush1.bf16.xpose.msra.mxu0 0
        %1771 = vmatprep.subr.bf16.mxu0 0
        %1772 = vmatpush1.bf16.xpose.msra.mxu0 0
        %1773 = vmatprep.subr.bf16.mxu0 0
        %1774 = vmatpush1.bf16.xpose.msra.mxu0 %v1638
        %1775 = vmatprep.subr.bf16.mxu0 0
        %1776 = vmatpush2.bf16.xpose.msra.mxu0 0
        %1777 = vmatprep.subr.bf16.mxu0 0
        %1778 = vmatpush2.bf16.xpose.msra.mxu0 0
        %1779 = vmatprep.subr.bf16.mxu0 0
        %1780 = vmatpush2.bf16.xpose.msra.mxu0 0
        %1781 = vmatprep.subr.bf16.mxu0 0
        %1782 = vmatpush2.bf16.xpose.msra.mxu0 0
        %1783 = vmatprep.subr.bf16.mxu0 0
        %1784 = vmatpush2.bf16.xpose.msra.mxu0 0
        %1785 = vmatprep.subr.bf16.mxu0 0
        %1786 = vmatpush2.bf16.xpose.msra.mxu0 0
        %1787 = vmatprep.subr.bf16.mxu0 0
        %1788 = vmatpush2.bf16.xpose.msra.mxu0 0
        %1789 = vmatprep.subr.bf16.mxu0 0
        %1790 = vmatpush2.bf16.xpose.msra.mxu0 0
        %1791 = vmatprep.mubr.bf16.mxu0 0
        %1792 = vmatmul.mubr.bf16.gmra.mxu0 %v1634
        %v1793 = vpop.f32.mrf.mxu0
        %v1794 = vadd.f32 %v713, %v1793
        %v1795 = vpop.f32.mrf.mxu0
        %v1796 = vpop.f32.mrf.mxu0
        %v1797 = vpop.f32.mrf.mxu0
        %1798 = vdwg.mxu0
        %vm1799 = vcmask 64512
        %v1800 = vsel %vm1799, %v1674, -inf
        %1801 = vmax.xlane.f32.xlu0 %v1800
        %v1802 = vpop.xlane.xlu0 %1801
        %v1803 = vsel %vm1799, %v1714, -inf
        %1804 = vmax.xlane.f32.xlu0 %v1803
        %v1805 = vpop.xlane.xlu0 %1804
        %v1806 = vsel %vm1799, %v1754, -inf
        %1807 = vmax.xlane.f32.xlu0 %v1806
        %v1808 = vpop.xlane.xlu0 %1807
        %v1809 = vsel %vm1799, %v1794, -inf
        %1810 = vmax.xlane.f32.xlu0 %v1809
        %v1811 = vpop.xlane.xlu0 %1810
        %v1812 = vsub.f32 %v1674, %v1802
        %v1813 = vsub.f32 %v1714, %v1805
        %v1814 = vsub.f32 %v1754, %v1808
        %v1815 = vsub.f32 %v1794, %v1811
        %v1816 = vmul.f32 %v1812, 1.442695
        %v1817 = vpow.pop %v1816
        %v1818 = vmul.f32 %v1813, 1.442695
        %v1819 = vpow.pop %v1818
        %v1820 = vmul.f32 %v1814, 1.442695
        %v1821 = vpow.pop %v1820
        %v1822 = vmul.f32 %v1815, 1.442695
        %v1823 = vpow.pop %v1822
        %v1824 = vsel %vm1799, %v1817, 0.0
        %1825 = vadd.xlane.f32.xlu0 %v1824
        %v1826 = vpop.xlane.xlu0 %1825
        %v1827 = vsel %vm1799, %v1819, 0.0
        %1828 = vadd.xlane.f32.xlu0 %v1827
        %v1829 = vpop.xlane.xlu0 %1828
        %v1830 = vsel %vm1799, %v1821, 0.0
        %1831 = vadd.xlane.f32.xlu0 %v1830
        %v1832 = vpop.xlane.xlu0 %1831
        %v1833 = vsel %vm1799, %v1823, 0.0
        %1834 = vadd.xlane.f32.xlu0 %v1833
        %v1835 = vpop.xlane.xlu0 %1834
        %v1836 = vrcp.pop %v1826
        %v1837 = vrcp.pop %v1829
        %v1838 = vrcp.pop %v1832
        %v1839 = vrcp.pop %v1835
        %v1840 = vmul.f32 %v1817, %v1836
        %v1841 = vmul.f32 %v1819, %v1837
        %v1842 = vmul.f32 %v1821, %v1838
        %v1843 = vmul.f32 %v1823, %v1839
        %v1844 = vpack.c.bf16 %v1840, %v1840
        %v1845 = vpack.c.bf16 %v1841, %v1841
        %v1846 = vpack.c.bf16 %v1842, %v1842
        %v1847 = vpack.c.bf16 %v1843, %v1843
        %v1848 = vpack.c.bf16 %v1584, %v1584
        %v1849 = vpack.c.bf16 %v1586, %v1586
        %v1850 = vpack.c.bf16 %v1625, %v1625
        %v1851 = vpack.c.bf16 %v1627, %v1627
        %v1853 = vsel %vm1799, %v1844, 0
        %vm1855 = vcmask 1043456
        %v1857 = vsel %vm1855, %v1848, 0
        %1859 = vmatprep.subr.bf16.mxu0 0
        %1860 = vmatpush1.bf16.msra.mxu0 0
        %1861 = vmatprep.subr.bf16.mxu0 0
        %1862 = vmatpush1.bf16.msra.mxu0 0
        %1863 = vmatprep.subr.bf16.mxu0 0
        %1864 = vmatpush1.bf16.msra.mxu0 0
        %1865 = vmatprep.subr.bf16.mxu0 0
        %1866 = vmatpush1.bf16.msra.mxu0 0
        %1867 = vmatprep.subr.bf16.mxu0 0
        %1868 = vmatpush1.bf16.msra.mxu0 0
        %1869 = vmatprep.subr.bf16.mxu0 0
        %1870 = vmatpush1.bf16.msra.mxu0 0
        %1871 = vmatprep.subr.bf16.mxu0 0
        %1872 = vmatpush1.bf16.msra.mxu0 0
        %1873 = vmatprep.subr.bf16.mxu0 0
        %1874 = vmatpush1.bf16.msra.mxu0 %v1857
        %1875 = vmatprep.subr.bf16.mxu0 0
        %1876 = vmatpush2.bf16.msra.mxu0 0
        %1877 = vmatprep.subr.bf16.mxu0 0
        %1878 = vmatpush2.bf16.msra.mxu0 0
        %1879 = vmatprep.subr.bf16.mxu0 0
        %1880 = vmatpush2.bf16.msra.mxu0 0
        %1881 = vmatprep.subr.bf16.mxu0 0
        %1882 = vmatpush2.bf16.msra.mxu0 0
        %1883 = vmatprep.subr.bf16.mxu0 0
        %1884 = vmatpush2.bf16.msra.mxu0 0
        %1885 = vmatprep.subr.bf16.mxu0 0
        %1886 = vmatpush2.bf16.msra.mxu0 0
        %1887 = vmatprep.subr.bf16.mxu0 0
        %1888 = vmatpush2.bf16.msra.mxu0 0
        %1889 = vmatprep.subr.bf16.mxu0 0
        %1890 = vmatpush2.bf16.msra.mxu0 0
        %1891 = vmatprep.mubr.bf16.mxu0 0
        %1892 = vmatmul.mubr.bf16.gmra.mxu0 %v1853
        %v1893 = vpop.f32.mrf.mxu0
        %v1894 = vadd.f32 0.0, %v1893
        %v1895 = vpop.f32.mrf.mxu0
        %v1896 = vpop.f32.mrf.mxu0
        %v1897 = vpop.f32.mrf.mxu0
        %1898 = vdwg.mxu0
        %v1900 = vsel %vm1799, %v1845, 0
        %v1903 = vsel %vm1855, %v1849, 0
        %1905 = vmatprep.subr.bf16.mxu0 0
        %1906 = vmatpush1.bf16.msra.mxu0 0
        %1907 = vmatprep.subr.bf16.mxu0 0
        %1908 = vmatpush1.bf16.msra.mxu0 0
        %1909 = vmatprep.subr.bf16.mxu0 0
        %1910 = vmatpush1.bf16.msra.mxu0 0
        %1911 = vmatprep.subr.bf16.mxu0 0
        %1912 = vmatpush1.bf16.msra.mxu0 0
        %1913 = vmatprep.subr.bf16.mxu0 0
        %1914 = vmatpush1.bf16.msra.mxu0 0
        %1915 = vmatprep.subr.bf16.mxu0 0
        %1916 = vmatpush1.bf16.msra.mxu0 0
        %1917 = vmatprep.subr.bf16.mxu0 0
        %1918 = vmatpush1.bf16.msra.mxu0 0
        %1919 = vmatprep.subr.bf16.mxu0 0
        %1920 = vmatpush1.bf16.msra.mxu0 %v1903
        %1921 = vmatprep.subr.bf16.mxu0 0
        %1922 = vmatpush2.bf16.msra.mxu0 0
        %1923 = vmatprep.subr.bf16.mxu0 0
        %1924 = vmatpush2.bf16.msra.mxu0 0
        %1925 = vmatprep.subr.bf16.mxu0 0
        %1926 = vmatpush2.bf16.msra.mxu0 0
        %1927 = vmatprep.subr.bf16.mxu0 0
        %1928 = vmatpush2.bf16.msra.mxu0 0
        %1929 = vmatprep.subr.bf16.mxu0 0
        %1930 = vmatpush2.bf16.msra.mxu0 0
        %1931 = vmatprep.subr.bf16.mxu0 0
        %1932 = vmatpush2.bf16.msra.mxu0 0
        %1933 = vmatprep.subr.bf16.mxu0 0
        %1934 = vmatpush2.bf16.msra.mxu0 0
        %1935 = vmatprep.subr.bf16.mxu0 0
        %1936 = vmatpush2.bf16.msra.mxu0 0
        %1937 = vmatprep.mubr.bf16.mxu0 0
        %1938 = vmatmul.mubr.bf16.gmra.mxu0 %v1900
        %v1939 = vpop.f32.mrf.mxu0
        %v1940 = vadd.f32 0.0, %v1939
        %v1941 = vpop.f32.mrf.mxu0
        %v1942 = vpop.f32.mrf.mxu0
        %v1943 = vpop.f32.mrf.mxu0
        %1944 = vdwg.mxu0
        %v1946 = vsel %vm1799, %v1846, 0
        %v1949 = vsel %vm1855, %v1850, 0
        %1951 = vmatprep.subr.bf16.mxu0 0
        %1952 = vmatpush1.bf16.msra.mxu0 0
        %1953 = vmatprep.subr.bf16.mxu0 0
        %1954 = vmatpush1.bf16.msra.mxu0 0
        %1955 = vmatprep.subr.bf16.mxu0 0
        %1956 = vmatpush1.bf16.msra.mxu0 0
        %1957 = vmatprep.subr.bf16.mxu0 0
        %1958 = vmatpush1.bf16.msra.mxu0 0
        %1959 = vmatprep.subr.bf16.mxu0 0
        %1960 = vmatpush1.bf16.msra.mxu0 0
        %1961 = vmatprep.subr.bf16.mxu0 0
        %1962 = vmatpush1.bf16.msra.mxu0 0
        %1963 = vmatprep.subr.bf16.mxu0 0
        %1964 = vmatpush1.bf16.msra.mxu0 0
        %1965 = vmatprep.subr.bf16.mxu0 0
        %1966 = vmatpush1.bf16.msra.mxu0 %v1949
        %1967 = vmatprep.subr.bf16.mxu0 0
        %1968 = vmatpush2.bf16.msra.mxu0 0
        %1969 = vmatprep.subr.bf16.mxu0 0
        %1970 = vmatpush2.bf16.msra.mxu0 0
        %1971 = vmatprep.subr.bf16.mxu0 0
        %1972 = vmatpush2.bf16.msra.mxu0 0
        %1973 = vmatprep.subr.bf16.mxu0 0
        %1974 = vmatpush2.bf16.msra.mxu0 0
        %1975 = vmatprep.subr.bf16.mxu0 0
        %1976 = vmatpush2.bf16.msra.mxu0 0
        %1977 = vmatprep.subr.bf16.mxu0 0
        %1978 = vmatpush2.bf16.msra.mxu0 0
        %1979 = vmatprep.subr.bf16.mxu0 0
        %1980 = vmatpush2.bf16.msra.mxu0 0
        %1981 = vmatprep.subr.bf16.mxu0 0
        %1982 = vmatpush2.bf16.msra.mxu0 0
        %1983 = vmatprep.mubr.bf16.mxu0 0
        %1984 = vmatmul.mubr.bf16.gmra.mxu0 %v1946
        %v1985 = vpop.f32.mrf.mxu0
        %v1986 = vadd.f32 0.0, %v1985
        %v1987 = vpop.f32.mrf.mxu0
        %v1988 = vpop.f32.mrf.mxu0
        %v1989 = vpop.f32.mrf.mxu0
        %1990 = vdwg.mxu0
        %v1992 = vsel %vm1799, %v1847, 0
        %v1995 = vsel %vm1855, %v1851, 0
        %1997 = vmatprep.subr.bf16.mxu0 0
        %1998 = vmatpush1.bf16.msra.mxu0 0
        %1999 = vmatprep.subr.bf16.mxu0 0
        %2000 = vmatpush1.bf16.msra.mxu0 0
        %2001 = vmatprep.subr.bf16.mxu0 0
        %2002 = vmatpush1.bf16.msra.mxu0 0
        %2003 = vmatprep.subr.bf16.mxu0 0
        %2004 = vmatpush1.bf16.msra.mxu0 0
        %2005 = vmatprep.subr.bf16.mxu0 0
        %2006 = vmatpush1.bf16.msra.mxu0 0
        %2007 = vmatprep.subr.bf16.mxu0 0
        %2008 = vmatpush1.bf16.msra.mxu0 0
        %2009 = vmatprep.subr.bf16.mxu0 0
        %2010 = vmatpush1.bf16.msra.mxu0 0
        %2011 = vmatprep.subr.bf16.mxu0 0
        %2012 = vmatpush1.bf16.msra.mxu0 %v1995
        %2013 = vmatprep.subr.bf16.mxu0 0
        %2014 = vmatpush2.bf16.msra.mxu0 0
        %2015 = vmatprep.subr.bf16.mxu0 0
        %2016 = vmatpush2.bf16.msra.mxu0 0
        %2017 = vmatprep.subr.bf16.mxu0 0
        %2018 = vmatpush2.bf16.msra.mxu0 0
        %2019 = vmatprep.subr.bf16.mxu0 0
        %2020 = vmatpush2.bf16.msra.mxu0 0
        %2021 = vmatprep.subr.bf16.mxu0 0
        %2022 = vmatpush2.bf16.msra.mxu0 0
        %2023 = vmatprep.subr.bf16.mxu0 0
        %2024 = vmatpush2.bf16.msra.mxu0 0
        %2025 = vmatprep.subr.bf16.mxu0 0
        %2026 = vmatpush2.bf16.msra.mxu0 0
        %2027 = vmatprep.subr.bf16.mxu0 0
        %2028 = vmatpush2.bf16.msra.mxu0 0
        %2029 = vmatprep.mubr.bf16.mxu0 0
        %2030 = vmatmul.mubr.bf16.gmra.mxu0 %v1992
        %v2031 = vpop.f32.mrf.mxu0
        %v2032 = vadd.f32 0.0, %v2031
        %v2033 = vpop.f32.mrf.mxu0
        %v2034 = vpop.f32.mrf.mxu0
        %v2035 = vpop.f32.mrf.mxu0
        %2036 = vdwg.mxu0
        %v2037 = vpack.c.bf16 %v1894, %v1894
        %v2038 = vpack.c.bf16 %v1940, %v1940
        %v2039 = vpack.c.bf16 %v1986, %v1986
        %v2040 = vpack.c.bf16 %v2032, %v2032
        %v2041 = vld [vmem:[#allocation10] sm:$0xf]
        %v2042 = vld [vmem:[#allocation10 + $0x4] sm:$0xf]
        %v2043 = vld [vmem:[#allocation10 + $0x8] sm:$0xf]
        %v2044 = vld [vmem:[#allocation10 + $0xc] sm:$0xf]
        %v2045 = vld [vmem:[#allocation10 + $0x10] sm:$0xf]
        %v2046 = vld [vmem:[#allocation10 + $0x14] sm:$0xf]
        %v2047 = vld [vmem:[#allocation10 + $0x18] sm:$0xf]
        %v2048 = vld [vmem:[#allocation10 + $0x1c] sm:$0xf]
        %v2049 = vld [vmem:[#allocation10 + $0x20] sm:$0xf]
        %v2050 = vld [vmem:[#allocation10 + $0x24] sm:$0xf]
        %v2051 = vld [vmem:[#allocation10 + $0x28] sm:$0xf]
        %v2052 = vld [vmem:[#allocation10 + $0x2c] sm:$0xf]
        %v2053 = vld [vmem:[#allocation10 + $0x30] sm:$0xf]
        %v2054 = vld [vmem:[#allocation10 + $0x34] sm:$0xf]
        %v2055 = vld [vmem:[#allocation10 + $0x38] sm:$0xf]
        %v2056 = vld [vmem:[#allocation10 + $0x3c] sm:$0xf]
        %v2057 = vld [vmem:[#allocation10 + $0x40] sm:$0xf]
        %v2058 = vld [vmem:[#allocation10 + $0x44] sm:$0xf]
        %v2059 = vld [vmem:[#allocation10 + $0x48] sm:$0xf]
        %v2060 = vld [vmem:[#allocation10 + $0x4c] sm:$0xf]
        %v2061 = vld [vmem:[#allocation10 + $0x50] sm:$0xf]
        %v2062 = vld [vmem:[#allocation10 + $0x54] sm:$0xf]
        %v2063 = vld [vmem:[#allocation10 + $0x58] sm:$0xf]
        %v2064 = vld [vmem:[#allocation10 + $0x5c] sm:$0xf]
        %v2065 = vld [vmem:[#allocation10 + $0x60] sm:$0xf]
        %v2066 = vld [vmem:[#allocation10 + $0x64] sm:$0xf]
        %v2067 = vld [vmem:[#allocation10 + $0x68] sm:$0xf]
        %v2068 = vld [vmem:[#allocation10 + $0x6c] sm:$0xf]
        %v2069 = vld [vmem:[#allocation10 + $0x70] sm:$0xf]
        %v2070 = vld [vmem:[#allocation10 + $0x74] sm:$0xf]
        %v2071 = vld [vmem:[#allocation10 + $0x78] sm:$0xf]
        %v2072 = vld [vmem:[#allocation10 + $0x7c] sm:$0xf]
        %v2073 = vld [vmem:[#allocation10 + $0x80] sm:$0xf]
        %v2074 = vld [vmem:[#allocation10 + $0x84] sm:$0xf]
        %v2075 = vld [vmem:[#allocation10 + $0x88] sm:$0xf]
        %v2076 = vld [vmem:[#allocation10 + $0x8c] sm:$0xf]
        %v2077 = vld [vmem:[#allocation10 + $0x90] sm:$0xf]
        %v2078 = vld [vmem:[#allocation10 + $0x94] sm:$0xf]
        %v2079 = vld [vmem:[#allocation10 + $0x98] sm:$0xf]
        %v2080 = vld [vmem:[#allocation10 + $0x9c] sm:$0xf]
        %v2081 = vld [vmem:[#allocation10 + $0xa0] sm:$0xf]
        %v2082 = vld [vmem:[#allocation10 + $0xa4] sm:$0xf]
        %v2083 = vld [vmem:[#allocation10 + $0xa8] sm:$0xf]
        %v2084 = vld [vmem:[#allocation10 + $0xac] sm:$0xf]
        %v2085 = vld [vmem:[#allocation10 + $0xb0] sm:$0xf]
        %v2086 = vld [vmem:[#allocation10 + $0xb4] sm:$0xf]
        %v2087 = vld [vmem:[#allocation10 + $0xb8] sm:$0xf]
        %v2088 = vld [vmem:[#allocation10 + $0xbc] sm:$0xf]
        %v2089 = vld [vmem:[#allocation10 + $0xc0] sm:$0xf]
        %v2090 = vld [vmem:[#allocation10 + $0xc4] sm:$0xf]
        %v2091 = vld [vmem:[#allocation10 + $0xc8] sm:$0xf]
        %v2092 = vld [vmem:[#allocation10 + $0xcc] sm:$0xf]
        %v2093 = vld [vmem:[#allocation10 + $0xd0] sm:$0xf]
        %v2094 = vld [vmem:[#allocation10 + $0xd4] sm:$0xf]
        %v2095 = vld [vmem:[#allocation10 + $0xd8] sm:$0xf]
        %v2096 = vld [vmem:[#allocation10 + $0xdc] sm:$0xf]
        %v2097 = vld [vmem:[#allocation10 + $0xe0] sm:$0xf]
        %v2098 = vld [vmem:[#allocation10 + $0xe4] sm:$0xf]
        %v2099 = vld [vmem:[#allocation10 + $0xe8] sm:$0xf]
        %v2100 = vld [vmem:[#allocation10 + $0xec] sm:$0xf]
        %v2101 = vld [vmem:[#allocation10 + $0xf0] sm:$0xf]
        %v2102 = vld [vmem:[#allocation10 + $0xf4] sm:$0xf]
        %v2103 = vld [vmem:[#allocation10 + $0xf8] sm:$0xf]
        %v2104 = vld [vmem:[#allocation10 + $0xfc] sm:$0xf]
        %v2105 = vld [vmem:[#allocation11] sm:$0x1]
        %v2107 = vlaneseq
        %v2108 = vshrl.u32 %v2107, 7
        %v2109 = vsub.s32 0, %v2108
        %v2110 = vrot.slane %v2105, %v2109
        %v2176 = vunpack.c.l.b16 %v2041
        %v2177 = vunpack.c.l.b16 %v2042
        %v2178 = vunpack.c.l.b16 %v2043
        %v2179 = vunpack.c.l.b16 %v2044
        %v2180 = vunpack.c.l.b16 %v2045
        %v2181 = vunpack.c.l.b16 %v2046
        %v2182 = vunpack.c.l.b16 %v2047
        %v2183 = vunpack.c.l.b16 %v2048
        %v2184 = vunpack.c.l.b16 %v2049
        %v2185 = vunpack.c.l.b16 %v2050
        %v2186 = vunpack.c.l.b16 %v2051
        %v2187 = vunpack.c.l.b16 %v2052
        %v2188 = vunpack.c.l.b16 %v2053
        %v2189 = vunpack.c.l.b16 %v2054
        %v2190 = vunpack.c.l.b16 %v2055
        %v2191 = vunpack.c.l.b16 %v2056
        %v2192 = vunpack.c.l.b16 %v2057
        %v2193 = vunpack.c.l.b16 %v2058
        %v2194 = vunpack.c.l.b16 %v2059
        %v2195 = vunpack.c.l.b16 %v2060
        %v2196 = vunpack.c.l.b16 %v2061
        %v2197 = vunpack.c.l.b16 %v2062
        %v2198 = vunpack.c.l.b16 %v2063
        %v2199 = vunpack.c.l.b16 %v2064
        %v2200 = vunpack.c.l.b16 %v2065
        %v2201 = vunpack.c.l.b16 %v2066
        %v2202 = vunpack.c.l.b16 %v2067
        %v2203 = vunpack.c.l.b16 %v2068
        %v2204 = vunpack.c.l.b16 %v2069
        %v2205 = vunpack.c.l.b16 %v2070
        %v2206 = vunpack.c.l.b16 %v2071
        %v2207 = vunpack.c.l.b16 %v2072
        %v2208 = vunpack.c.l.b16 %v2073
        %v2209 = vunpack.c.l.b16 %v2074
        %v2210 = vunpack.c.l.b16 %v2075
        %v2211 = vunpack.c.l.b16 %v2076
        %v2212 = vunpack.c.l.b16 %v2077
        %v2213 = vunpack.c.l.b16 %v2078
        %v2214 = vunpack.c.l.b16 %v2079
        %v2215 = vunpack.c.l.b16 %v2080
        %v2216 = vunpack.c.l.b16 %v2081
        %v2217 = vunpack.c.l.b16 %v2082
        %v2218 = vunpack.c.l.b16 %v2083
        %v2219 = vunpack.c.l.b16 %v2084
        %v2220 = vunpack.c.l.b16 %v2085
        %v2221 = vunpack.c.l.b16 %v2086
        %v2222 = vunpack.c.l.b16 %v2087
        %v2223 = vunpack.c.l.b16 %v2088
        %v2224 = vunpack.c.l.b16 %v2089
        %v2225 = vunpack.c.l.b16 %v2090
        %v2226 = vunpack.c.l.b16 %v2091
        %v2227 = vunpack.c.l.b16 %v2092
        %v2228 = vunpack.c.l.b16 %v2093
        %v2229 = vunpack.c.l.b16 %v2094
        %v2230 = vunpack.c.l.b16 %v2095
        %v2231 = vunpack.c.l.b16 %v2096
        %v2232 = vunpack.c.l.b16 %v2097
        %v2233 = vunpack.c.l.b16 %v2098
        %v2234 = vunpack.c.l.b16 %v2099
        %v2235 = vunpack.c.l.b16 %v2100
        %v2236 = vunpack.c.l.b16 %v2101
        %v2237 = vunpack.c.l.b16 %v2102
        %v2238 = vunpack.c.l.b16 %v2103
        %v2239 = vunpack.c.l.b16 %v2104
        %v2240 = vpack.c.b16 %v2177, %v2176
        %v2241 = vpack.c.b16 %v2179, %v2178
        %v2242 = vpack.c.b16 %v2181, %v2180
        %v2243 = vpack.c.b16 %v2183, %v2182
        %v2244 = vpack.c.b16 %v2185, %v2184
        %v2245 = vpack.c.b16 %v2187, %v2186
        %v2246 = vpack.c.b16 %v2189, %v2188
        %v2247 = vpack.c.b16 %v2191, %v2190
        %v2248 = vpack.c.b16 %v2193, %v2192
        %v2249 = vpack.c.b16 %v2195, %v2194
        %v2250 = vpack.c.b16 %v2197, %v2196
        %v2251 = vpack.c.b16 %v2199, %v2198
        %v2252 = vpack.c.b16 %v2201, %v2200
        %v2253 = vpack.c.b16 %v2203, %v2202
        %v2254 = vpack.c.b16 %v2205, %v2204
        %v2255 = vpack.c.b16 %v2207, %v2206
        %v2256 = vpack.c.b16 %v2209, %v2208
        %v2257 = vpack.c.b16 %v2211, %v2210
        %v2258 = vpack.c.b16 %v2213, %v2212
        %v2259 = vpack.c.b16 %v2215, %v2214
        %v2260 = vpack.c.b16 %v2217, %v2216
        %v2261 = vpack.c.b16 %v2219, %v2218
        %v2262 = vpack.c.b16 %v2221, %v2220
        %v2263 = vpack.c.b16 %v2223, %v2222
        %v2264 = vpack.c.b16 %v2225, %v2224
        %v2265 = vpack.c.b16 %v2227, %v2226
        %v2266 = vpack.c.b16 %v2229, %v2228
        %v2267 = vpack.c.b16 %v2231, %v2230
        %v2268 = vpack.c.b16 %v2233, %v2232
        %v2269 = vpack.c.b16 %v2235, %v2234
        %v2270 = vpack.c.b16 %v2237, %v2236
        %v2271 = vpack.c.b16 %v2239, %v2238
        %2304 = vmatprep.subr.bf16.mxu0 0
        %2305 = vmatpush1.bf16.msra.mxu0 %v2247
        %2306 = vmatprep.subr.bf16.mxu0 0
        %2307 = vmatpush1.bf16.msra.mxu0 %v2246
        %2308 = vmatprep.subr.bf16.mxu0 0
        %2309 = vmatpush1.bf16.msra.mxu0 %v2245
        %2310 = vmatprep.subr.bf16.mxu0 0
        %2311 = vmatpush1.bf16.msra.mxu0 %v2244
        %2312 = vmatprep.subr.bf16.mxu0 0
        %2313 = vmatpush1.bf16.msra.mxu0 %v2243
        %2314 = vmatprep.subr.bf16.mxu0 0
        %2315 = vmatpush1.bf16.msra.mxu0 %v2242
        %2316 = vmatprep.subr.bf16.mxu0 0
        %2317 = vmatpush1.bf16.msra.mxu0 %v2241
        %2318 = vmatprep.subr.bf16.mxu0 0
        %2319 = vmatpush1.bf16.msra.mxu0 %v2240
        %2320 = vmatprep.subr.bf16.mxu0 0
        %2321 = vmatpush2.bf16.msra.mxu0 %v2255
        %2322 = vmatprep.subr.bf16.mxu0 0
        %2323 = vmatpush2.bf16.msra.mxu0 %v2254
        %2324 = vmatprep.subr.bf16.mxu0 0
        %2325 = vmatpush2.bf16.msra.mxu0 %v2253
        %2326 = vmatprep.subr.bf16.mxu0 0
        %2327 = vmatpush2.bf16.msra.mxu0 %v2252
        %2328 = vmatprep.subr.bf16.mxu0 0
        %2329 = vmatpush2.bf16.msra.mxu0 %v2251
        %2330 = vmatprep.subr.bf16.mxu0 0
        %2331 = vmatpush2.bf16.msra.mxu0 %v2250
        %2332 = vmatprep.subr.bf16.mxu0 0
        %2333 = vmatpush2.bf16.msra.mxu0 %v2249
        %2334 = vmatprep.subr.bf16.mxu0 0
        %2335 = vmatpush2.bf16.msra.mxu0 %v2248
        %2336 = vmatprep.mubr.bf16.mxu0 %v2038
        %2337 = vmatmul.mubr.bf16.gmra.mxu0 %v2037
        %v2338 = vpop.f32.mrf.mxu0
        %v2339 = vadd.f32 %v2110, %v2338
        %v2340 = vpop.f32.mrf.mxu0
        %v2341 = vpop.f32.mrf.mxu0
        %v2342 = vpop.f32.mrf.mxu0
        %2343 = vdwg.mxu0
        %2344 = vmatprep.subr.bf16.mxu0 0
        %2345 = vmatpush1.bf16.msra.mxu0 %v2263
        %2346 = vmatprep.subr.bf16.mxu0 0
        %2347 = vmatpush1.bf16.msra.mxu0 %v2262
        %2348 = vmatprep.subr.bf16.mxu0 0
        %2349 = vmatpush1.bf16.msra.mxu0 %v2261
        %2350 = vmatprep.subr.bf16.mxu0 0
        %2351 = vmatpush1.bf16.msra.mxu0 %v2260
        %2352 = vmatprep.subr.bf16.mxu0 0
        %2353 = vmatpush1.bf16.msra.mxu0 %v2259
        %2354 = vmatprep.subr.bf16.mxu0 0
        %2355 = vmatpush1.bf16.msra.mxu0 %v2258
        %2356 = vmatprep.subr.bf16.mxu0 0
        %2357 = vmatpush1.bf16.msra.mxu0 %v2257
        %2358 = vmatprep.subr.bf16.mxu0 0
        %2359 = vmatpush1.bf16.msra.mxu0 %v2256
        %2360 = vmatprep.subr.bf16.mxu0 0
        %2361 = vmatpush2.bf16.msra.mxu0 %v2271
        %2362 = vmatprep.subr.bf16.mxu0 0
        %2363 = vmatpush2.bf16.msra.mxu0 %v2270
        %2364 = vmatprep.subr.bf16.mxu0 0
        %2365 = vmatpush2.bf16.msra.mxu0 %v2269
        %2366 = vmatprep.subr.bf16.mxu0 0
        %2367 = vmatpush2.bf16.msra.mxu0 %v2268
        %2368 = vmatprep.subr.bf16.mxu0 0
        %2369 = vmatpush2.bf16.msra.mxu0 %v2267
        %2370 = vmatprep.subr.bf16.mxu0 0
        %2371 = vmatpush2.bf16.msra.mxu0 %v2266
        %2372 = vmatprep.subr.bf16.mxu0 0
        %2373 = vmatpush2.bf16.msra.mxu0 %v2265
        %2374 = vmatprep.subr.bf16.mxu0 0
        %2375 = vmatpush2.bf16.msra.mxu0 %v2264
        %2376 = vmatprep.mubr.bf16.mxu0 %v2040
        %2377 = vmatmul.mubr.bf16.gmra.mxu0 %v2039
        %v2378 = vpop.f32.mrf.mxu0
        %v2379 = vadd.f32 %v2339, %v2378
        %v2380 = vpop.f32.mrf.mxu0
        %v2381 = vpop.f32.mrf.mxu0
        %v2382 = vpop.f32.mrf.mxu0
        %2383 = vdwg.mxu0
        %v2384 = vadd.f32 %v709, %v2379
        %v2385 = vld [vmem:[#allocation13] sm:$0x1]
        %v2386 = vld [vmem:[#allocation14] sm:$0x1]
        %2387 = vadd.xlane.f32.xlu0 %v2384
        %v2388 = vpop.xlane.xlu0 %2387
        %v2389 = vmul.f32 %v2388, 0.03125
        %v2390 = vmul.f32 %v2384, %v2384
        %2391 = vadd.xlane.f32.xlu0 %v2390
        %v2392 = vpop.xlane.xlu0 %2391
        %v2393 = vmul.f32 %v2392, 0.03125
        %v2394 = vmul.f32 %v2389, %v2389
        %v2395 = vsub.f32 %v2393, %v2394
        %v2396 = vmax.f32 %v2395, 0.0
        %v2397 = vsub.f32 %v2384, %v2389
        %v2398 = vadd.f32 %v2396, 1e-06
        %v2399 = vrsqrt.pop %v2398
        %v2400 = vmul.f32 %v2397, %v2399
        %v2402 = vlaneseq
        %v2403 = vshrl.u32 %v2402, 7
        %v2404 = vsub.s32 0, %v2403
        %v2405 = vrot.slane %v2385, %v2404
        %v2407 = vmul.f32 %v2400, %v2405
        %v2409 = vlaneseq
        %v2410 = vshrl.u32 %v2409, 7
        %v2411 = vsub.s32 0, %v2410
        %v2412 = vrot.slane %v2386, %v2411
        %v2414 = vadd.f32 %v2407, %v2412
        %v2415 = vpack.c.bf16 %v2414, %v2414
        %v2416 = vld [vmem:[%s10] sm:$0xf]
        %v2417 = vld [vmem:[%s10 + $0x4] sm:$0xf]
        %v2418 = vld [vmem:[%s10 + $0x8] sm:$0xf]
        %v2419 = vld [vmem:[%s10 + $0xc] sm:$0xf]
        %v2420 = vld [vmem:[%s10 + $0x10] sm:$0xf]
        %v2421 = vld [vmem:[%s10 + $0x14] sm:$0xf]
        %v2422 = vld [vmem:[%s10 + $0x18] sm:$0xf]
        %v2423 = vld [vmem:[%s10 + $0x1c] sm:$0xf]
        %v2424 = vld [vmem:[%s10 + $0x20] sm:$0xf]
        %v2425 = vld [vmem:[%s10 + $0x24] sm:$0xf]
        %v2426 = vld [vmem:[%s10 + $0x28] sm:$0xf]
        %v2427 = vld [vmem:[%s10 + $0x2c] sm:$0xf]
        %v2428 = vld [vmem:[%s10 + $0x30] sm:$0xf]
        %v2429 = vld [vmem:[%s10 + $0x34] sm:$0xf]
        %v2430 = vld [vmem:[%s10 + $0x38] sm:$0xf]
        %v2431 = vld [vmem:[%s10 + $0x3c] sm:$0xf]
        %v2432 = vld [vmem:[%s11] sm:$0x1]
        %v2434 = vlaneseq
        %v2435 = vshrl.u32 %v2434, 7
        %v2436 = vsub.s32 0, %v2435
        %v2437 = vrot.slane %v2432, %v2436
        %v2455 = vunpack.c.l.b16 %v2416
        %v2456 = vunpack.c.l.b16 %v2417
        %v2457 = vunpack.c.l.b16 %v2418
        %v2458 = vunpack.c.l.b16 %v2419
        %v2459 = vunpack.c.l.b16 %v2420
        %v2460 = vunpack.c.l.b16 %v2421
        %v2461 = vunpack.c.l.b16 %v2422
        %v2462 = vunpack.c.l.b16 %v2423
        %v2463 = vunpack.c.l.b16 %v2424
        %v2464 = vunpack.c.l.b16 %v2425
        %v2465 = vunpack.c.l.b16 %v2426
        %v2466 = vunpack.c.l.b16 %v2427
        %v2467 = vunpack.c.l.b16 %v2428
        %v2468 = vunpack.c.l.b16 %v2429
        %v2469 = vunpack.c.l.b16 %v2430
        %v2470 = vunpack.c.l.b16 %v2431
        %v2471 = vpack.c.b16 %v2456, %v2455
        %v2472 = vpack.c.b16 %v2458, %v2457
        %v2473 = vpack.c.b16 %v2460, %v2459
        %v2474 = vpack.c.b16 %v2462, %v2461
        %v2475 = vpack.c.b16 %v2464, %v2463
        %v2476 = vpack.c.b16 %v2466, %v2465
        %v2477 = vpack.c.b16 %v2468, %v2467
        %v2478 = vpack.c.b16 %v2470, %v2469
        %2487 = vmatprep.subr.bf16.mxu0 0
        %2488 = vmatpush1.bf16.msra.mxu0 %v2478
        %2489 = vmatprep.subr.bf16.mxu0 0
        %2490 = vmatpush1.bf16.msra.mxu0 %v2477
        %2491 = vmatprep.subr.bf16.mxu0 0
        %2492 = vmatpush1.bf16.msra.mxu0 %v2476
        %2493 = vmatprep.subr.bf16.mxu0 0
        %2494 = vmatpush1.bf16.msra.mxu0 %v2475
        %2495 = vmatprep.subr.bf16.mxu0 0
        %2496 = vmatpush1.bf16.msra.mxu0 %v2474
        %2497 = vmatprep.subr.bf16.mxu0 0
        %2498 = vmatpush1.bf16.msra.mxu0 %v2473
        %2499 = vmatprep.subr.bf16.mxu0 0
        %2500 = vmatpush1.bf16.msra.mxu0 %v2472
        %2501 = vmatprep.subr.bf16.mxu0 0
        %2502 = vmatpush1.bf16.msra.mxu0 %v2471
        %2503 = vmatprep.subr.bf16.mxu0 0
        %2504 = vmatpush2.bf16.msra.mxu0 0
        %2505 = vmatprep.subr.bf16.mxu0 0
        %2506 = vmatpush2.bf16.msra.mxu0 0
        %2507 = vmatprep.subr.bf16.mxu0 0
        %2508 = vmatpush2.bf16.msra.mxu0 0
        %2509 = vmatprep.subr.bf16.mxu0 0
        %2510 = vmatpush2.bf16.msra.mxu0 0
        %2511 = vmatprep.subr.bf16.mxu0 0
        %2512 = vmatpush2.bf16.msra.mxu0 0
        %2513 = vmatprep.subr.bf16.mxu0 0
        %2514 = vmatpush2.bf16.msra.mxu0 0
        %2515 = vmatprep.subr.bf16.mxu0 0
        %2516 = vmatpush2.bf16.msra.mxu0 0
        %2517 = vmatprep.subr.bf16.mxu0 0
        %2518 = vmatpush2.bf16.msra.mxu0 0
        %2519 = vmatprep.mubr.bf16.mxu0 0
        %2520 = vmatmul.mubr.bf16.gmra.mxu0 %v2415
        %v2521 = vpop.f32.mrf.mxu0
        %v2522 = vadd.f32 %v2437, %v2521
        %v2523 = vpop.f32.mrf.mxu0
        %v2524 = vpop.f32.mrf.mxu0
        %v2525 = vpop.f32.mrf.mxu0
        %2526 = vdwg.mxu0
        %v2527 = vmax.f32 %v2522, 0.0
        %v2528 = vpack.c.bf16 %v2527, %v2527
        %v2529 = vld [vmem:[%s12] sm:$0xf]
        %v2530 = vld [vmem:[%s12 + $0x4] sm:$0xf]
        %v2531 = vld [vmem:[%s12 + $0x8] sm:$0xf]
        %v2532 = vld [vmem:[%s12 + $0xc] sm:$0xf]
        %v2533 = vld [vmem:[%s12 + $0x10] sm:$0xf]
        %v2534 = vld [vmem:[%s12 + $0x14] sm:$0xf]
        %v2535 = vld [vmem:[%s12 + $0x18] sm:$0xf]
        %v2536 = vld [vmem:[%s12 + $0x1c] sm:$0xf]
        %v2537 = vld [vmem:[%s12 + $0x20] sm:$0xf]
        %v2538 = vld [vmem:[%s12 + $0x24] sm:$0xf]
        %v2539 = vld [vmem:[%s12 + $0x28] sm:$0xf]
        %v2540 = vld [vmem:[%s12 + $0x2c] sm:$0xf]
        %v2541 = vld [vmem:[%s12 + $0x30] sm:$0xf]
        %v2542 = vld [vmem:[%s12 + $0x34] sm:$0xf]
        %v2543 = vld [vmem:[%s12 + $0x38] sm:$0xf]
        %v2544 = vld [vmem:[%s12 + $0x3c] sm:$0xf]
        %v2545 = vld [vmem:[%s13] sm:$0x1]
        %v2547 = vlaneseq
        %v2548 = vshrl.u32 %v2547, 7
        %v2549 = vsub.s32 0, %v2548
        %v2550 = vrot.slane %v2545, %v2549
        %v2568 = vunpack.c.l.b16 %v2529
        %v2569 = vunpack.c.l.b16 %v2530
        %v2570 = vunpack.c.l.b16 %v2531
        %v2571 = vunpack.c.l.b16 %v2532
        %v2572 = vunpack.c.l.b16 %v2533
        %v2573 = vunpack.c.l.b16 %v2534
        %v2574 = vunpack.c.l.b16 %v2535
        %v2575 = vunpack.c.l.b16 %v2536
        %v2576 = vunpack.c.l.b16 %v2537
        %v2577 = vunpack.c.l.b16 %v2538
        %v2578 = vunpack.c.l.b16 %v2539
        %v2579 = vunpack.c.l.b16 %v2540
        %v2580 = vunpack.c.l.b16 %v2541
        %v2581 = vunpack.c.l.b16 %v2542
        %v2582 = vunpack.c.l.b16 %v2543
        %v2583 = vunpack.c.l.b16 %v2544
        %v2584 = vpack.c.b16 %v2569, %v2568
        %v2585 = vpack.c.b16 %v2571, %v2570
        %v2586 = vpack.c.b16 %v2573, %v2572
        %v2587 = vpack.c.b16 %v2575, %v2574
        %v2588 = vpack.c.b16 %v2577, %v2576
        %v2589 = vpack.c.b16 %v2579, %v2578
        %v2590 = vpack.c.b16 %v2581, %v2580
        %v2591 = vpack.c.b16 %v2583, %v2582
        %2600 = vmatprep.subr.bf16.mxu0 0
        %2601 = vmatpush1.bf16.msra.mxu0 %v2591
        %2602 = vmatprep.subr.bf16.mxu0 0
        %2603 = vmatpush1.bf16.msra.mxu0 %v2590
        %2604 = vmatprep.subr.bf16.mxu0 0
        %2605 = vmatpush1.bf16.msra.mxu0 %v2589
        %2606 = vmatprep.subr.bf16.mxu0 0
        %2607 = vmatpush1.bf16.msra.mxu0 %v2588
        %2608 = vmatprep.subr.bf16.mxu0 0
        %2609 = vmatpush1.bf16.msra.mxu0 %v2587
        %2610 = vmatprep.subr.bf16.mxu0 0
        %2611 = vmatpush1.bf16.msra.mxu0 %v2586
        %2612 = vmatprep.subr.bf16.mxu0 0
        %2613 = vmatpush1.bf16.msra.mxu0 %v2585
        %2614 = vmatprep.subr.bf16.mxu0 0
        %2615 = vmatpush1.bf16.msra.mxu0 %v2584
        %2616 = vmatprep.subr.bf16.mxu0 0
        %2617 = vmatpush2.bf16.msra.mxu0 0
        %2618 = vmatprep.subr.bf16.mxu0 0
        %2619 = vmatpush2.bf16.msra.mxu0 0
        %2620 = vmatprep.subr.bf16.mxu0 0
        %2621 = vmatpush2.bf16.msra.mxu0 0
        %2622 = vmatprep.subr.bf16.mxu0 0
        %2623 = vmatpush2.bf16.msra.mxu0 0
        %2624 = vmatprep.subr.bf16.mxu0 0
        %2625 = vmatpush2.bf16.msra.mxu0 0
        %2626 = vmatprep.subr.bf16.mxu0 0
        %2627 = vmatpush2.bf16.msra.mxu0 0
        %2628 = vmatprep.subr.bf16.mxu0 0
        %2629 = vmatpush2.bf16.msra.mxu0 0
        %2630 = vmatprep.subr.bf16.mxu0 0
        %2631 = vmatpush2.bf16.msra.mxu0 0
        %2632 = vmatprep.mubr.bf16.mxu0 0
        %2633 = vmatmul.mubr.bf16.gmra.mxu0 %v2528
        %v2634 = vpop.f32.mrf.mxu0
        %v2635 = vadd.f32 %v2550, %v2634
        %v2636 = vpop.f32.mrf.mxu0
        %v2637 = vpop.f32.mrf.mxu0
        %v2638 = vpop.f32.mrf.mxu0
        %2639 = vdwg.mxu0
        %v2640 = vadd.f32 %v2384, %v2635
        %s2641 = scalar_lea.vmem [#allocation2], 1
        %v2642 = vld [vmem:[%s2641] sm:$0x1]
        %s2643 = scalar_lea.vmem [#allocation5], 1
        %v2644 = vld [vmem:[%s2643] sm:$0x1]
        %2645 = vadd.xlane.f32.xlu0 %v2640
        %v2646 = vpop.xlane.xlu0 %2645
        %v2647 = vmul.f32 %v2646, 0.03125
        %v2648 = vmul.f32 %v2640, %v2640
        %2649 = vadd.xlane.f32.xlu0 %v2648
        %v2650 = vpop.xlane.xlu0 %2649
        %v2651 = vmul.f32 %v2650, 0.03125
        %v2652 = vmul.f32 %v2647, %v2647
        %v2653 = vsub.f32 %v2651, %v2652
        %v2654 = vmax.f32 %v2653, 0.0
        %v2655 = vsub.f32 %v2640, %v2647
        %v2656 = vadd.f32 %v2654, 1e-06
        %v2657 = vrsqrt.pop %v2656
        %v2658 = vmul.f32 %v2655, %v2657
        %v2660 = vlaneseq
        %v2661 = vshrl.u32 %v2660, 7
        %v2662 = vsub.s32 0, %v2661
        %v2663 = vrot.slane %v2642, %v2662
        %v2665 = vmul.f32 %v2658, %v2663
        %v2667 = vlaneseq
        %v2668 = vshrl.u32 %v2667, 7
        %v2669 = vsub.s32 0, %v2668
        %v2670 = vrot.slane %v2644, %v2669
        %v2672 = vadd.f32 %v2665, %v2670
        %v2673 = vpack.c.bf16 %v2672, %v2672
        %s2674 = scalar_lea.vmem [#allocation7], 768
        %v2675 = vld [vmem:[%s2674] sm:$0xff]
        %v2676 = vld [vmem:[%s2674 + $0x8] sm:$0xff]
        %v2677 = vld [vmem:[%s2674 + $0x10] sm:$0xff]
        %v2678 = vld [vmem:[%s2674 + $0x18] sm:$0xff]
        %v2679 = vld [vmem:[%s2674 + $0x20] sm:$0xff]
        %v2680 = vld [vmem:[%s2674 + $0x28] sm:$0xff]
        %v2681 = vld [vmem:[%s2674 + $0x30] sm:$0xff]
        %v2682 = vld [vmem:[%s2674 + $0x38] sm:$0xff]
        %v2683 = vld [vmem:[%s2674 + $0x40] sm:$0xff]
        %v2684 = vld [vmem:[%s2674 + $0x48] sm:$0xff]
        %v2685 = vld [vmem:[%s2674 + $0x50] sm:$0xff]
        %v2686 = vld [vmem:[%s2674 + $0x58] sm:$0xff]
        %v2687 = vld [vmem:[%s2674 + $0x60] sm:$0xff]
        %v2688 = vld [vmem:[%s2674 + $0x68] sm:$0xff]
        %v2689 = vld [vmem:[%s2674 + $0x70] sm:$0xff]
        %v2690 = vld [vmem:[%s2674 + $0x78] sm:$0xff]
        %v2691 = vld [vmem:[%s2674 + $0x80] sm:$0xff]
        %v2692 = vld [vmem:[%s2674 + $0x88] sm:$0xff]
        %v2693 = vld [vmem:[%s2674 + $0x90] sm:$0xff]
        %v2694 = vld [vmem:[%s2674 + $0x98] sm:$0xff]
        %v2695 = vld [vmem:[%s2674 + $0xa0] sm:$0xff]
        %v2696 = vld [vmem:[%s2674 + $0xa8] sm:$0xff]
        %v2697 = vld [vmem:[%s2674 + $0xb0] sm:$0xff]
        %v2698 = vld [vmem:[%s2674 + $0xb8] sm:$0xff]
        %v2699 = vld [vmem:[%s2674 + $0xc0] sm:$0xff]
        %v2700 = vld [vmem:[%s2674 + $0xc8] sm:$0xff]
        %v2701 = vld [vmem:[%s2674 + $0xd0] sm:$0xff]
        %v2702 = vld [vmem:[%s2674 + $0xd8] sm:$0xff]
        %v2703 = vld [vmem:[%s2674 + $0xe0] sm:$0xff]
        %v2704 = vld [vmem:[%s2674 + $0xe8] sm:$0xff]
        %v2705 = vld [vmem:[%s2674 + $0xf0] sm:$0xff]
        %v2706 = vld [vmem:[%s2674 + $0xf8] sm:$0xff]
        %v2707 = vld [vmem:[%s2674 + $0x100] sm:$0xff]
        %v2708 = vld [vmem:[%s2674 + $0x108] sm:$0xff]
        %v2709 = vld [vmem:[%s2674 + $0x110] sm:$0xff]
        %v2710 = vld [vmem:[%s2674 + $0x118] sm:$0xff]
        %v2711 = vld [vmem:[%s2674 + $0x120] sm:$0xff]
        %v2712 = vld [vmem:[%s2674 + $0x128] sm:$0xff]
        %v2713 = vld [vmem:[%s2674 + $0x130] sm:$0xff]
        %v2714 = vld [vmem:[%s2674 + $0x138] sm:$0xff]
        %v2715 = vld [vmem:[%s2674 + $0x140] sm:$0xff]
        %v2716 = vld [vmem:[%s2674 + $0x148] sm:$0xff]
        %v2717 = vld [vmem:[%s2674 + $0x150] sm:$0xff]
        %v2718 = vld [vmem:[%s2674 + $0x158] sm:$0xff]
        %v2719 = vld [vmem:[%s2674 + $0x160] sm:$0xff]
        %v2720 = vld [vmem:[%s2674 + $0x168] sm:$0xff]
        %v2721 = vld [vmem:[%s2674 + $0x170] sm:$0xff]
        %v2722 = vld [vmem:[%s2674 + $0x178] sm:$0xff]
        %v2723 = vld [vmem:[%s2674 + $0x180] sm:$0xff]
        %v2724 = vld [vmem:[%s2674 + $0x188] sm:$0xff]
        %v2725 = vld [vmem:[%s2674 + $0x190] sm:$0xff]
        %v2726 = vld [vmem:[%s2674 + $0x198] sm:$0xff]
        %v2727 = vld [vmem:[%s2674 + $0x1a0] sm:$0xff]
        %v2728 = vld [vmem:[%s2674 + $0x1a8] sm:$0xff]
        %v2729 = vld [vmem:[%s2674 + $0x1b0] sm:$0xff]
        %v2730 = vld [vmem:[%s2674 + $0x1b8] sm:$0xff]
        %v2731 = vld [vmem:[%s2674 + $0x1c0] sm:$0xff]
        %v2732 = vld [vmem:[%s2674 + $0x1c8] sm:$0xff]
        %v2733 = vld [vmem:[%s2674 + $0x1d0] sm:$0xff]
        %v2734 = vld [vmem:[%s2674 + $0x1d8] sm:$0xff]
        %v2735 = vld [vmem:[%s2674 + $0x1e0] sm:$0xff]
        %v2736 = vld [vmem:[%s2674 + $0x1e8] sm:$0xff]
        %v2737 = vld [vmem:[%s2674 + $0x1f0] sm:$0xff]
        %v2738 = vld [vmem:[%s2674 + $0x1f8] sm:$0xff]
        %v2739 = vld [vmem:[%s2674 + $0x200] sm:$0xff]
        %v2740 = vld [vmem:[%s2674 + $0x208] sm:$0xff]
        %v2741 = vld [vmem:[%s2674 + $0x210] sm:$0xff]
        %v2742 = vld [vmem:[%s2674 + $0x218] sm:$0xff]
        %v2743 = vld [vmem:[%s2674 + $0x220] sm:$0xff]
        %v2744 = vld [vmem:[%s2674 + $0x228] sm:$0xff]
        %v2745 = vld [vmem:[%s2674 + $0x230] sm:$0xff]
        %v2746 = vld [vmem:[%s2674 + $0x238] sm:$0xff]
        %v2747 = vld [vmem:[%s2674 + $0x240] sm:$0xff]
        %v2748 = vld [vmem:[%s2674 + $0x248] sm:$0xff]
        %v2749 = vld [vmem:[%s2674 + $0x250] sm:$0xff]
        %v2750 = vld [vmem:[%s2674 + $0x258] sm:$0xff]
        %v2751 = vld [vmem:[%s2674 + $0x260] sm:$0xff]
        %v2752 = vld [vmem:[%s2674 + $0x268] sm:$0xff]
        %v2753 = vld [vmem:[%s2674 + $0x270] sm:$0xff]
        %v2754 = vld [vmem:[%s2674 + $0x278] sm:$0xff]
        %v2755 = vld [vmem:[%s2674 + $0x280] sm:$0xff]
        %v2756 = vld [vmem:[%s2674 + $0x288] sm:$0xff]
        %v2757 = vld [vmem:[%s2674 + $0x290] sm:$0xff]
        %v2758 = vld [vmem:[%s2674 + $0x298] sm:$0xff]
        %v2759 = vld [vmem:[%s2674 + $0x2a0] sm:$0xff]
        %v2760 = vld [vmem:[%s2674 + $0x2a8] sm:$0xff]
        %v2761 = vld [vmem:[%s2674 + $0x2b0] sm:$0xff]
        %v2762 = vld [vmem:[%s2674 + $0x2b8] sm:$0xff]
        %v2763 = vld [vmem:[%s2674 + $0x2c0] sm:$0xff]
        %v2764 = vld [vmem:[%s2674 + $0x2c8] sm:$0xff]
        %v2765 = vld [vmem:[%s2674 + $0x2d0] sm:$0xff]
        %v2766 = vld [vmem:[%s2674 + $0x2d8] sm:$0xff]
        %v2767 = vld [vmem:[%s2674 + $0x2e0] sm:$0xff]
        %v2768 = vld [vmem:[%s2674 + $0x2e8] sm:$0xff]
        %v2769 = vld [vmem:[%s2674 + $0x2f0] sm:$0xff]
        %v2770 = vld [vmem:[%s2674 + $0x2f8] sm:$0xff]
        %s2771 = scalar_lea.vmem [#allocation8], 12
        %v2772 = vld [vmem:[%s2771] sm:$0xff]
        %v2773 = vld [vmem:[%s2771 + $0x8] sm:$0xf]
        %v2776 = vlaneseq
        %v2777 = vshrl.u32 %v2776, 7
        %v2778 = vsub.s32 0, %v2777
        %v2779 = vrot.slane %v2772, %v2778
        %v2780 = vlaneseq
        %v2781 = vshrl.u32 %v2780, 7
        %v2782 = vsub.s32 1, %v2781
        %v2783 = vrot.slane %v2772, %v2782
        %v2784 = vlaneseq
        %v2785 = vshrl.u32 %v2784, 7
        %v2786 = vsub.s32 2, %v2785
        %v2787 = vrot.slane %v2772, %v2786
        %v2788 = vlaneseq
        %v2789 = vshrl.u32 %v2788, 7
        %v2790 = vsub.s32 3, %v2789
        %v2791 = vrot.slane %v2772, %v2790
        %v2792 = vlaneseq
        %v2793 = vshrl.u32 %v2792, 7
        %v2794 = vsub.s32 4, %v2793
        %v2795 = vrot.slane %v2772, %v2794
        %v2796 = vlaneseq
        %v2797 = vshrl.u32 %v2796, 7
        %v2798 = vsub.s32 5, %v2797
        %v2799 = vrot.slane %v2772, %v2798
        %v2800 = vlaneseq
        %v2801 = vshrl.u32 %v2800, 7
        %v2802 = vsub.s32 6, %v2801
        %v2803 = vrot.slane %v2772, %v2802
        %v2804 = vlaneseq
        %v2805 = vshrl.u32 %v2804, 7
        %v2806 = vsub.s32 7, %v2805
        %v2807 = vrot.slane %v2772, %v2806
        %v2808 = vlaneseq
        %v2809 = vshrl.u32 %v2808, 7
        %v2810 = vsub.s32 0, %v2809
        %v2811 = vrot.slane %v2773, %v2810
        %v2812 = vlaneseq
        %v2813 = vshrl.u32 %v2812, 7
        %v2814 = vsub.s32 1, %v2813
        %v2815 = vrot.slane %v2773, %v2814
        %v2816 = vlaneseq
        %v2817 = vshrl.u32 %v2816, 7
        %v2818 = vsub.s32 2, %v2817
        %v2819 = vrot.slane %v2773, %v2818
        %v2820 = vlaneseq
        %v2821 = vshrl.u32 %v2820, 7
        %v2822 = vsub.s32 3, %v2821
        %v2823 = vrot.slane %v2773, %v2822
        %v2932 = vunpack.c.l.b16 %v2675
        %v2933 = vunpack.c.h.b16 %v2675
        %v2934 = vunpack.c.l.b16 %v2676
        %v2935 = vunpack.c.h.b16 %v2676
        %v2936 = vunpack.c.l.b16 %v2677
        %v2937 = vunpack.c.h.b16 %v2677
        %v2938 = vunpack.c.l.b16 %v2678
        %v2939 = vunpack.c.h.b16 %v2678
        %v2940 = vunpack.c.l.b16 %v2679
        %v2941 = vunpack.c.h.b16 %v2679
        %v2942 = vunpack.c.l.b16 %v2680
        %v2943 = vunpack.c.h.b16 %v2680
        %v2944 = vunpack.c.l.b16 %v2681
        %v2945 = vunpack.c.h.b16 %v2681
        %v2946 = vunpack.c.l.b16 %v2682
        %v2947 = vunpack.c.h.b16 %v2682
        %v2948 = vunpack.c.l.b16 %v2683
        %v2949 = vunpack.c.h.b16 %v2683
        %v2950 = vunpack.c.l.b16 %v2684
        %v2951 = vunpack.c.h.b16 %v2684
        %v2952 = vunpack.c.l.b16 %v2685
        %v2953 = vunpack.c.h.b16 %v2685
        %v2954 = vunpack.c.l.b16 %v2686
        %v2955 = vunpack.c.h.b16 %v2686
        %v2956 = vunpack.c.l.b16 %v2687
        %v2957 = vunpack.c.h.b16 %v2687
        %v2958 = vunpack.c.l.b16 %v2688
        %v2959 = vunpack.c.h.b16 %v2688
        %v2960 = vunpack.c.l.b16 %v2689
        %v2961 = vunpack.c.h.b16 %v2689
        %v2962 = vunpack.c.l.b16 %v2690
        %v2963 = vunpack.c.h.b16 %v2690
        %v2964 = vunpack.c.l.b16 %v2691
        %v2965 = vunpack.c.h.b16 %v2691
        %v2966 = vunpack.c.l.b16 %v2692
        %v2967 = vunpack.c.h.b16 %v2692
        %v2968 = vunpack.c.l.b16 %v2693
        %v2969 = vunpack.c.h.b16 %v2693
        %v2970 = vunpack.c.l.b16 %v2694
        %v2971 = vunpack.c.h.b16 %v2694
        %v2972 = vunpack.c.l.b16 %v2695
        %v2973 = vunpack.c.h.b16 %v2695
        %v2974 = vunpack.c.l.b16 %v2696
        %v2975 = vunpack.c.h.b16 %v2696
        %v2976 = vunpack.c.l.b16 %v2697
        %v2977 = vunpack.c.h.b16 %v2697
        %v2978 = vunpack.c.l.b16 %v2698
        %v2979 = vunpack.c.h.b16 %v2698
        %v2980 = vunpack.c.l.b16 %v2699
        %v2981 = vunpack.c.h.b16 %v2699
        %v2982 = vunpack.c.l.b16 %v2700
        %v2983 = vunpack.c.h.b16 %v2700
        %v2984 = vunpack.c.l.b16 %v2701
        %v2985 = vunpack.c.h.b16 %v2701
        %v2986 = vunpack.c.l.b16 %v2702
        %v2987 = vunpack.c.h.b16 %v2702
        %v2988 = vunpack.c.l.b16 %v2703
        %v2989 = vunpack.c.h.b16 %v2703
        %v2990 = vunpack.c.l.b16 %v2704
        %v2991 = vunpack.c.h.b16 %v2704
        %v2992 = vunpack.c.l.b16 %v2705
        %v2993 = vunpack.c.h.b16 %v2705
        %v2994 = vunpack.c.l.b16 %v2706
        %v2995 = vunpack.c.h.b16 %v2706
        %v2996 = vunpack.c.l.b16 %v2707
        %v2997 = vunpack.c.h.b16 %v2707
        %v2998 = vunpack.c.l.b16 %v2708
        %v2999 = vunpack.c.h.b16 %v2708
        %v3000 = vunpack.c.l.b16 %v2709
        %v3001 = vunpack.c.h.b16 %v2709
        %v3002 = vunpack.c.l.b16 %v2710
        %v3003 = vunpack.c.h.b16 %v2710
        %v3004 = vunpack.c.l.b16 %v2711
        %v3005 = vunpack.c.h.b16 %v2711
        %v3006 = vunpack.c.l.b16 %v2712
        %v3007 = vunpack.c.h.b16 %v2712
        %v3008 = vunpack.c.l.b16 %v2713
        %v3009 = vunpack.c.h.b16 %v2713
        %v3010 = vunpack.c.l.b16 %v2714
        %v3011 = vunpack.c.h.b16 %v2714
        %v3012 = vunpack.c.l.b16 %v2715
        %v3013 = vunpack.c.h.b16 %v2715
        %v3014 = vunpack.c.l.b16 %v2716
        %v3015 = vunpack.c.h.b16 %v2716
        %v3016 = vunpack.c.l.b16 %v2717
        %v3017 = vunpack.c.h.b16 %v2717
        %v3018 = vunpack.c.l.b16 %v2718
        %v3019 = vunpack.c.h.b16 %v2718
        %v3020 = vunpack.c.l.b16 %v2719
        %v3021 = vunpack.c.h.b16 %v2719
        %v3022 = vunpack.c.l.b16 %v2720
        %v3023 = vunpack.c.h.b16 %v2720
        %v3024 = vunpack.c.l.b16 %v2721
        %v3025 = vunpack.c.h.b16 %v2721
        %v3026 = vunpack.c.l.b16 %v2722
        %v3027 = vunpack.c.h.b16 %v2722
        %v3028 = vunpack.c.l.b16 %v2723
        %v3029 = vunpack.c.h.b16 %v2723
        %v3030 = vunpack.c.l.b16 %v2724
        %v3031 = vunpack.c.h.b16 %v2724
        %v3032 = vunpack.c.l.b16 %v2725
        %v3033 = vunpack.c.h.b16 %v2725
        %v3034 = vunpack.c.l.b16 %v2726
        %v3035 = vunpack.c.h.b16 %v2726
        %v3036 = vunpack.c.l.b16 %v2727
        %v3037 = vunpack.c.h.b16 %v2727
        %v3038 = vunpack.c.l.b16 %v2728
        %v3039 = vunpack.c.h.b16 %v2728
        %v3040 = vunpack.c.l.b16 %v2729
        %v3041 = vunpack.c.h.b16 %v2729
        %v3042 = vunpack.c.l.b16 %v2730
        %v3043 = vunpack.c.h.b16 %v2730
        %v3044 = vunpack.c.l.b16 %v2731
        %v3045 = vunpack.c.h.b16 %v2731
        %v3046 = vunpack.c.l.b16 %v2732
        %v3047 = vunpack.c.h.b16 %v2732
        %v3048 = vunpack.c.l.b16 %v2733
        %v3049 = vunpack.c.h.b16 %v2733
        %v3050 = vunpack.c.l.b16 %v2734
        %v3051 = vunpack.c.h.b16 %v2734
        %v3052 = vunpack.c.l.b16 %v2735
        %v3053 = vunpack.c.h.b16 %v2735
        %v3054 = vunpack.c.l.b16 %v2736
        %v3055 = vunpack.c.h.b16 %v2736
        %v3056 = vunpack.c.l.b16 %v2737
        %v3057 = vunpack.c.h.b16 %v2737
        %v3058 = vunpack.c.l.b16 %v2738
        %v3059 = vunpack.c.h.b16 %v2738
        %v3060 = vunpack.c.l.b16 %v2739
        %v3061 = vunpack.c.h.b16 %v2739
        %v3062 = vunpack.c.l.b16 %v2740
        %v3063 = vunpack.c.h.b16 %v2740
        %v3064 = vunpack.c.l.b16 %v2741
        %v3065 = vunpack.c.h.b16 %v2741
        %v3066 = vunpack.c.l.b16 %v2742
        %v3067 = vunpack.c.h.b16 %v2742
        %v3068 = vunpack.c.l.b16 %v2743
        %v3069 = vunpack.c.h.b16 %v2743
        %v3070 = vunpack.c.l.b16 %v2744
        %v3071 = vunpack.c.h.b16 %v2744
        %v3072 = vunpack.c.l.b16 %v2745
        %v3073 = vunpack.c.h.b16 %v2745
        %v3074 = vunpack.c.l.b16 %v2746
        %v3075 = vunpack.c.h.b16 %v2746
        %v3076 = vunpack.c.l.b16 %v2747
        %v3077 = vunpack.c.h.b16 %v2747
        %v3078 = vunpack.c.l.b16 %v2748
        %v3079 = vunpack.c.h.b16 %v2748
        %v3080 = vunpack.c.l.b16 %v2749
        %v3081 = vunpack.c.h.b16 %v2749
        %v3082 = vunpack.c.l.b16 %v2750
        %v3083 = vunpack.c.h.b16 %v2750
        %v3084 = vunpack.c.l.b16 %v2751
        %v3085 = vunpack.c.h.b16 %v2751
        %v3086 = vunpack.c.l.b16 %v2752
        %v3087 = vunpack.c.h.b16 %v2752
        %v3088 = vunpack.c.l.b16 %v2753
        %v3089 = vunpack.c.h.b16 %v2753
        %v3090 = vunpack.c.l.b16 %v2754
        %v3091 = vunpack.c.h.b16 %v2754
        %v3092 = vunpack.c.l.b16 %v2755
        %v3093 = vunpack.c.h.b16 %v2755
        %v3094 = vunpack.c.l.b16 %v2756
        %v3095 = vunpack.c.h.b16 %v2756
        %v3096 = vunpack.c.l.b16 %v2757
        %v3097 = vunpack.c.h.b16 %v2757
        %v3098 = vunpack.c.l.b16 %v2758
        %v3099 = vunpack.c.h.b16 %v2758
        %v3100 = vunpack.c.l.b16 %v2759
        %v3101 = vunpack.c.h.b16 %v2759
        %v3102 = vunpack.c.l.b16 %v2760
        %v3103 = vunpack.c.h.b16 %v2760
        %v3104 = vunpack.c.l.b16 %v2761
        %v3105 = vunpack.c.h.b16 %v2761
        %v3106 = vunpack.c.l.b16 %v2762
        %v3107 = vunpack.c.h.b16 %v2762
        %v3108 = vunpack.c.l.b16 %v2763
        %v3109 = vunpack.c.h.b16 %v2763
        %v3110 = vunpack.c.l.b16 %v2764
        %v3111 = vunpack.c.h.b16 %v2764
        %v3112 = vunpack.c.l.b16 %v2765
        %v3113 = vunpack.c.h.b16 %v2765
        %v3114 = vunpack.c.l.b16 %v2766
        %v3115 = vunpack.c.h.b16 %v2766
        %v3116 = vunpack.c.l.b16 %v2767
        %v3117 = vunpack.c.h.b16 %v2767
        %v3118 = vunpack.c.l.b16 %v2768
        %v3119 = vunpack.c.h.b16 %v2768
        %v3120 = vunpack.c.l.b16 %v2769
        %v3121 = vunpack.c.h.b16 %v2769
        %v3122 = vunpack.c.l.b16 %v2770
        %v3123 = vunpack.c.h.b16 %v2770
        %v3124 = vpack.c.b16 %v2944, %v2932
        %v3125 = vpack.c.b16 %v2945, %v2933
        %v3126 = vpack.c.b16 %v2946, %v2934
        %v3127 = vpack.c.b16 %v2947, %v2935
        %v3128 = vpack.c.b16 %v2948, %v2936
        %v3129 = vpack.c.b16 %v2949, %v2937
        %v3130 = vpack.c.b16 %v2950, %v2938
        %v3131 = vpack.c.b16 %v2951, %v2939
        %v3132 = vpack.c.b16 %v2952, %v2940
        %v3133 = vpack.c.b16 %v2953, %v2941
        %v3134 = vpack.c.b16 %v2954, %v2942
        %v3135 = vpack.c.b16 %v2955, %v2943
        %v3136 = vpack.c.b16 %v2968, %v2956
        %v3137 = vpack.c.b16 %v2969, %v2957
        %v3138 = vpack.c.b16 %v2970, %v2958
        %v3139 = vpack.c.b16 %v2971, %v2959
        %v3140 = vpack.c.b16 %v2972, %v2960
        %v3141 = vpack.c.b16 %v2973, %v2961
        %v3142 = vpack.c.b16 %v2974, %v2962
        %v3143 = vpack.c.b16 %v2975, %v2963
        %v3144 = vpack.c.b16 %v2976, %v2964
        %v3145 = vpack.c.b16 %v2977, %v2965
        %v3146 = vpack.c.b16 %v2978, %v2966
        %v3147 = vpack.c.b16 %v2979, %v2967
        %v3148 = vpack.c.b16 %v2992, %v2980
        %v3149 = vpack.c.b16 %v2993, %v2981
        %v3150 = vpack.c.b16 %v2994, %v2982
        %v3151 = vpack.c.b16 %v2995, %v2983
        %v3152 = vpack.c.b16 %v2996, %v2984
        %v3153 = vpack.c.b16 %v2997, %v2985
        %v3154 = vpack.c.b16 %v2998, %v2986
        %v3155 = vpack.c.b16 %v2999, %v2987
        %v3156 = vpack.c.b16 %v3000, %v2988
        %v3157 = vpack.c.b16 %v3001, %v2989
        %v3158 = vpack.c.b16 %v3002, %v2990
        %v3159 = vpack.c.b16 %v3003, %v2991
        %v3160 = vpack.c.b16 %v3016, %v3004
        %v3161 = vpack.c.b16 %v3017, %v3005
        %v3162 = vpack.c.b16 %v3018, %v3006
        %v3163 = vpack.c.b16 %v3019, %v3007
        %v3164 = vpack.c.b16 %v3020, %v3008
        %v3165 = vpack.c.b16 %v3021, %v3009
        %v3166 = vpack.c.b16 %v3022, %v3010
        %v3167 = vpack.c.b16 %v3023, %v3011
        %v3168 = vpack.c.b16 %v3024, %v3012
        %v3169 = vpack.c.b16 %v3025, %v3013
        %v3170 = vpack.c.b16 %v3026, %v3014
        %v3171 = vpack.c.b16 %v3027, %v3015
        %v3172 = vpack.c.b16 %v3040, %v3028
        %v3173 = vpack.c.b16 %v3041, %v3029
        %v3174 = vpack.c.b16 %v3042, %v3030
        %v3175 = vpack.c.b16 %v3043, %v3031
        %v3176 = vpack.c.b16 %v3044, %v3032
        %v3177 = vpack.c.b16 %v3045, %v3033
        %v3178 = vpack.c.b16 %v3046, %v3034
        %v3179 = vpack.c.b16 %v3047, %v3035
        %v3180 = vpack.c.b16 %v3048, %v3036
        %v3181 = vpack.c.b16 %v3049, %v3037
        %v3182 = vpack.c.b16 %v3050, %v3038
        %v3183 = vpack.c.b16 %v3051, %v3039
        %v3184 = vpack.c.b16 %v3064, %v3052
        %v3185 = vpack.c.b16 %v3065, %v3053
        %v3186 = vpack.c.b16 %v3066, %v3054
        %v3187 = vpack.c.b16 %v3067, %v3055
        %v3188 = vpack.c.b16 %v3068, %v3056
        %v3189 = vpack.c.b16 %v3069, %v3057
        %v3190 = vpack.c.b16 %v3070, %v3058
        %v3191 = vpack.c.b16 %v3071, %v3059
        %v3192 = vpack.c.b16 %v3072, %v3060
        %v3193 = vpack.c.b16 %v3073, %v3061
        %v3194 = vpack.c.b16 %v3074, %v3062
        %v3195 = vpack.c.b16 %v3075, %v3063
        %v3196 = vpack.c.b16 %v3088, %v3076
        %v3197 = vpack.c.b16 %v3089, %v3077
        %v3198 = vpack.c.b16 %v3090, %v3078
        %v3199 = vpack.c.b16 %v3091, %v3079
        %v3200 = vpack.c.b16 %v3092, %v3080
        %v3201 = vpack.c.b16 %v3093, %v3081
        %v3202 = vpack.c.b16 %v3094, %v3082
        %v3203 = vpack.c.b16 %v3095, %v3083
        %v3204 = vpack.c.b16 %v3096, %v3084
        %v3205 = vpack.c.b16 %v3097, %v3085
        %v3206 = vpack.c.b16 %v3098, %v3086
        %v3207 = vpack.c.b16 %v3099, %v3087
        %v3208 = vpack.c.b16 %v3112, %v3100
        %v3209 = vpack.c.b16 %v3113, %v3101
        %v3210 = vpack.c.b16 %v3114, %v3102
        %v3211 = vpack.c.b16 %v3115, %v3103
        %v3212 = vpack.c.b16 %v3116, %v3104
        %v3213 = vpack.c.b16 %v3117, %v3105
        %v3214 = vpack.c.b16 %v3118, %v3106
        %v3215 = vpack.c.b16 %v3119, %v3107
        %v3216 = vpack.c.b16 %v3120, %v3108
        %v3217 = vpack.c.b16 %v3121, %v3109
        %v3218 = vpack.c.b16 %v3122, %v3110
        %v3219 = vpack.c.b16 %v3123, %v3111
        %3316 = vmatprep.subr.bf16.mxu0 %v3209
        %3317 = vmatpush1.bf16.msra.mxu0 %v3208
        %3318 = vmatprep.subr.bf16.mxu0 %v3197
        %3319 = vmatpush1.bf16.msra.mxu0 %v3196
        %3320 = vmatprep.subr.bf16.mxu0 %v3185
        %3321 = vmatpush1.bf16.msra.mxu0 %v3184
        %3322 = vmatprep.subr.bf16.mxu0 %v3173
        %3323 = vmatpush1.bf16.msra.mxu0 %v3172
        %3324 = vmatprep.subr.bf16.mxu0 %v3161
        %3325 = vmatpush1.bf16.msra.mxu0 %v3160
        %3326 = vmatprep.subr.bf16.mxu0 %v3149
        %3327 = vmatpush1.bf16.msra.mxu0 %v3148
        %3328 = vmatprep.subr.bf16.mxu0 %v3137
        %3329 = vmatpush1.bf16.msra.mxu0 %v3136
        %3330 = vmatprep.subr.bf16.mxu0 %v3125
        %3331 = vmatpush1.bf16.msra.mxu0 %v3124
        %3332 = vmatprep.subr.bf16.mxu0 0
        %3333 = vmatpush2.bf16.msra.mxu0 0
        %3334 = vmatprep.subr.bf16.mxu0 0
        %3335 = vmatpush2.bf16.msra.mxu0 0
        %3336 = vmatprep.subr.bf16.mxu0 0
        %3337 = vmatpush2.bf16.msra.mxu0 0
        %3338 = vmatprep.subr.bf16.mxu0 0
        %3339 = vmatpush2.bf16.msra.mxu0 0
        %3340 = vmatprep.subr.bf16.mxu0 0
        %3341 = vmatpush2.bf16.msra.mxu0 0
        %3342 = vmatprep.subr.bf16.mxu0 0
        %3343 = vmatpush2.bf16.msra.mxu0 0
        %3344 = vmatprep.subr.bf16.mxu0 0
        %3345 = vmatpush2.bf16.msra.mxu0 0
        %3346 = vmatprep.subr.bf16.mxu0 0
        %3347 = vmatpush2.bf16.msra.mxu0 0
        %3348 = vmatprep.mubr.bf16.mxu0 0
        %3349 = vmatmul.mubr.bf16.gmra.mxu0 %v2673
        %v3350 = vpop.f32.mrf.mxu0
        %v3351 = vadd.f32 %v2779, %v3350
        %v3352 = vpop.f32.mrf.mxu0
        %v3353 = vadd.f32 %v2783, %v3352
        %v3354 = vpop.f32.mrf.mxu0
        %v3355 = vpop.f32.mrf.mxu0
        %3356 = vdwg.mxu0
        %3357 = vmatprep.subr.bf16.mxu0 %v3211
        %3358 = vmatpush1.bf16.msra.mxu0 %v3210
        %3359 = vmatprep.subr.bf16.mxu0 %v3199
        %3360 = vmatpush1.bf16.msra.mxu0 %v3198
        %3361 = vmatprep.subr.bf16.mxu0 %v3187
        %3362 = vmatpush1.bf16.msra.mxu0 %v3186
        %3363 = vmatprep.subr.bf16.mxu0 %v3175
        %3364 = vmatpush1.bf16.msra.mxu0 %v3174
        %3365 = vmatprep.subr.bf16.mxu0 %v3163
        %3366 = vmatpush1.bf16.msra.mxu0 %v3162
        %3367 = vmatprep.subr.bf16.mxu0 %v3151
        %3368 = vmatpush1.bf16.msra.mxu0 %v3150
        %3369 = vmatprep.subr.bf16.mxu0 %v3139
        %3370 = vmatpush1.bf16.msra.mxu0 %v3138
        %3371 = vmatprep.subr.bf16.mxu0 %v3127
        %3372 = vmatpush1.bf16.msra.mxu0 %v3126
        %3373 = vmatprep.subr.bf16.mxu0 0
        %3374 = vmatpush2.bf16.msra.mxu0 0
        %3375 = vmatprep.subr.bf16.mxu0 0
        %3376 = vmatpush2.bf16.msra.mxu0 0
        %3377 = vmatprep.subr.bf16.mxu0 0
        %3378 = vmatpush2.bf16.msra.mxu0 0
        %3379 = vmatprep.subr.bf16.mxu0 0
        %3380 = vmatpush2.bf16.msra.mxu0 0
        %3381 = vmatprep.subr.bf16.mxu0 0
        %3382 = vmatpush2.bf16.msra.mxu0 0
        %3383 = vmatprep.subr.bf16.mxu0 0
        %3384 = vmatpush2.bf16.msra.mxu0 0
        %3385 = vmatprep.subr.bf16.mxu0 0
        %3386 = vmatpush2.bf16.msra.mxu0 0
        %3387 = vmatprep.subr.bf16.mxu0 0
        %3388 = vmatpush2.bf16.msra.mxu0 0
        %3389 = vmatprep.mubr.bf16.mxu0 0
        %3390 = vmatmul.mubr.bf16.gmra.mxu0 %v2673
        %v3391 = vpop.f32.mrf.mxu0
        %v3392 = vadd.f32 %v2787, %v3391
        %v3393 = vpop.f32.mrf.mxu0
        %v3394 = vadd.f32 %v2791, %v3393
        %v3395 = vpop.f32.mrf.mxu0
        %v3396 = vpop.f32.mrf.mxu0
        %3397 = vdwg.mxu0
        %3398 = vmatprep.subr.bf16.mxu0 %v3213
        %3399 = vmatpush1.bf16.msra.mxu0 %v3212
        %3400 = vmatprep.subr.bf16.mxu0 %v3201
        %3401 = vmatpush1.bf16.msra.mxu0 %v3200
        %3402 = vmatprep.subr.bf16.mxu0 %v3189
        %3403 = vmatpush1.bf16.msra.mxu0 %v3188
        %3404 = vmatprep.subr.bf16.mxu0 %v3177
        %3405 = vmatpush1.bf16.msra.mxu0 %v3176
        %3406 = vmatprep.subr.bf16.mxu0 %v3165
        %3407 = vmatpush1.bf16.msra.mxu0 %v3164
        %3408 = vmatprep.subr.bf16.mxu0 %v3153
        %3409 = vmatpush1.bf16.msra.mxu0 %v3152
        %3410 = vmatprep.subr.bf16.mxu0 %v3141
        %3411 = vmatpush1.bf16.msra.mxu0 %v3140
        %3412 = vmatprep.subr.bf16.mxu0 %v3129
        %3413 = vmatpush1.bf16.msra.mxu0 %v3128
        %3414 = vmatprep.subr.bf16.mxu0 0
        %3415 = vmatpush2.bf16.msra.mxu0 0
        %3416 = vmatprep.subr.bf16.mxu0 0
        %3417 = vmatpush2.bf16.msra.mxu0 0
        %3418 = vmatprep.subr.bf16.mxu0 0
        %3419 = vmatpush2.bf16.msra.mxu0 0
        %3420 = vmatprep.subr.bf16.mxu0 0
        %3421 = vmatpush2.bf16.msra.mxu0 0
        %3422 = vmatprep.subr.bf16.mxu0 0
        %3423 = vmatpush2.bf16.msra.mxu0 0
        %3424 = vmatprep.subr.bf16.mxu0 0
        %3425 = vmatpush2.bf16.msra.mxu0 0
        %3426 = vmatprep.subr.bf16.mxu0 0
        %3427 = vmatpush2.bf16.msra.mxu0 0
        %3428 = vmatprep.subr.bf16.mxu0 0
        %3429 = vmatpush2.bf16.msra.mxu0 0
        %3430 = vmatprep.mubr.bf16.mxu0 0
        %3431 = vmatmul.mubr.bf16.gmra.mxu0 %v2673
        %v3432 = vpop.f32.mrf.mxu0
        %v3433 = vadd.f32 %v2795, %v3432
        %v3434 = vpop.f32.mrf.mxu0
        %v3435 = vadd.f32 %v2799, %v3434
        %v3436 = vpop.f32.mrf.mxu0
        %v3437 = vpop.f32.mrf.mxu0
        %3438 = vdwg.mxu0
        %3439 = vmatprep.subr.bf16.mxu0 %v3215
        %3440 = vmatpush1.bf16.msra.mxu0 %v3214
        %3441 = vmatprep.subr.bf16.mxu0 %v3203
        %3442 = vmatpush1.bf16.msra.mxu0 %v3202
        %3443 = vmatprep.subr.bf16.mxu0 %v3191
        %3444 = vmatpush1.bf16.msra.mxu0 %v3190
        %3445 = vmatprep.subr.bf16.mxu0 %v3179
        %3446 = vmatpush1.bf16.msra.mxu0 %v3178
        %3447 = vmatprep.subr.bf16.mxu0 %v3167
        %3448 = vmatpush1.bf16.msra.mxu0 %v3166
        %3449 = vmatprep.subr.bf16.mxu0 %v3155
        %3450 = vmatpush1.bf16.msra.mxu0 %v3154
        %3451 = vmatprep.subr.bf16.mxu0 %v3143
        %3452 = vmatpush1.bf16.msra.mxu0 %v3142
        %3453 = vmatprep.subr.bf16.mxu0 %v3131
        %3454 = vmatpush1.bf16.msra.mxu0 %v3130
        %3455 = vmatprep.subr.bf16.mxu0 0
        %3456 = vmatpush2.bf16.msra.mxu0 0
        %3457 = vmatprep.subr.bf16.mxu0 0
        %3458 = vmatpush2.bf16.msra.mxu0 0
        %3459 = vmatprep.subr.bf16.mxu0 0
        %3460 = vmatpush2.bf16.msra.mxu0 0
        %3461 = vmatprep.subr.bf16.mxu0 0
        %3462 = vmatpush2.bf16.msra.mxu0 0
        %3463 = vmatprep.subr.bf16.mxu0 0
        %3464 = vmatpush2.bf16.msra.mxu0 0
        %3465 = vmatprep.subr.bf16.mxu0 0
        %3466 = vmatpush2.bf16.msra.mxu0 0
        %3467 = vmatprep.subr.bf16.mxu0 0
        %3468 = vmatpush2.bf16.msra.mxu0 0
        %3469 = vmatprep.subr.bf16.mxu0 0
        %3470 = vmatpush2.bf16.msra.mxu0 0
        %3471 = vmatprep.mubr.bf16.mxu0 0
        %3472 = vmatmul.mubr.bf16.gmra.mxu0 %v2673
        %v3473 = vpop.f32.mrf.mxu0
        %v3474 = vadd.f32 %v2803, %v3473
        %v3475 = vpop.f32.mrf.mxu0
        %v3476 = vadd.f32 %v2807, %v3475
        %v3477 = vpop.f32.mrf.mxu0
        %v3478 = vpop.f32.mrf.mxu0
        %3479 = vdwg.mxu0
        %3480 = vmatprep.subr.bf16.mxu0 %v3217
        %3481 = vmatpush1.bf16.msra.mxu0 %v3216
        %3482 = vmatprep.subr.bf16.mxu0 %v3205
        %3483 = vmatpush1.bf16.msra.mxu0 %v3204
        %3484 = vmatprep.subr.bf16.mxu0 %v3193
        %3485 = vmatpush1.bf16.msra.mxu0 %v3192
        %3486 = vmatprep.subr.bf16.mxu0 %v3181
        %3487 = vmatpush1.bf16.msra.mxu0 %v3180
        %3488 = vmatprep.subr.bf16.mxu0 %v3169
        %3489 = vmatpush1.bf16.msra.mxu0 %v3168
        %3490 = vmatprep.subr.bf16.mxu0 %v3157
        %3491 = vmatpush1.bf16.msra.mxu0 %v3156
        %3492 = vmatprep.subr.bf16.mxu0 %v3145
        %3493 = vmatpush1.bf16.msra.mxu0 %v3144
        %3494 = vmatprep.subr.bf16.mxu0 %v3133
        %3495 = vmatpush1.bf16.msra.mxu0 %v3132
        %3496 = vmatprep.subr.bf16.mxu0 0
        %3497 = vmatpush2.bf16.msra.mxu0 0
        %3498 = vmatprep.subr.bf16.mxu0 0
        %3499 = vmatpush2.bf16.msra.mxu0 0
        %3500 = vmatprep.subr.bf16.mxu0 0
        %3501 = vmatpush2.bf16.msra.mxu0 0
        %3502 = vmatprep.subr.bf16.mxu0 0
        %3503 = vmatpush2.bf16.msra.mxu0 0
        %3504 = vmatprep.subr.bf16.mxu0 0
        %3505 = vmatpush2.bf16.msra.mxu0 0
        %3506 = vmatprep.subr.bf16.mxu0 0
        %3507 = vmatpush2.bf16.msra.mxu0 0
        %3508 = vmatprep.subr.bf16.mxu0 0
        %3509 = vmatpush2.bf16.msra.mxu0 0
        %3510 = vmatprep.subr.bf16.mxu0 0
        %3511 = vmatpush2.bf16.msra.mxu0 0
        %3512 = vmatprep.mubr.bf16.mxu0 0
        %3513 = vmatmul.mubr.bf16.gmra.mxu0 %v2673
        %v3514 = vpop.f32.mrf.mxu0
        %v3515 = vadd.f32 %v2811, %v3514
        %v3516 = vpop.f32.mrf.mxu0
        %v3517 = vadd.f32 %v2815, %v3516
        %v3518 = vpop.f32.mrf.mxu0
        %v3519 = vpop.f32.mrf.mxu0
        %3520 = vdwg.mxu0
        %3521 = vmatprep.subr.bf16.mxu0 %v3219
        %3522 = vmatpush1.bf16.msra.mxu0 %v3218
        %3523 = vmatprep.subr.bf16.mxu0 %v3207
        %3524 = vmatpush1.bf16.msra.mxu0 %v3206
        %3525 = vmatprep.subr.bf16.mxu0 %v3195
        %3526 = vmatpush1.bf16.msra.mxu0 %v3194
        %3527 = vmatprep.subr.bf16.mxu0 %v3183
        %3528 = vmatpush1.bf16.msra.mxu0 %v3182
        %3529 = vmatprep.subr.bf16.mxu0 %v3171
        %3530 = vmatpush1.bf16.msra.mxu0 %v3170
        %3531 = vmatprep.subr.bf16.mxu0 %v3159
        %3532 = vmatpush1.bf16.msra.mxu0 %v3158
        %3533 = vmatprep.subr.bf16.mxu0 %v3147
        %3534 = vmatpush1.bf16.msra.mxu0 %v3146
        %3535 = vmatprep.subr.bf16.mxu0 %v3135
        %3536 = vmatpush1.bf16.msra.mxu0 %v3134
        %3537 = vmatprep.subr.bf16.mxu0 0
        %3538 = vmatpush2.bf16.msra.mxu0 0
        %3539 = vmatprep.subr.bf16.mxu0 0
        %3540 = vmatpush2.bf16.msra.mxu0 0
        %3541 = vmatprep.subr.bf16.mxu0 0
        %3542 = vmatpush2.bf16.msra.mxu0 0
        %3543 = vmatprep.subr.bf16.mxu0 0
        %3544 = vmatpush2.bf16.msra.mxu0 0
        %3545 = vmatprep.subr.bf16.mxu0 0
        %3546 = vmatpush2.bf16.msra.mxu0 0
        %3547 = vmatprep.subr.bf16.mxu0 0
        %3548 = vmatpush2.bf16.msra.mxu0 0
        %3549 = vmatprep.subr.bf16.mxu0 0
        %3550 = vmatpush2.bf16.msra.mxu0 0
        %3551 = vmatprep.subr.bf16.mxu0 0
        %3552 = vmatpush2.bf16.msra.mxu0 0
        %3553 = vmatprep.mubr.bf16.mxu0 0
        %3554 = vmatmul.mubr.bf16.gmra.mxu0 %v2673
        %v3555 = vpop.f32.mrf.mxu0
        %v3556 = vadd.f32 %v2819, %v3555
        %v3557 = vpop.f32.mrf.mxu0
        %v3558 = vadd.f32 %v2823, %v3557
        %v3559 = vpop.f32.mrf.mxu0
        %v3560 = vpop.f32.mrf.mxu0
        %3561 = vdwg.mxu0
        %v3562 = vpack.c.bf16 %v3351, %v3351
        %v3563 = vpack.c.bf16 %v3353, %v3353
        %v3564 = vpack.c.bf16 %v3392, %v3392
        %v3565 = vpack.c.bf16 %v3394, %v3394
        %v3566 = vpack.c.bf16 %v3433, %v3433
        %v3567 = vpack.c.bf16 %v3435, %v3435
        %v3568 = vpack.c.bf16 %v3474, %v3474
        %v3569 = vpack.c.bf16 %v3476, %v3476
        %3570 = vmatprep.subr.bf16.mxu0 0
        %3571 = vmatpush1.bf16.xpose.msra.mxu0 0
        %3572 = vmatprep.subr.bf16.mxu0 0
        %3573 = vmatpush1.bf16.xpose.msra.mxu0 0
        %3574 = vmatprep.subr.bf16.mxu0 0
        %3575 = vmatpush1.bf16.xpose.msra.mxu0 0
        %3576 = vmatprep.subr.bf16.mxu0 0
        %3577 = vmatpush1.bf16.xpose.msra.mxu0 0
        %3578 = vmatprep.subr.bf16.mxu0 0
        %3579 = vmatpush1.bf16.xpose.msra.mxu0 0
        %3580 = vmatprep.subr.bf16.mxu0 0
        %3581 = vmatpush1.bf16.xpose.msra.mxu0 0
        %3582 = vmatprep.subr.bf16.mxu0 0
        %3583 = vmatpush1.bf16.xpose.msra.mxu0 0
        %3584 = vmatprep.subr.bf16.mxu0 0
        %3585 = vmatpush1.bf16.xpose.msra.mxu0 %v3566
        %3586 = vmatprep.subr.bf16.mxu0 0
        %3587 = vmatpush2.bf16.xpose.msra.mxu0 0
        %3588 = vmatprep.subr.bf16.mxu0 0
        %3589 = vmatpush2.bf16.xpose.msra.mxu0 0
        %3590 = vmatprep.subr.bf16.mxu0 0
        %3591 = vmatpush2.bf16.xpose.msra.mxu0 0
        %3592 = vmatprep.subr.bf16.mxu0 0
        %3593 = vmatpush2.bf16.xpose.msra.mxu0 0
        %3594 = vmatprep.subr.bf16.mxu0 0
        %3595 = vmatpush2.bf16.xpose.msra.mxu0 0
        %3596 = vmatprep.subr.bf16.mxu0 0
        %3597 = vmatpush2.bf16.xpose.msra.mxu0 0
        %3598 = vmatprep.subr.bf16.mxu0 0
        %3599 = vmatpush2.bf16.xpose.msra.mxu0 0
        %3600 = vmatprep.subr.bf16.mxu0 0
        %3601 = vmatpush2.bf16.xpose.msra.mxu0 0
        %3602 = vmatprep.mubr.bf16.mxu0 0
        %3603 = vmatmul.mubr.bf16.gmra.mxu0 %v3562
        %v3604 = vpop.f32.mrf.mxu0
        %v3605 = vadd.f32 %v710, %v3604
        %v3606 = vpop.f32.mrf.mxu0
        %v3607 = vpop.f32.mrf.mxu0
        %v3608 = vpop.f32.mrf.mxu0
        %3609 = vdwg.mxu0
        %3610 = vmatprep.subr.bf16.mxu0 0
        %3611 = vmatpush1.bf16.xpose.msra.mxu0 0
        %3612 = vmatprep.subr.bf16.mxu0 0
        %3613 = vmatpush1.bf16.xpose.msra.mxu0 0
        %3614 = vmatprep.subr.bf16.mxu0 0
        %3615 = vmatpush1.bf16.xpose.msra.mxu0 0
        %3616 = vmatprep.subr.bf16.mxu0 0
        %3617 = vmatpush1.bf16.xpose.msra.mxu0 0
        %3618 = vmatprep.subr.bf16.mxu0 0
        %3619 = vmatpush1.bf16.xpose.msra.mxu0 0
        %3620 = vmatprep.subr.bf16.mxu0 0
        %3621 = vmatpush1.bf16.xpose.msra.mxu0 0
        %3622 = vmatprep.subr.bf16.mxu0 0
        %3623 = vmatpush1.bf16.xpose.msra.mxu0 0
        %3624 = vmatprep.subr.bf16.mxu0 0
        %3625 = vmatpush1.bf16.xpose.msra.mxu0 %v3567
        %3626 = vmatprep.subr.bf16.mxu0 0
        %3627 = vmatpush2.bf16.xpose.msra.mxu0 0
        %3628 = vmatprep.subr.bf16.mxu0 0
        %3629 = vmatpush2.bf16.xpose.msra.mxu0 0
        %3630 = vmatprep.subr.bf16.mxu0 0
        %3631 = vmatpush2.bf16.xpose.msra.mxu0 0
        %3632 = vmatprep.subr.bf16.mxu0 0
        %3633 = vmatpush2.bf16.xpose.msra.mxu0 0
        %3634 = vmatprep.subr.bf16.mxu0 0
        %3635 = vmatpush2.bf16.xpose.msra.mxu0 0
        %3636 = vmatprep.subr.bf16.mxu0 0
        %3637 = vmatpush2.bf16.xpose.msra.mxu0 0
        %3638 = vmatprep.subr.bf16.mxu0 0
        %3639 = vmatpush2.bf16.xpose.msra.mxu0 0
        %3640 = vmatprep.subr.bf16.mxu0 0
        %3641 = vmatpush2.bf16.xpose.msra.mxu0 0
        %3642 = vmatprep.mubr.bf16.mxu0 0
        %3643 = vmatmul.mubr.bf16.gmra.mxu0 %v3563
        %v3644 = vpop.f32.mrf.mxu0
        %v3645 = vadd.f32 %v711, %v3644
        %v3646 = vpop.f32.mrf.mxu0
        %v3647 = vpop.f32.mrf.mxu0
        %v3648 = vpop.f32.mrf.mxu0
        %3649 = vdwg.mxu0
        %3650 = vmatprep.subr.bf16.mxu0 0
        %3651 = vmatpush1.bf16.xpose.msra.mxu0 0
        %3652 = vmatprep.subr.bf16.mxu0 0
        %3653 = vmatpush1.bf16.xpose.msra.mxu0 0
        %3654 = vmatprep.subr.bf16.mxu0 0
        %3655 = vmatpush1.bf16.xpose.msra.mxu0 0
        %3656 = vmatprep.subr.bf16.mxu0 0
        %3657 = vmatpush1.bf16.xpose.msra.mxu0 0
        %3658 = vmatprep.subr.bf16.mxu0 0
        %3659 = vmatpush1.bf16.xpose.msra.mxu0 0
        %3660 = vmatprep.subr.bf16.mxu0 0
        %3661 = vmatpush1.bf16.xpose.msra.mxu0 0
        %3662 = vmatprep.subr.bf16.mxu0 0
        %3663 = vmatpush1.bf16.xpose.msra.mxu0 0
        %3664 = vmatprep.subr.bf16.mxu0 0
        %3665 = vmatpush1.bf16.xpose.msra.mxu0 %v3568
        %3666 = vmatprep.subr.bf16.mxu0 0
        %3667 = vmatpush2.bf16.xpose.msra.mxu0 0
        %3668 = vmatprep.subr.bf16.mxu0 0
        %3669 = vmatpush2.bf16.xpose.msra.mxu0 0
        %3670 = vmatprep.subr.bf16.mxu0 0
        %3671 = vmatpush2.bf16.xpose.msra.mxu0 0
        %3672 = vmatprep.subr.bf16.mxu0 0
        %3673 = vmatpush2.bf16.xpose.msra.mxu0 0
        %3674 = vmatprep.subr.bf16.mxu0 0
        %3675 = vmatpush2.bf16.xpose.msra.mxu0 0
        %3676 = vmatprep.subr.bf16.mxu0 0
        %3677 = vmatpush2.bf16.xpose.msra.mxu0 0
        %3678 = vmatprep.subr.bf16.mxu0 0
        %3679 = vmatpush2.bf16.xpose.msra.mxu0 0
        %3680 = vmatprep.subr.bf16.mxu0 0
        %3681 = vmatpush2.bf16.xpose.msra.mxu0 0
        %3682 = vmatprep.mubr.bf16.mxu0 0
        %3683 = vmatmul.mubr.bf16.gmra.mxu0 %v3564
        %v3684 = vpop.f32.mrf.mxu0
        %v3685 = vadd.f32 %v712, %v3684
        %v3686 = vpop.f32.mrf.mxu0
        %v3687 = vpop.f32.mrf.mxu0
        %v3688 = vpop.f32.mrf.mxu0
        %3689 = vdwg.mxu0
        %3690 = vmatprep.subr.bf16.mxu0 0
        %3691 = vmatpush1.bf16.xpose.msra.mxu0 0
        %3692 = vmatprep.subr.bf16.mxu0 0
        %3693 = vmatpush1.bf16.xpose.msra.mxu0 0
        %3694 = vmatprep.subr.bf16.mxu0 0
        %3695 = vmatpush1.bf16.xpose.msra.mxu0 0
        %3696 = vmatprep.subr.bf16.mxu0 0
        %3697 = vmatpush1.bf16.xpose.msra.mxu0 0
        %3698 = vmatprep.subr.bf16.mxu0 0
        %3699 = vmatpush1.bf16.xpose.msra.mxu0 0
        %3700 = vmatprep.subr.bf16.mxu0 0
        %3701 = vmatpush1.bf16.xpose.msra.mxu0 0
        %3702 = vmatprep.subr.bf16.mxu0 0
        %3703 = vmatpush1.bf16.xpose.msra.mxu0 0
        %3704 = vmatprep.subr.bf16.mxu0 0
        %3705 = vmatpush1.bf16.xpose.msra.mxu0 %v3569
        %3706 = vmatprep.subr.bf16.mxu0 0
        %3707 = vmatpush2.bf16.xpose.msra.mxu0 0
        %3708 = vmatprep.subr.bf16.mxu0 0
        %3709 = vmatpush2.bf16.xpose.msra.mxu0 0
        %3710 = vmatprep.subr.bf16.mxu0 0
        %3711 = vmatpush2.bf16.xpose.msra.mxu0 0
        %3712 = vmatprep.subr.bf16.mxu0 0
        %3713 = vmatpush2.bf16.xpose.msra.mxu0 0
        %3714 = vmatprep.subr.bf16.mxu0 0
        %3715 = vmatpush2.bf16.xpose.msra.mxu0 0
        %3716 = vmatprep.subr.bf16.mxu0 0
        %3717 = vmatpush2.bf16.xpose.msra.mxu0 0
        %3718 = vmatprep.subr.bf16.mxu0 0
        %3719 = vmatpush2.bf16.xpose.msra.mxu0 0
        %3720 = vmatprep.subr.bf16.mxu0 0
        %3721 = vmatpush2.bf16.xpose.msra.mxu0 0
        %3722 = vmatprep.mubr.bf16.mxu0 0
        %3723 = vmatmul.mubr.bf16.gmra.mxu0 %v3565
        %v3724 = vpop.f32.mrf.mxu0
        %v3725 = vadd.f32 %v713, %v3724
        %v3726 = vpop.f32.mrf.mxu0
        %v3727 = vpop.f32.mrf.mxu0
        %v3728 = vpop.f32.mrf.mxu0
        %3729 = vdwg.mxu0
        %v3730 = vsel %vm1799, %v3605, -inf
        %3731 = vmax.xlane.f32.xlu0 %v3730
        %v3732 = vpop.xlane.xlu0 %3731
        %v3733 = vsel %vm1799, %v3645, -inf
        %3734 = vmax.xlane.f32.xlu0 %v3733
        %v3735 = vpop.xlane.xlu0 %3734
        %v3736 = vsel %vm1799, %v3685, -inf
        %3737 = vmax.xlane.f32.xlu0 %v3736
        %v3738 = vpop.xlane.xlu0 %3737
        %v3739 = vsel %vm1799, %v3725, -inf
        %3740 = vmax.xlane.f32.xlu0 %v3739
        %v3741 = vpop.xlane.xlu0 %3740
        %v3742 = vsub.f32 %v3605, %v3732
        %v3743 = vsub.f32 %v3645, %v3735
        %v3744 = vsub.f32 %v3685, %v3738
        %v3745 = vsub.f32 %v3725, %v3741
        %v3746 = vmul.f32 %v3742, 1.442695
        %v3747 = vpow.pop %v3746
        %v3748 = vmul.f32 %v3743, 1.442695
        %v3749 = vpow.pop %v3748
        %v3750 = vmul.f32 %v3744, 1.442695
        %v3751 = vpow.pop %v3750
        %v3752 = vmul.f32 %v3745, 1.442695
        %v3753 = vpow.pop %v3752
        %v3754 = vsel %vm1799, %v3747, 0.0
        %3755 = vadd.xlane.f32.xlu0 %v3754
        %v3756 = vpop.xlane.xlu0 %3755
        %v3757 = vsel %vm1799, %v3749, 0.0
        %3758 = vadd.xlane.f32.xlu0 %v3757
        %v3759 = vpop.xlane.xlu0 %3758
        %v3760 = vsel %vm1799, %v3751, 0.0
        %3761 = vadd.xlane.f32.xlu0 %v3760
        %v3762 = vpop.xlane.xlu0 %3761
        %v3763 = vsel %vm1799, %v3753, 0.0
        %3764 = vadd.xlane.f32.xlu0 %v3763
        %v3765 = vpop.xlane.xlu0 %3764
        %v3766 = vrcp.pop %v3756
        %v3767 = vrcp.pop %v3759
        %v3768 = vrcp.pop %v3762
        %v3769 = vrcp.pop %v3765
        %v3770 = vmul.f32 %v3747, %v3766
        %v3771 = vmul.f32 %v3749, %v3767
        %v3772 = vmul.f32 %v3751, %v3768
        %v3773 = vmul.f32 %v3753, %v3769
        %v3774 = vpack.c.bf16 %v3770, %v3770
        %v3775 = vpack.c.bf16 %v3771, %v3771
        %v3776 = vpack.c.bf16 %v3772, %v3772
        %v3777 = vpack.c.bf16 %v3773, %v3773
        %v3778 = vpack.c.bf16 %v3515, %v3515
        %v3779 = vpack.c.bf16 %v3517, %v3517
        %v3780 = vpack.c.bf16 %v3556, %v3556
        %v3781 = vpack.c.bf16 %v3558, %v3558
        %v3783 = vsel %vm1799, %v3774, 0
        %v3786 = vsel %vm1855, %v3778, 0
        %3788 = vmatprep.subr.bf16.mxu0 0
        %3789 = vmatpush1.bf16.msra.mxu0 0
        %3790 = vmatprep.subr.bf16.mxu0 0
        %3791 = vmatpush1.bf16.msra.mxu0 0
        %3792 = vmatprep.subr.bf16.mxu0 0
        %3793 = vmatpush1.bf16.msra.mxu0 0
        %3794 = vmatprep.subr.bf16.mxu0 0
        %3795 = vmatpush1.bf16.msra.mxu0 0
        %3796 = vmatprep.subr.bf16.mxu0 0
        %3797 = vmatpush1.bf16.msra.mxu0 0
        %3798 = vmatprep.subr.bf16.mxu0 0
        %3799 = vmatpush1.bf16.msra.mxu0 0
        %3800 = vmatprep.subr.bf16.mxu0 0
        %3801 = vmatpush1.bf16.msra.mxu0 0
        %3802 = vmatprep.subr.bf16.mxu0 0
        %3803 = vmatpush1.bf16.msra.mxu0 %v3786
        %3804 = vmatprep.subr.bf16.mxu0 0
        %3805 = vmatpush2.bf16.msra.mxu0 0
        %3806 = vmatprep.subr.bf16.mxu0 0
        %3807 = vmatpush2.bf16.msra.mxu0 0
        %3808 = vmatprep.subr.bf16.mxu0 0
        %3809 = vmatpush2.bf16.msra.mxu0 0
        %3810 = vmatprep.subr.bf16.mxu0 0
        %3811 = vmatpush2.bf16.msra.mxu0 0
        %3812 = vmatprep.subr.bf16.mxu0 0
        %3813 = vmatpush2.bf16.msra.mxu0 0
        %3814 = vmatprep.subr.bf16.mxu0 0
        %3815 = vmatpush2.bf16.msra.mxu0 0
        %3816 = vmatprep.subr.bf16.mxu0 0
        %3817 = vmatpush2.bf16.msra.mxu0 0
        %3818 = vmatprep.subr.bf16.mxu0 0
        %3819 = vmatpush2.bf16.msra.mxu0 0
        %3820 = vmatprep.mubr.bf16.mxu0 0
        %3821 = vmatmul.mubr.bf16.gmra.mxu0 %v3783
        %v3822 = vpop.f32.mrf.mxu0
        %v3823 = vadd.f32 0.0, %v3822
        %v3824 = vpop.f32.mrf.mxu0
        %v3825 = vpop.f32.mrf.mxu0
        %v3826 = vpop.f32.mrf.mxu0
        %3827 = vdwg.mxu0
        %v3829 = vsel %vm1799, %v3775, 0
        %v3832 = vsel %vm1855, %v3779, 0
        %3834 = vmatprep.subr.bf16.mxu0 0
        %3835 = vmatpush1.bf16.msra.mxu0 0
        %3836 = vmatprep.subr.bf16.mxu0 0
        %3837 = vmatpush1.bf16.msra.mxu0 0
        %3838 = vmatprep.subr.bf16.mxu0 0
        %3839 = vmatpush1.bf16.msra.mxu0 0
        %3840 = vmatprep.subr.bf16.mxu0 0
        %3841 = vmatpush1.bf16.msra.mxu0 0
        %3842 = vmatprep.subr.bf16.mxu0 0
        %3843 = vmatpush1.bf16.msra.mxu0 0
        %3844 = vmatprep.subr.bf16.mxu0 0
        %3845 = vmatpush1.bf16.msra.mxu0 0
        %3846 = vmatprep.subr.bf16.mxu0 0
        %3847 = vmatpush1.bf16.msra.mxu0 0
        %3848 = vmatprep.subr.bf16.mxu0 0
        %3849 = vmatpush1.bf16.msra.mxu0 %v3832
        %3850 = vmatprep.subr.bf16.mxu0 0
        %3851 = vmatpush2.bf16.msra.mxu0 0
        %3852 = vmatprep.subr.bf16.mxu0 0
        %3853 = vmatpush2.bf16.msra.mxu0 0
        %3854 = vmatprep.subr.bf16.mxu0 0
        %3855 = vmatpush2.bf16.msra.mxu0 0
        %3856 = vmatprep.subr.bf16.mxu0 0
        %3857 = vmatpush2.bf16.msra.mxu0 0
        %3858 = vmatprep.subr.bf16.mxu0 0
        %3859 = vmatpush2.bf16.msra.mxu0 0
        %3860 = vmatprep.subr.bf16.mxu0 0
        %3861 = vmatpush2.bf16.msra.mxu0 0
        %3862 = vmatprep.subr.bf16.mxu0 0
        %3863 = vmatpush2.bf16.msra.mxu0 0
        %3864 = vmatprep.subr.bf16.mxu0 0
        %3865 = vmatpush2.bf16.msra.mxu0 0
        %3866 = vmatprep.mubr.bf16.mxu0 0
        %3867 = vmatmul.mubr.bf16.gmra.mxu0 %v3829
        %v3868 = vpop.f32.mrf.mxu0
        %v3869 = vadd.f32 0.0, %v3868
        %v3870 = vpop.f32.mrf.mxu0
        %v3871 = vpop.f32.mrf.mxu0
        %v3872 = vpop.f32.mrf.mxu0
        %3873 = vdwg.mxu0
        %v3875 = vsel %vm1799, %v3776, 0
        %v3878 = vsel %vm1855, %v3780, 0
        %3880 = vmatprep.subr.bf16.mxu0 0
        %3881 = vmatpush1.bf16.msra.mxu0 0
        %3882 = vmatprep.subr.bf16.mxu0 0
        %3883 = vmatpush1.bf16.msra.mxu0 0
        %3884 = vmatprep.subr.bf16.mxu0 0
        %3885 = vmatpush1.bf16.msra.mxu0 0
        %3886 = vmatprep.subr.bf16.mxu0 0
        %3887 = vmatpush1.bf16.msra.mxu0 0
        %3888 = vmatprep.subr.bf16.mxu0 0
        %3889 = vmatpush1.bf16.msra.mxu0 0
        %3890 = vmatprep.subr.bf16.mxu0 0
        %3891 = vmatpush1.bf16.msra.mxu0 0
        %3892 = vmatprep.subr.bf16.mxu0 0
        %3893 = vmatpush1.bf16.msra.mxu0 0
        %3894 = vmatprep.subr.bf16.mxu0 0
        %3895 = vmatpush1.bf16.msra.mxu0 %v3878
        %3896 = vmatprep.subr.bf16.mxu0 0
        %3897 = vmatpush2.bf16.msra.mxu0 0
        %3898 = vmatprep.subr.bf16.mxu0 0
        %3899 = vmatpush2.bf16.msra.mxu0 0
        %3900 = vmatprep.subr.bf16.mxu0 0
        %3901 = vmatpush2.bf16.msra.mxu0 0
        %3902 = vmatprep.subr.bf16.mxu0 0
        %3903 = vmatpush2.bf16.msra.mxu0 0
        %3904 = vmatprep.subr.bf16.mxu0 0
        %3905 = vmatpush2.bf16.msra.mxu0 0
        %3906 = vmatprep.subr.bf16.mxu0 0
        %3907 = vmatpush2.bf16.msra.mxu0 0
        %3908 = vmatprep.subr.bf16.mxu0 0
        %3909 = vmatpush2.bf16.msra.mxu0 0
        %3910 = vmatprep.subr.bf16.mxu0 0
        %3911 = vmatpush2.bf16.msra.mxu0 0
        %3912 = vmatprep.mubr.bf16.mxu0 0
        %3913 = vmatmul.mubr.bf16.gmra.mxu0 %v3875
        %v3914 = vpop.f32.mrf.mxu0
        %v3915 = vadd.f32 0.0, %v3914
        %v3916 = vpop.f32.mrf.mxu0
        %v3917 = vpop.f32.mrf.mxu0
        %v3918 = vpop.f32.mrf.mxu0
        %3919 = vdwg.mxu0
        %v3921 = vsel %vm1799, %v3777, 0
        %v3924 = vsel %vm1855, %v3781, 0
        %3926 = vmatprep.subr.bf16.mxu0 0
        %3927 = vmatpush1.bf16.msra.mxu0 0
        %3928 = vmatprep.subr.bf16.mxu0 0
        %3929 = vmatpush1.bf16.msra.mxu0 0
        %3930 = vmatprep.subr.bf16.mxu0 0
        %3931 = vmatpush1.bf16.msra.mxu0 0
        %3932 = vmatprep.subr.bf16.mxu0 0
        %3933 = vmatpush1.bf16.msra.mxu0 0
        %3934 = vmatprep.subr.bf16.mxu0 0
        %3935 = vmatpush1.bf16.msra.mxu0 0
        %3936 = vmatprep.subr.bf16.mxu0 0
        %3937 = vmatpush1.bf16.msra.mxu0 0
        %3938 = vmatprep.subr.bf16.mxu0 0
        %3939 = vmatpush1.bf16.msra.mxu0 0
        %3940 = vmatprep.subr.bf16.mxu0 0
        %3941 = vmatpush1.bf16.msra.mxu0 %v3924
        %3942 = vmatprep.subr.bf16.mxu0 0
        %3943 = vmatpush2.bf16.msra.mxu0 0
        %3944 = vmatprep.subr.bf16.mxu0 0
        %3945 = vmatpush2.bf16.msra.mxu0 0
        %3946 = vmatprep.subr.bf16.mxu0 0
        %3947 = vmatpush2.bf16.msra.mxu0 0
        %3948 = vmatprep.subr.bf16.mxu0 0
        %3949 = vmatpush2.bf16.msra.mxu0 0
        %3950 = vmatprep.subr.bf16.mxu0 0
        %3951 = vmatpush2.bf16.msra.mxu0 0
        %3952 = vmatprep.subr.bf16.mxu0 0
        %3953 = vmatpush2.bf16.msra.mxu0 0
        %3954 = vmatprep.subr.bf16.mxu0 0
        %3955 = vmatpush2.bf16.msra.mxu0 0
        %3956 = vmatprep.subr.bf16.mxu0 0
        %3957 = vmatpush2.bf16.msra.mxu0 0
        %3958 = vmatprep.mubr.bf16.mxu0 0
        %3959 = vmatmul.mubr.bf16.gmra.mxu0 %v3921
        %v3960 = vpop.f32.mrf.mxu0
        %v3961 = vadd.f32 0.0, %v3960
        %v3962 = vpop.f32.mrf.mxu0
        %v3963 = vpop.f32.mrf.mxu0
        %v3964 = vpop.f32.mrf.mxu0
        %3965 = vdwg.mxu0
        %v3966 = vpack.c.bf16 %v3823, %v3823
        %v3967 = vpack.c.bf16 %v3869, %v3869
        %v3968 = vpack.c.bf16 %v3915, %v3915
        %v3969 = vpack.c.bf16 %v3961, %v3961
        %s3970 = scalar_lea.vmem [#allocation10], 256
        %v3971 = vld [vmem:[%s3970] sm:$0xf]
        %v3972 = vld [vmem:[%s3970 + $0x4] sm:$0xf]
        %v3973 = vld [vmem:[%s3970 + $0x8] sm:$0xf]
        %v3974 = vld [vmem:[%s3970 + $0xc] sm:$0xf]
        %v3975 = vld [vmem:[%s3970 + $0x10] sm:$0xf]
        %v3976 = vld [vmem:[%s3970 + $0x14] sm:$0xf]
        %v3977 = vld [vmem:[%s3970 + $0x18] sm:$0xf]
        %v3978 = vld [vmem:[%s3970 + $0x1c] sm:$0xf]
        %v3979 = vld [vmem:[%s3970 + $0x20] sm:$0xf]
        %v3980 = vld [vmem:[%s3970 + $0x24] sm:$0xf]
        %v3981 = vld [vmem:[%s3970 + $0x28] sm:$0xf]
        %v3982 = vld [vmem:[%s3970 + $0x2c] sm:$0xf]
        %v3983 = vld [vmem:[%s3970 + $0x30] sm:$0xf]
        %v3984 = vld [vmem:[%s3970 + $0x34] sm:$0xf]
        %v3985 = vld [vmem:[%s3970 + $0x38] sm:$0xf]
        %v3986 = vld [vmem:[%s3970 + $0x3c] sm:$0xf]
        %v3987 = vld [vmem:[%s3970 + $0x40] sm:$0xf]
        %v3988 = vld [vmem:[%s3970 + $0x44] sm:$0xf]
        %v3989 = vld [vmem:[%s3970 + $0x48] sm:$0xf]
        %v3990 = vld [vmem:[%s3970 + $0x4c] sm:$0xf]
        %v3991 = vld [vmem:[%s3970 + $0x50] sm:$0xf]
        %v3992 = vld [vmem:[%s3970 + $0x54] sm:$0xf]
        %v3993 = vld [vmem:[%s3970 + $0x58] sm:$0xf]
        %v3994 = vld [vmem:[%s3970 + $0x5c] sm:$0xf]
        %v3995 = vld [vmem:[%s3970 + $0x60] sm:$0xf]
        %v3996 = vld [vmem:[%s3970 + $0x64] sm:$0xf]
        %v3997 = vld [vmem:[%s3970 + $0x68] sm:$0xf]
        %v3998 = vld [vmem:[%s3970 + $0x6c] sm:$0xf]
        %v3999 = vld [vmem:[%s3970 + $0x70] sm:$0xf]
        %v4000 = vld [vmem:[%s3970 + $0x74] sm:$0xf]
        %v4001 = vld [vmem:[%s3970 + $0x78] sm:$0xf]
        %v4002 = vld [vmem:[%s3970 + $0x7c] sm:$0xf]
        %v4003 = vld [vmem:[%s3970 + $0x80] sm:$0xf]
        %v4004 = vld [vmem:[%s3970 + $0x84] sm:$0xf]
        %v4005 = vld [vmem:[%s3970 + $0x88] sm:$0xf]
        %v4006 = vld [vmem:[%s3970 + $0x8c] sm:$0xf]
        %v4007 = vld [vmem:[%s3970 + $0x90] sm:$0xf]
        %v4008 = vld [vmem:[%s3970 + $0x94] sm:$0xf]
        %v4009 = vld [vmem:[%s3970 + $0x98] sm:$0xf]
        %v4010 = vld [vmem:[%s3970 + $0x9c] sm:$0xf]
        %v4011 = vld [vmem:[%s3970 + $0xa0] sm:$0xf]
        %v4012 = vld [vmem:[%s3970 + $0xa4] sm:$0xf]
        %v4013 = vld [vmem:[%s3970 + $0xa8] sm:$0xf]
        %v4014 = vld [vmem:[%s3970 + $0xac] sm:$0xf]
        %v4015 = vld [vmem:[%s3970 + $0xb0] sm:$0xf]
        %v4016 = vld [vmem:[%s3970 + $0xb4] sm:$0xf]
        %v4017 = vld [vmem:[%s3970 + $0xb8] sm:$0xf]
        %v4018 = vld [vmem:[%s3970 + $0xbc] sm:$0xf]
        %v4019 = vld [vmem:[%s3970 + $0xc0] sm:$0xf]
        %v4020 = vld [vmem:[%s3970 + $0xc4] sm:$0xf]
        %v4021 = vld [vmem:[%s3970 + $0xc8] sm:$0xf]
        %v4022 = vld [vmem:[%s3970 + $0xcc] sm:$0xf]
        %v4023 = vld [vmem:[%s3970 + $0xd0] sm:$0xf]
        %v4024 = vld [vmem:[%s3970 + $0xd4] sm:$0xf]
        %v4025 = vld [vmem:[%s3970 + $0xd8] sm:$0xf]
        %v4026 = vld [vmem:[%s3970 + $0xdc] sm:$0xf]
        %v4027 = vld [vmem:[%s3970 + $0xe0] sm:$0xf]
        %v4028 = vld [vmem:[%s3970 + $0xe4] sm:$0xf]
        %v4029 = vld [vmem:[%s3970 + $0xe8] sm:$0xf]
        %v4030 = vld [vmem:[%s3970 + $0xec] sm:$0xf]
        %v4031 = vld [vmem:[%s3970 + $0xf0] sm:$0xf]
        %v4032 = vld [vmem:[%s3970 + $0xf4] sm:$0xf]
        %v4033 = vld [vmem:[%s3970 + $0xf8] sm:$0xf]
        %v4034 = vld [vmem:[%s3970 + $0xfc] sm:$0xf]
        %s4035 = scalar_lea.vmem [#allocation11], 1
        %v4036 = vld [vmem:[%s4035] sm:$0x1]
        %v4038 = vlaneseq
        %v4039 = vshrl.u32 %v4038, 7
        %v4040 = vsub.s32 0, %v4039
        %v4041 = vrot.slane %v4036, %v4040
        %v4107 = vunpack.c.l.b16 %v3971
        %v4108 = vunpack.c.l.b16 %v3972
        %v4109 = vunpack.c.l.b16 %v3973
        %v4110 = vunpack.c.l.b16 %v3974
        %v4111 = vunpack.c.l.b16 %v3975
        %v4112 = vunpack.c.l.b16 %v3976
        %v4113 = vunpack.c.l.b16 %v3977
        %v4114 = vunpack.c.l.b16 %v3978
        %v4115 = vunpack.c.l.b16 %v3979
        %v4116 = vunpack.c.l.b16 %v3980
        %v4117 = vunpack.c.l.b16 %v3981
        %v4118 = vunpack.c.l.b16 %v3982
        %v4119 = vunpack.c.l.b16 %v3983
        %v4120 = vunpack.c.l.b16 %v3984
        %v4121 = vunpack.c.l.b16 %v3985
        %v4122 = vunpack.c.l.b16 %v3986
        %v4123 = vunpack.c.l.b16 %v3987
        %v4124 = vunpack.c.l.b16 %v3988
        %v4125 = vunpack.c.l.b16 %v3989
        %v4126 = vunpack.c.l.b16 %v3990
        %v4127 = vunpack.c.l.b16 %v3991
        %v4128 = vunpack.c.l.b16 %v3992
        %v4129 = vunpack.c.l.b16 %v3993
        %v4130 = vunpack.c.l.b16 %v3994
        %v4131 = vunpack.c.l.b16 %v3995
        %v4132 = vunpack.c.l.b16 %v3996
        %v4133 = vunpack.c.l.b16 %v3997
        %v4134 = vunpack.c.l.b16 %v3998
        %v4135 = vunpack.c.l.b16 %v3999
        %v4136 = vunpack.c.l.b16 %v4000
        %v4137 = vunpack.c.l.b16 %v4001
        %v4138 = vunpack.c.l.b16 %v4002
        %v4139 = vunpack.c.l.b16 %v4003
        %v4140 = vunpack.c.l.b16 %v4004
        %v4141 = vunpack.c.l.b16 %v4005
        %v4142 = vunpack.c.l.b16 %v4006
        %v4143 = vunpack.c.l.b16 %v4007
        %v4144 = vunpack.c.l.b16 %v4008
        %v4145 = vunpack.c.l.b16 %v4009
        %v4146 = vunpack.c.l.b16 %v4010
        %v4147 = vunpack.c.l.b16 %v4011
        %v4148 = vunpack.c.l.b16 %v4012
        %v4149 = vunpack.c.l.b16 %v4013
        %v4150 = vunpack.c.l.b16 %v4014
        %v4151 = vunpack.c.l.b16 %v4015
        %v4152 = vunpack.c.l.b16 %v4016
        %v4153 = vunpack.c.l.b16 %v4017
        %v4154 = vunpack.c.l.b16 %v4018
        %v4155 = vunpack.c.l.b16 %v4019
        %v4156 = vunpack.c.l.b16 %v4020
        %v4157 = vunpack.c.l.b16 %v4021
        %v4158 = vunpack.c.l.b16 %v4022
        %v4159 = vunpack.c.l.b16 %v4023
        %v4160 = vunpack.c.l.b16 %v4024
        %v4161 = vunpack.c.l.b16 %v4025
        %v4162 = vunpack.c.l.b16 %v4026
        %v4163 = vunpack.c.l.b16 %v4027
        %v4164 = vunpack.c.l.b16 %v4028
        %v4165 = vunpack.c.l.b16 %v4029
        %v4166 = vunpack.c.l.b16 %v4030
        %v4167 = vunpack.c.l.b16 %v4031
        %v4168 = vunpack.c.l.b16 %v4032
        %v4169 = vunpack.c.l.b16 %v4033
        %v4170 = vunpack.c.l.b16 %v4034
        %v4171 = vpack.c.b16 %v4108, %v4107
        %v4172 = vpack.c.b16 %v4110, %v4109
        %v4173 = vpack.c.b16 %v4112, %v4111
        %v4174 = vpack.c.b16 %v4114, %v4113
        %v4175 = vpack.c.b16 %v4116, %v4115
        %v4176 = vpack.c.b16 %v4118, %v4117
        %v4177 = vpack.c.b16 %v4120, %v4119
        %v4178 = vpack.c.b16 %v4122, %v4121
        %v4179 = vpack.c.b16 %v4124, %v4123
        %v4180 = vpack.c.b16 %v4126, %v4125
        %v4181 = vpack.c.b16 %v4128, %v4127
        %v4182 = vpack.c.b16 %v4130, %v4129
        %v4183 = vpack.c.b16 %v4132, %v4131
        %v4184 = vpack.c.b16 %v4134, %v4133
        %v4185 = vpack.c.b16 %v4136, %v4135
        %v4186 = vpack.c.b16 %v4138, %v4137
        %v4187 = vpack.c.b16 %v4140, %v4139
        %v4188 = vpack.c.b16 %v4142, %v4141
        %v4189 = vpack.c.b16 %v4144, %v4143
        %v4190 = vpack.c.b16 %v4146, %v4145
        %v4191 = vpack.c.b16 %v4148, %v4147
        %v4192 = vpack.c.b16 %v4150, %v4149
        %v4193 = vpack.c.b16 %v4152, %v4151
        %v4194 = vpack.c.b16 %v4154, %v4153
        %v4195 = vpack.c.b16 %v4156, %v4155
        %v4196 = vpack.c.b16 %v4158, %v4157
        %v4197 = vpack.c.b16 %v4160, %v4159
        %v4198 = vpack.c.b16 %v4162, %v4161
        %v4199 = vpack.c.b16 %v4164, %v4163
        %v4200 = vpack.c.b16 %v4166, %v4165
        %v4201 = vpack.c.b16 %v4168, %v4167
        %v4202 = vpack.c.b16 %v4170, %v4169
        %4235 = vmatprep.subr.bf16.mxu0 0
        %4236 = vmatpush1.bf16.msra.mxu0 %v4178
        %4237 = vmatprep.subr.bf16.mxu0 0
        %4238 = vmatpush1.bf16.msra.mxu0 %v4177
        %4239 = vmatprep.subr.bf16.mxu0 0
        %4240 = vmatpush1.bf16.msra.mxu0 %v4176
        %4241 = vmatprep.subr.bf16.mxu0 0
        %4242 = vmatpush1.bf16.msra.mxu0 %v4175
        %4243 = vmatprep.subr.bf16.mxu0 0
        %4244 = vmatpush1.bf16.msra.mxu0 %v4174
        %4245 = vmatprep.subr.bf16.mxu0 0
        %4246 = vmatpush1.bf16.msra.mxu0 %v4173
        %4247 = vmatprep.subr.bf16.mxu0 0
        %4248 = vmatpush1.bf16.msra.mxu0 %v4172
        %4249 = vmatprep.subr.bf16.mxu0 0
        %4250 = vmatpush1.bf16.msra.mxu0 %v4171
        %4251 = vmatprep.subr.bf16.mxu0 0
        %4252 = vmatpush2.bf16.msra.mxu0 %v4186
        %4253 = vmatprep.subr.bf16.mxu0 0
        %4254 = vmatpush2.bf16.msra.mxu0 %v4185
        %4255 = vmatprep.subr.bf16.mxu0 0
        %4256 = vmatpush2.bf16.msra.mxu0 %v4184
        %4257 = vmatprep.subr.bf16.mxu0 0
        %4258 = vmatpush2.bf16.msra.mxu0 %v4183
        %4259 = vmatprep.subr.bf16.mxu0 0
        %4260 = vmatpush2.bf16.msra.mxu0 %v4182
        %4261 = vmatprep.subr.bf16.mxu0 0
        %4262 = vmatpush2.bf16.msra.mxu0 %v4181
        %4263 = vmatprep.subr.bf16.mxu0 0
        %4264 = vmatpush2.bf16.msra.mxu0 %v4180
        %4265 = vmatprep.subr.bf16.mxu0 0
        %4266 = vmatpush2.bf16.msra.mxu0 %v4179
        %4267 = vmatprep.mubr.bf16.mxu0 %v3967
        %4268 = vmatmul.mubr.bf16.gmra.mxu0 %v3966
        %v4269 = vpop.f32.mrf.mxu0
        %v4270 = vadd.f32 %v4041, %v4269
        %v4271 = vpop.f32.mrf.mxu0
        %v4272 = vpop.f32.mrf.mxu0
        %v4273 = vpop.f32.mrf.mxu0
        %4274 = vdwg.mxu0
        %4275 = vmatprep.subr.bf16.mxu0 0
        %4276 = vmatpush1.bf16.msra.mxu0 %v4194
        %4277 = vmatprep.subr.bf16.mxu0 0
        %4278 = vmatpush1.bf16.msra.mxu0 %v4193
        %4279 = vmatprep.subr.bf16.mxu0 0
        %4280 = vmatpush1.bf16.msra.mxu0 %v4192
        %4281 = vmatprep.subr.bf16.mxu0 0
        %4282 = vmatpush1.bf16.msra.mxu0 %v4191
        %4283 = vmatprep.subr.bf16.mxu0 0
        %4284 = vmatpush1.bf16.msra.mxu0 %v4190
        %4285 = vmatprep.subr.bf16.mxu0 0
        %4286 = vmatpush1.bf16.msra.mxu0 %v4189
        %4287 = vmatprep.subr.bf16.mxu0 0
        %4288 = vmatpush1.bf16.msra.mxu0 %v4188
        %4289 = vmatprep.subr.bf16.mxu0 0
        %4290 = vmatpush1.bf16.msra.mxu0 %v4187
        %4291 = vmatprep.subr.bf16.mxu0 0
        %4292 = vmatpush2.bf16.msra.mxu0 %v4202
        %4293 = vmatprep.subr.bf16.mxu0 0
        %4294 = vmatpush2.bf16.msra.mxu0 %v4201
        %4295 = vmatprep.subr.bf16.mxu0 0
        %4296 = vmatpush2.bf16.msra.mxu0 %v4200
        %4297 = vmatprep.subr.bf16.mxu0 0
        %4298 = vmatpush2.bf16.msra.mxu0 %v4199
        %4299 = vmatprep.subr.bf16.mxu0 0
        %4300 = vmatpush2.bf16.msra.mxu0 %v4198
        %4301 = vmatprep.subr.bf16.mxu0 0
        %4302 = vmatpush2.bf16.msra.mxu0 %v4197
        %4303 = vmatprep.subr.bf16.mxu0 0
        %4304 = vmatpush2.bf16.msra.mxu0 %v4196
        %4305 = vmatprep.subr.bf16.mxu0 0
        %4306 = vmatpush2.bf16.msra.mxu0 %v4195
        %4307 = vmatprep.mubr.bf16.mxu0 %v3969
        %4308 = vmatmul.mubr.bf16.gmra.mxu0 %v3968
        %v4309 = vpop.f32.mrf.mxu0
        %v4310 = vadd.f32 %v4270, %v4309
        %v4311 = vpop.f32.mrf.mxu0
        %v4312 = vpop.f32.mrf.mxu0
        %v4313 = vpop.f32.mrf.mxu0
        %4314 = vdwg.mxu0
        %v4315 = vadd.f32 %v2640, %v4310
        %s4316 = scalar_lea.vmem [#allocation13], 1
        %v4317 = vld [vmem:[%s4316] sm:$0x1]
        %s4318 = scalar_lea.vmem [#allocation14], 1
        %v4319 = vld [vmem:[%s4318] sm:$0x1]
        %4320 = vadd.xlane.f32.xlu0 %v4315
        %v4321 = vpop.xlane.xlu0 %4320
        %v4322 = vmul.f32 %v4321, 0.03125
        %v4323 = vmul.f32 %v4315, %v4315
        %4324 = vadd.xlane.f32.xlu0 %v4323
        %v4325 = vpop.xlane.xlu0 %4324
        %v4326 = vmul.f32 %v4325, 0.03125
        %v4327 = vmul.f32 %v4322, %v4322
        %v4328 = vsub.f32 %v4326, %v4327
        %v4329 = vmax.f32 %v4328, 0.0
        %v4330 = vsub.f32 %v4315, %v4322
        %v4331 = vadd.f32 %v4329, 1e-06
        %v4332 = vrsqrt.pop %v4331
        %v4333 = vmul.f32 %v4330, %v4332
        %v4335 = vlaneseq
        %v4336 = vshrl.u32 %v4335, 7
        %v4337 = vsub.s32 0, %v4336
        %v4338 = vrot.slane %v4317, %v4337
        %v4340 = vmul.f32 %v4333, %v4338
        %v4342 = vlaneseq
        %v4343 = vshrl.u32 %v4342, 7
        %v4344 = vsub.s32 0, %v4343
        %v4345 = vrot.slane %v4319, %v4344
        %v4347 = vadd.f32 %v4340, %v4345
        %v4348 = vpack.c.bf16 %v4347, %v4347
        %s4349 = scalar_lea.vmem %s10, 64
        %v4350 = vld [vmem:[%s4349] sm:$0xf]
        %v4351 = vld [vmem:[%s4349 + $0x4] sm:$0xf]
        %v4352 = vld [vmem:[%s4349 + $0x8] sm:$0xf]
        %v4353 = vld [vmem:[%s4349 + $0xc] sm:$0xf]
        %v4354 = vld [vmem:[%s4349 + $0x10] sm:$0xf]
        %v4355 = vld [vmem:[%s4349 + $0x14] sm:$0xf]
        %v4356 = vld [vmem:[%s4349 + $0x18] sm:$0xf]
        %v4357 = vld [vmem:[%s4349 + $0x1c] sm:$0xf]
        %v4358 = vld [vmem:[%s4349 + $0x20] sm:$0xf]
        %v4359 = vld [vmem:[%s4349 + $0x24] sm:$0xf]
        %v4360 = vld [vmem:[%s4349 + $0x28] sm:$0xf]
        %v4361 = vld [vmem:[%s4349 + $0x2c] sm:$0xf]
        %v4362 = vld [vmem:[%s4349 + $0x30] sm:$0xf]
        %v4363 = vld [vmem:[%s4349 + $0x34] sm:$0xf]
        %v4364 = vld [vmem:[%s4349 + $0x38] sm:$0xf]
        %v4365 = vld [vmem:[%s4349 + $0x3c] sm:$0xf]
        %s4366 = scalar_lea.vmem %s11, 1
        %v4367 = vld [vmem:[%s4366] sm:$0x1]
        %v4369 = vlaneseq
        %v4370 = vshrl.u32 %v4369, 7
        %v4371 = vsub.s32 0, %v4370
        %v4372 = vrot.slane %v4367, %v4371
        %v4390 = vunpack.c.l.b16 %v4350
        %v4391 = vunpack.c.l.b16 %v4351
        %v4392 = vunpack.c.l.b16 %v4352
        %v4393 = vunpack.c.l.b16 %v4353
        %v4394 = vunpack.c.l.b16 %v4354
        %v4395 = vunpack.c.l.b16 %v4355
        %v4396 = vunpack.c.l.b16 %v4356
        %v4397 = vunpack.c.l.b16 %v4357
        %v4398 = vunpack.c.l.b16 %v4358
        %v4399 = vunpack.c.l.b16 %v4359
        %v4400 = vunpack.c.l.b16 %v4360
        %v4401 = vunpack.c.l.b16 %v4361
        %v4402 = vunpack.c.l.b16 %v4362
        %v4403 = vunpack.c.l.b16 %v4363
        %v4404 = vunpack.c.l.b16 %v4364
        %v4405 = vunpack.c.l.b16 %v4365
        %v4406 = vpack.c.b16 %v4391, %v4390
        %v4407 = vpack.c.b16 %v4393, %v4392
        %v4408 = vpack.c.b16 %v4395, %v4394
        %v4409 = vpack.c.b16 %v4397, %v4396
        %v4410 = vpack.c.b16 %v4399, %v4398
        %v4411 = vpack.c.b16 %v4401, %v4400
        %v4412 = vpack.c.b16 %v4403, %v4402
        %v4413 = vpack.c.b16 %v4405, %v4404
        %4422 = vmatprep.subr.bf16.mxu0 0
        %4423 = vmatpush1.bf16.msra.mxu0 %v4413
        %4424 = vmatprep.subr.bf16.mxu0 0
        %4425 = vmatpush1.bf16.msra.mxu0 %v4412
        %4426 = vmatprep.subr.bf16.mxu0 0
        %4427 = vmatpush1.bf16.msra.mxu0 %v4411
        %4428 = vmatprep.subr.bf16.mxu0 0
        %4429 = vmatpush1.bf16.msra.mxu0 %v4410
        %4430 = vmatprep.subr.bf16.mxu0 0
        %4431 = vmatpush1.bf16.msra.mxu0 %v4409
        %4432 = vmatprep.subr.bf16.mxu0 0
        %4433 = vmatpush1.bf16.msra.mxu0 %v4408
        %4434 = vmatprep.subr.bf16.mxu0 0
        %4435 = vmatpush1.bf16.msra.mxu0 %v4407
        %4436 = vmatprep.subr.bf16.mxu0 0
        %4437 = vmatpush1.bf16.msra.mxu0 %v4406
        %4438 = vmatprep.subr.bf16.mxu0 0
        %4439 = vmatpush2.bf16.msra.mxu0 0
        %4440 = vmatprep.subr.bf16.mxu0 0
        %4441 = vmatpush2.bf16.msra.mxu0 0
        %4442 = vmatprep.subr.bf16.mxu0 0
        %4443 = vmatpush2.bf16.msra.mxu0 0
        %4444 = vmatprep.subr.bf16.mxu0 0
        %4445 = vmatpush2.bf16.msra.mxu0 0
        %4446 = vmatprep.subr.bf16.mxu0 0
        %4447 = vmatpush2.bf16.msra.mxu0 0
        %4448 = vmatprep.subr.bf16.mxu0 0
        %4449 = vmatpush2.bf16.msra.mxu0 0
        %4450 = vmatprep.subr.bf16.mxu0 0
        %4451 = vmatpush2.bf16.msra.mxu0 0
        %4452 = vmatprep.subr.bf16.mxu0 0
        %4453 = vmatpush2.bf16.msra.mxu0 0
        %4454 = vmatprep.mubr.bf16.mxu0 0
        %4455 = vmatmul.mubr.bf16.gmra.mxu0 %v4348
        %v4456 = vpop.f32.mrf.mxu0
        %v4457 = vadd.f32 %v4372, %v4456
        %v4458 = vpop.f32.mrf.mxu0
        %v4459 = vpop.f32.mrf.mxu0
        %v4460 = vpop.f32.mrf.mxu0
        %4461 = vdwg.mxu0
        %v4462 = vmax.f32 %v4457, 0.0
        %v4463 = vpack.c.bf16 %v4462, %v4462
        %s4464 = scalar_lea.vmem %s12, 64
        %v4465 = vld [vmem:[%s4464] sm:$0xf]
        %v4466 = vld [vmem:[%s4464 + $0x4] sm:$0xf]
        %v4467 = vld [vmem:[%s4464 + $0x8] sm:$0xf]
        %v4468 = vld [vmem:[%s4464 + $0xc] sm:$0xf]
        %v4469 = vld [vmem:[%s4464 + $0x10] sm:$0xf]
        %v4470 = vld [vmem:[%s4464 + $0x14] sm:$0xf]
        %v4471 = vld [vmem:[%s4464 + $0x18] sm:$0xf]
        %v4472 = vld [vmem:[%s4464 + $0x1c] sm:$0xf]
        %v4473 = vld [vmem:[%s4464 + $0x20] sm:$0xf]
        %v4474 = vld [vmem:[%s4464 + $0x24] sm:$0xf]
        %v4475 = vld [vmem:[%s4464 + $0x28] sm:$0xf]
        %v4476 = vld [vmem:[%s4464 + $0x2c] sm:$0xf]
        %v4477 = vld [vmem:[%s4464 + $0x30] sm:$0xf]
        %v4478 = vld [vmem:[%s4464 + $0x34] sm:$0xf]
        %v4479 = vld [vmem:[%s4464 + $0x38] sm:$0xf]
        %v4480 = vld [vmem:[%s4464 + $0x3c] sm:$0xf]
        %s4481 = scalar_lea.vmem %s13, 1
        %v4482 = vld [vmem:[%s4481] sm:$0x1]
        %v4484 = vlaneseq
        %v4485 = vshrl.u32 %v4484, 7
        %v4486 = vsub.s32 0, %v4485
        %v4487 = vrot.slane %v4482, %v4486
        %v4505 = vunpack.c.l.b16 %v4465
        %v4506 = vunpack.c.l.b16 %v4466
        %v4507 = vunpack.c.l.b16 %v4467
        %v4508 = vunpack.c.l.b16 %v4468
        %v4509 = vunpack.c.l.b16 %v4469
        %v4510 = vunpack.c.l.b16 %v4470
        %v4511 = vunpack.c.l.b16 %v4471
        %v4512 = vunpack.c.l.b16 %v4472
        %v4513 = vunpack.c.l.b16 %v4473
        %v4514 = vunpack.c.l.b16 %v4474
        %v4515 = vunpack.c.l.b16 %v4475
        %v4516 = vunpack.c.l.b16 %v4476
        %v4517 = vunpack.c.l.b16 %v4477
        %v4518 = vunpack.c.l.b16 %v4478
        %v4519 = vunpack.c.l.b16 %v4479
        %v4520 = vunpack.c.l.b16 %v4480
        %v4521 = vpack.c.b16 %v4506, %v4505
        %v4522 = vpack.c.b16 %v4508, %v4507
        %v4523 = vpack.c.b16 %v4510, %v4509
        %v4524 = vpack.c.b16 %v4512, %v4511
        %v4525 = vpack.c.b16 %v4514, %v4513
        %v4526 = vpack.c.b16 %v4516, %v4515
        %v4527 = vpack.c.b16 %v4518, %v4517
        %v4528 = vpack.c.b16 %v4520, %v4519
        %4537 = vmatprep.subr.bf16.mxu0 0
        %4538 = vmatpush1.bf16.msra.mxu0 %v4528
        %4539 = vmatprep.subr.bf16.mxu0 0
        %4540 = vmatpush1.bf16.msra.mxu0 %v4527
        %4541 = vmatprep.subr.bf16.mxu0 0
        %4542 = vmatpush1.bf16.msra.mxu0 %v4526
        %4543 = vmatprep.subr.bf16.mxu0 0
        %4544 = vmatpush1.bf16.msra.mxu0 %v4525
        %4545 = vmatprep.subr.bf16.mxu0 0
        %4546 = vmatpush1.bf16.msra.mxu0 %v4524
        %4547 = vmatprep.subr.bf16.mxu0 0
        %4548 = vmatpush1.bf16.msra.mxu0 %v4523
        %4549 = vmatprep.subr.bf16.mxu0 0
        %4550 = vmatpush1.bf16.msra.mxu0 %v4522
        %4551 = vmatprep.subr.bf16.mxu0 0
        %4552 = vmatpush1.bf16.msra.mxu0 %v4521
        %4553 = vmatprep.subr.bf16.mxu0 0
        %4554 = vmatpush2.bf16.msra.mxu0 0
        %4555 = vmatprep.subr.bf16.mxu0 0
        %4556 = vmatpush2.bf16.msra.mxu0 0
        %4557 = vmatprep.subr.bf16.mxu0 0
        %4558 = vmatpush2.bf16.msra.mxu0 0
        %4559 = vmatprep.subr.bf16.mxu0 0
        %4560 = vmatpush2.bf16.msra.mxu0 0
        %4561 = vmatprep.subr.bf16.mxu0 0
        %4562 = vmatpush2.bf16.msra.mxu0 0
        %4563 = vmatprep.subr.bf16.mxu0 0
        %4564 = vmatpush2.bf16.msra.mxu0 0
        %4565 = vmatprep.subr.bf16.mxu0 0
        %4566 = vmatpush2.bf16.msra.mxu0 0
        %4567 = vmatprep.subr.bf16.mxu0 0
        %4568 = vmatpush2.bf16.msra.mxu0 0
        %4569 = vmatprep.mubr.bf16.mxu0 0
        %4570 = vmatmul.mubr.bf16.gmra.mxu0 %v4463
        %v4571 = vpop.f32.mrf.mxu0
        %v4572 = vadd.f32 %v4487, %v4571
        %v4573 = vpop.f32.mrf.mxu0
        %v4574 = vpop.f32.mrf.mxu0
        %v4575 = vpop.f32.mrf.mxu0
        %4576 = vdwg.mxu0
        %v4577 = vadd.f32 %v4315, %v4572
        %v4578 = vld [vmem:[%s14] sm:$0x1]
        %v4579 = vld [vmem:[%s15] sm:$0x1]
        %4580 = vadd.xlane.f32.xlu0 %v4577
        %v4581 = vpop.xlane.xlu0 %4580
        %v4582 = vmul.f32 %v4581, 0.03125
        %v4583 = vmul.f32 %v4577, %v4577
        %4584 = vadd.xlane.f32.xlu0 %v4583
        %v4585 = vpop.xlane.xlu0 %4584
        %v4586 = vmul.f32 %v4585, 0.03125
        %v4587 = vmul.f32 %v4582, %v4582
        %v4588 = vsub.f32 %v4586, %v4587
        %v4589 = vmax.f32 %v4588, 0.0
        %v4590 = vsub.f32 %v4577, %v4582
        %v4591 = vadd.f32 %v4589, 1e-06
        %v4592 = vrsqrt.pop %v4591
        %v4593 = vmul.f32 %v4590, %v4592
        %v4595 = vlaneseq
        %v4596 = vshrl.u32 %v4595, 7
        %v4597 = vsub.s32 0, %v4596
        %v4598 = vrot.slane %v4578, %v4597
        %v4600 = vmul.f32 %v4593, %v4598
        %v4602 = vlaneseq
        %v4603 = vshrl.u32 %v4602, 7
        %v4604 = vsub.s32 0, %v4603
        %v4605 = vrot.slane %v4579, %v4604
        %v4607 = vadd.f32 %v4600, %v4605
        %v4608 = vpack.c.bf16 %v4607, %v4607
        %v4609 = vld [vmem:[%s16] sm:$0xf]
        %v4610 = vld [vmem:[%s16 + $0x4] sm:$0xf]
        %v4611 = vld [vmem:[%s16 + $0x8] sm:$0xf]
        %v4612 = vld [vmem:[%s16 + $0xc] sm:$0xf]
        %v4613 = vld [vmem:[%s16 + $0x10] sm:$0xf]
        %v4614 = vld [vmem:[%s16 + $0x14] sm:$0xf]
        %v4615 = vld [vmem:[%s16 + $0x18] sm:$0xf]
        %v4616 = vld [vmem:[%s16 + $0x1c] sm:$0xf]
        %v4617 = vld [vmem:[%s16 + $0x20] sm:$0xf]
        %v4618 = vld [vmem:[%s16 + $0x24] sm:$0xf]
        %v4619 = vld [vmem:[%s16 + $0x28] sm:$0xf]
        %v4620 = vld [vmem:[%s16 + $0x2c] sm:$0xf]
        %v4621 = vld [vmem:[%s16 + $0x30] sm:$0xf]
        %v4622 = vld [vmem:[%s16 + $0x34] sm:$0xf]
        %v4623 = vld [vmem:[%s16 + $0x38] sm:$0xf]
        %v4624 = vld [vmem:[%s16 + $0x3c] sm:$0xf]
        %v4625 = vld [vmem:[%s17] sm:$0x1]
        %v4627 = vlaneseq
        %v4628 = vshrl.u32 %v4627, 7
        %v4629 = vsub.s32 0, %v4628
        %v4630 = vrot.slane %v4625, %v4629
        %v4648 = vunpack.c.l.b16 %v4609
        %v4649 = vunpack.c.l.b16 %v4610
        %v4650 = vunpack.c.l.b16 %v4611
        %v4651 = vunpack.c.l.b16 %v4612
        %v4652 = vunpack.c.l.b16 %v4613
        %v4653 = vunpack.c.l.b16 %v4614
        %v4654 = vunpack.c.l.b16 %v4615
        %v4655 = vunpack.c.l.b16 %v4616
        %v4656 = vunpack.c.l.b16 %v4617
        %v4657 = vunpack.c.l.b16 %v4618
        %v4658 = vunpack.c.l.b16 %v4619
        %v4659 = vunpack.c.l.b16 %v4620
        %v4660 = vunpack.c.l.b16 %v4621
        %v4661 = vunpack.c.l.b16 %v4622
        %v4662 = vunpack.c.l.b16 %v4623
        %v4663 = vunpack.c.l.b16 %v4624
        %v4664 = vpack.c.b16 %v4649, %v4648
        %v4665 = vpack.c.b16 %v4651, %v4650
        %v4666 = vpack.c.b16 %v4653, %v4652
        %v4667 = vpack.c.b16 %v4655, %v4654
        %v4668 = vpack.c.b16 %v4657, %v4656
        %v4669 = vpack.c.b16 %v4659, %v4658
        %v4670 = vpack.c.b16 %v4661, %v4660
        %v4671 = vpack.c.b16 %v4663, %v4662
        %4680 = vmatprep.subr.bf16.mxu0 0
        %4681 = vmatpush1.bf16.msra.mxu0 %v4671
        %4682 = vmatprep.subr.bf16.mxu0 0
        %4683 = vmatpush1.bf16.msra.mxu0 %v4670
        %4684 = vmatprep.subr.bf16.mxu0 0
        %4685 = vmatpush1.bf16.msra.mxu0 %v4669
        %4686 = vmatprep.subr.bf16.mxu0 0
        %4687 = vmatpush1.bf16.msra.mxu0 %v4668
        %4688 = vmatprep.subr.bf16.mxu0 0
        %4689 = vmatpush1.bf16.msra.mxu0 %v4667
        %4690 = vmatprep.subr.bf16.mxu0 0
        %4691 = vmatpush1.bf16.msra.mxu0 %v4666
        %4692 = vmatprep.subr.bf16.mxu0 0
        %4693 = vmatpush1.bf16.msra.mxu0 %v4665
        %4694 = vmatprep.subr.bf16.mxu0 0
        %4695 = vmatpush1.bf16.msra.mxu0 %v4664
        %4696 = vmatprep.subr.bf16.mxu0 0
        %4697 = vmatpush2.bf16.msra.mxu0 0
        %4698 = vmatprep.subr.bf16.mxu0 0
        %4699 = vmatpush2.bf16.msra.mxu0 0
        %4700 = vmatprep.subr.bf16.mxu0 0
        %4701 = vmatpush2.bf16.msra.mxu0 0
        %4702 = vmatprep.subr.bf16.mxu0 0
        %4703 = vmatpush2.bf16.msra.mxu0 0
        %4704 = vmatprep.subr.bf16.mxu0 0
        %4705 = vmatpush2.bf16.msra.mxu0 0
        %4706 = vmatprep.subr.bf16.mxu0 0
        %4707 = vmatpush2.bf16.msra.mxu0 0
        %4708 = vmatprep.subr.bf16.mxu0 0
        %4709 = vmatpush2.bf16.msra.mxu0 0
        %4710 = vmatprep.subr.bf16.mxu0 0
        %4711 = vmatpush2.bf16.msra.mxu0 0
        %4712 = vmatprep.mubr.bf16.mxu0 0
        %4713 = vmatmul.mubr.bf16.gmra.mxu0 %v4608
        %v4714 = vpop.f32.mrf.mxu0
        %v4715 = vadd.f32 %v4630, %v4714
        %v4716 = vpop.f32.mrf.mxu0
        %v4717 = vpop.f32.mrf.mxu0
        %v4718 = vpop.f32.mrf.mxu0
        %4719 = vdwg.mxu0
        %4720 = vmax.xlane.f32.xlu0 %v4715
        %v4721 = vpop.xlane.xlu0 %4720
        %v4722 = vsub.f32 %v4715, %v4721
        %v4723 = vmul.f32 %v4722, 1.442695
        %v4724 = vpow.pop %v4723
        %4725 = vadd.xlane.f32.xlu0 %v4724
        %v4726 = vpop.xlane.xlu0 %4725
        %v4727 = vrcp.pop %v4726
        %v4728 = vmul.f32 %v4724, %v4727
        %4729 = vst [vmem:[%s698] sm:$0xff] %v4728
        %s4730 = sand.u32 %s433, 1
        %s4731 = scalar_lea.sflag [#allocation4], %s4730
        %s4732 = sand.u32 %s433, 1
        %s4733 = smul.addr %s4732, 8
        %s4734 = scalar_lea.vmem [#allocation16], %s4733
        // Predicated region
        $region125: #{tfm_lm_forward.1} parent=91 // pred_check
          %p4735 = pneg %p443
        $region126: #{tfm_lm_forward.1} parent=91 // pred_check_branch
          %4737 = sbr.rel (%p4735) target = $region128
        $region127: #{tfm_lm_forward.1} parent=91 // pred_region
          %s4739 = ssub.s32 128, 128
          %4740 = vsyncadd %s4731, %s4739
          %s4741 = smul.addr %s37, 128
          %s4742 = scalar_lea.hbm %s18, %s4741
          %s4744 = sshll.u32 %s4734, 4
          %s4745 = int_to_ptr.vmem [resolvable:$true] %s4744
          %4747 = dma.vmem_to_hbm [thread:$0]  %s4745, 128, %s4742, %s4731
        $region128: #{tfm_lm_forward.1} parent=91 // pred_fallthru
          _
      $region92: #{tfm_lm_forward.1} parent=5 // pred_fallthru
        _
      %p4748 = scmp.le.s32.totalorder 2, %s32
      // Predicated region
      $region129: #{tfm_lm_forward.1} parent=5 // pred_check
        %p4749 = pneg %p4748
      $region130: #{tfm_lm_forward.1} parent=5 // pred_check_branch
        %4751 = sbr.rel (%p4749) target = $region132
      $region131: #{tfm_lm_forward.1} parent=5 // pred_region
        %s4752 = ssub.s32 %s32, 2
        // Predicated region
        $region133: #{tfm_lm_forward.1} parent=131 // pred_check
          %p4753 = pneg %p449
        $region134: #{tfm_lm_forward.1} parent=131 // pred_check_branch
          %4755 = sbr.rel (%p4753) target = $region136
        $region135: #{tfm_lm_forward.1} parent=131 // pred_region
          %s4756 = sand.u32 %s434, 1
          %s4757 = scalar_lea.sflag [#allocation4], %s4756
          %s4758 = sand.u32 %s434, 1
          %s4759 = smul.addr %s4758, 8
          %s4760 = scalar_lea.vmem [#allocation16], %s4759
          %4761 = dma.done %s4757, 128
        $region136: #{tfm_lm_forward.1} parent=131 // pred_fallthru
          _
      $region132: #{tfm_lm_forward.1} parent=5 // pred_fallthru
        _
    $region6: #{tfm_lm_forward.1} parent=1 // loop_footer
      %s36 = sadd.s32 1, %s32
    $region7: #{tfm_lm_forward.1} parent=1 // loop_footer_branch
      %31 = sbr.rel target = $region3
    $region8: #{tfm_lm_forward.1} parent=1 // loop_exit
      _
    %4762 = vsyncpa [#allocation3], 1
    %s4763 = scalar_lea.sflag [#allocation3], 1
    %4764 = vsyncpa %s4763, 1
    %4765 = vsyncpa [#allocation6], 1
    %4766 = vsyncpa [#allocation9], 1
    %4767 = vsyncpa [#allocation12], 1
    %4768 = vsyncpa [#allocation15], 1
    %4769 = vsyncpa [#allocation4], 1
    %s4770 = scalar_lea.sflag [#allocation4], 1
    %4771 = vsyncpa %s4770, 1

</llo_original>
